<compile_context>
chip_gen: v7x
topology: tpu7x:2x2x1
jax: 0.10.0
libtpu: 0.0.40
codegen_flags: <defaults>
</compile_context>

<pallas_src>
import jax
import jax.numpy as jnp
from jax.experimental import pallas as pl
from jax.experimental.pallas import tpu as pltpu


def _round_up(x, m):
    return ((x + m - 1) // m) * m


# ---------------------------------------------------------------------------
# Pallas kernel: in-kernel 9-tap conv + folded BN (+ fused shortcut + ReLU)
# ---------------------------------------------------------------------------

def _make_kernel(taps, relu, shortcut_kind):
    """taps: static list of (phase, flat_row_offset), one per (dy, dx)."""

    def kernel(*refs):
        if shortcut_kind == "conv":
            (x_ref, w_ref, s_ref, b_ref,
             xs_ref, ws_ref, ss_ref, bs_ref, o_ref) = refs
        elif shortcut_kind == "identity":
            x_ref, w_ref, s_ref, b_ref, xid_ref, o_ref = refs
        else:
            x_ref, w_ref, s_ref, b_ref, o_ref = refs

        m = o_ref.shape[0]
        # f32 accumulator held as a value; written to the output exactly once.
        acc = jnp.zeros(o_ref.shape, jnp.float32)
        for t, (phase, off) in enumerate(taps):          # static unroll: 9 taps
            lhs = x_ref[phase, pl.ds(off, m), :]         # (M, Cinp) bf16 slab
            acc = acc + jnp.dot(lhs, w_ref[t],           # VMEM-resident weights
                                preferred_element_type=jnp.float32)

        out = acc * s_ref[...] + b_ref[...]              # folded BN (eval mode)
        if shortcut_kind == "conv":
            # fused 1x1 shortcut conv + its folded BN (never round-trips HBM)
            res = jnp.dot(xs_ref[...], ws_ref[...],
                          preferred_element_type=jnp.float32)
            out = out + (res * ss_ref[...] + bs_ref[...])
        elif shortcut_kind == "identity":
            out = out + xid_ref[...].astype(jnp.float32)
        if relu:
            out = jnp.maximum(out, 0.0)
        o_ref[...] = out.astype(o_ref.dtype)

    return kernel


def _conv_bn_pallas(xf, w_taps, scale, bias, *, taps, m_out, relu,
                    shortcut=None, out_dtype=jnp.float32):
    """3x3 conv (9 in-kernel taps) + BN (+ shortcut + ReLU) in one kernel."""
    N, P, L, Cinp = xf.shape
    KT, _, Coutp = w_taps.shape
    kind = None if shortcut is None else shortcut["kind"]
    kernel = _make_kernel(taps, relu, kind)

    in_specs = [
        # all phase planes of one image (full flattened length -> legal block)
        pl.BlockSpec((None, P, L, Cinp), lambda n: (n, 0, 0, 0)),
        # 3x3 weights: constant index_map -> fetched once, stays in VMEM
        pl.BlockSpec((KT, Cinp, Coutp), lambda n: (0, 0, 0)),
        pl.BlockSpec((1, Coutp), lambda n: (0, 0)),
        pl.BlockSpec((1, Coutp), lambda n: (0, 0)),
    ]
    args = [xf, w_taps, scale, bias]

    if kind == "conv":
        Ms, Cs = shortcut["xs"].shape[1:]
        in_specs += [
            pl.BlockSpec((None, Ms, Cs), lambda n: (n, 0, 0)),
            pl.BlockSpec((Cs, Coutp), lambda n: (0, 0)),
            pl.BlockSpec((1, Coutp), lambda n: (0, 0)),
            pl.BlockSpec((1, Coutp), lambda n: (0, 0)),
        ]
        args += [shortcut["xs"], shortcut["ws"], shortcut["ss"], shortcut["bs"]]
    elif kind == "identity":
        Mi, Ci = shortcut["xid"].shape[1:]
        in_specs += [pl.BlockSpec((None, Mi, Ci), lambda n: (n, 0, 0))]
        args += [shortcut["xid"]]

    return pl.pallas_call(
        kernel,
        out_shape=jax.ShapeDtypeStruct((N, m_out, Coutp), out_dtype),
        grid_spec=pltpu.PrefetchScalarGridSpec(
            num_scalar_prefetch=0,
            grid=(N,),
            in_specs=in_specs,
            out_specs=pl.BlockSpec((None, m_out, Coutp), lambda n: (n, 0, 0)),
        ),
        compiler_params=pltpu.CompilerParams(
            dimension_semantics=("parallel",)),
    )(*args)


# ---------------------------------------------------------------------------
# Wrapper-side layout prep (single pass; no im2col, no dx-plane duplication)
# ---------------------------------------------------------------------------

def _prep_conv3x3_input(x, stride):
    """x: (N, H, W, Cp) NHWC, channels already padded to a multiple of 128.

    Returns
      xf   : (N, P, L, Cp) bf16 — P = stride**2 phase planes, each flattened
             row-major with row width Wrow (plus trailing zero rows so every
             tap's Ho*Wrow-long slab stays in bounds).
      taps : list of (phase, flat_row_offset) for the 9 (dy, dx) taps.
      Ho, Wo, Wrow
    """
    N, H, W, Cp = x.shape
    xp = jnp.pad(x, ((0, 0), (1, 1), (1, 1), (0, 0)))
    Hp, Wp = H + 2, W + 2
    Ho = (Hp - 3) // stride + 1
    Wo = (Wp - 3) // stride + 1
    if stride == 1:
        Wrow, Hrow = Wp, Hp + 1                      # one extra zero row
        xr = jnp.pad(xp, ((0, 0), (0, 1), (0, 0), (0, 0)))
        xf = xr.reshape(N, 1, Hrow * Wrow, Cp)
        taps = [(0, dy * Wrow + dx) for dy in range(3) for dx in range(3)]
    else:
        s = stride
        Wrow, Hrow = Wo + 2, Ho + 2
        planes = []
        for py in range(s):
            for px in range(s):
                p = xp[:, py::s, px::s, :]
                p = jnp.pad(p, ((0, 0), (0, Hrow - p.shape[1]),
                                (0, Wrow - p.shape[2]), (0, 0)))
                planes.append(p.reshape(N, Hrow * Wrow, Cp))
        xf = jnp.stack(planes, axis=1)
        taps = [((dy % s) * s + (dx % s), (dy // s) * Wrow + (dx // s))
                for dy in range(3) for dx in range(3)]
    return xf.astype(jnp.bfloat16), taps, Ho, Wo, Wrow


def _prep_w3x3(w_oihw, cinp, coutp):
    """Tap-major (kh*kw, Cin_pad, Cout_pad) bf16 weights."""
    cout, cin, kh, kw = w_oihw.shape
    wt = jnp.transpose(w_oihw, (2, 3, 1, 0))          # (kh, kw, cin, cout)
    wt = jnp.pad(wt, ((0, 0), (0, 0), (0, cinp - cin), (0, coutp - cout)))
    return wt.reshape(kh * kw, cinp, coutp).astype(jnp.bfloat16)


def _fold_bn(gamma, beta, mean, var, coutp, eps=1e-5):
    scale = gamma / jnp.sqrt(var + eps)
    bias = beta - mean * scale
    pad = coutp - scale.shape[0]
    return (jnp.pad(scale, (0, pad)).reshape(1, coutp).astype(jnp.float32),
            jnp.pad(bias, (0, pad)).reshape(1, coutp).astype(jnp.float32))


def basic_block_forward(x_nchw, params, stride):
    """Equivalent of BasicBlock.forward (BatchNorm in eval mode)."""
    # NOTE: a real network should keep activations NHWC (and channel-padded)
    # across blocks; the transpose/pad here only adapts the PyTorch NCHW
    # interface once per call.
    x = jnp.transpose(x_nchw, (0, 2, 3, 1))                  # NCHW -> NHWC
    N, H, W, cin = x.shape
    cout = params["w1"].shape[0]
    cinp = _round_up(cin, 128)                               # lane-dense K
    coutp = _round_up(cout, 128)                             # lane-dense output
    xc = jnp.pad(x, ((0, 0), (0, 0), (0, 0), (0, cinp - cin)))

    # conv1 (3x3, stride, pad 1) + bn1 + ReLU -> bf16, channels stay padded
    s1, b1 = _fold_bn(params["g1"], params["be1"], params["m1"], params["v1"], coutp)
    w1 = _prep_w3x3(params["w1"], cinp, coutp)
    xf1, taps1, Ho, Wo, Wrow1 = _prep_conv3x3_input(xc, stride)
    out1 = _conv_bn_pallas(xf1, w1, s1, b1, taps=taps1, m_out=Ho * Wrow1,
                           relu=True, out_dtype=jnp.bfloat16)
    # drop the flattening's garbage columns; KEEP the 128-padded channels
    out1 = out1.reshape(N, Ho, Wrow1, coutp)[:, :, :Wo, :]

    # shortcut operands, laid out flat in conv2's (Ho*Wrow2, C) output layout
    Wrow2 = Wo + 2

    def to_flat(a):                       # (N, Ho, Wo, C) -> (N, Ho*Wrow2, C)
        a = jnp.pad(a, ((0, 0), (0, 0), (0, Wrow2 - Wo), (0, 0)))
        return a.reshape(N, Ho * Wrow2, a.shape[-1]).astype(jnp.bfloat16)

    if stride != 1 or cin != cout:
        ss, bs = _fold_bn(params["gs"], params["bes"], params["ms"], params["vs"],
                          coutp)
        ws = jnp.transpose(params["ws"], (2, 3, 1, 0)).reshape(cin, cout)
        ws = jnp.pad(ws, ((0, cinp - cin), (0, coutp - cout))).astype(jnp.bfloat16)
        shortcut = dict(kind="conv", xs=to_flat(xc[:, ::stride, ::stride, :]),
                        ws=ws, ss=ss, bs=bs)
    else:
        shortcut = dict(kind="identity", xid=to_flat(xc))

    # conv2 (3x3, stride 1, pad 1) + bn2 + shortcut + final ReLU, fully fused
    s2, b2 = _fold_bn(params["g2"], params["be2"], params["m2"], params["v2"], coutp)
    w2 = _prep_w3x3(params["w2"], coutp, coutp)
    xf2, taps2, Ho2, Wo2, Wrow2b = _prep_conv3x3_input(out1, 1)
    assert (Ho2, Wo2, Wrow2b) == (Ho, Wo, Wrow2)
    out2 = _conv_bn_pallas(xf2, w2, s2, b2, taps=taps2, m_out=Ho * Wrow2,
                           relu=True, shortcut=shortcut, out_dtype=jnp.float32)
    out2 = out2.reshape(N, Ho, Wrow2, coutp)[:, :, :Wo, :cout]
    return jnp.transpose(out2, (0, 3, 1, 2))                 # NHWC -> NCHW


# ---------------------------------------------------------------------------
# Pure-JAX reference (eval-mode BN) for correctness checking
# ---------------------------------------------------------------------------

def _reference_block(x_nchw, params, stride, eps=1e-5):
    def conv(x, w, s, p):
        return jax.lax.conv_general_dilated(
            x, w, window_strides=(s, s), padding=((p, p), (p, p)),
            dimension_numbers=("NCHW", "OIHW", "NCHW"))

    def bn(x, g, b, m, v):
        sc = g / jnp.sqrt(v + eps)
        return x * sc[None, :, None, None] + (b - m * sc)[None, :, None, None]

    out = jax.nn.relu(bn(conv(x_nchw, params["w1"], stride, 1),
                         params["g1"], params["be1"], params["m1"], params["v1"]))
    out = bn(conv(out, params["w2"], 1, 1),
             params["g2"], params["be2"], params["m2"], params["v2"])
    if stride != 1 or x_nchw.shape[1] != params["w1"].shape[0]:
        sc = bn(conv(x_nchw, params["ws"], stride, 0),
                params["gs"], params["bes"], params["ms"], params["vs"])
    else:
        sc = x_nchw
    return jax.nn.relu(out + sc)


if __name__ == "__main__":
    root = jax.random.PRNGKey(0)

    def make_params(key, in_c, out_c, with_shortcut):
        ks = jax.random.split(key, 16)
        p = {
            "w1": 0.1 * jax.random.normal(ks[0], (out_c, in_c, 3, 3), jnp.float32),
            "g1": 1.0 + 0.1 * jax.random.normal(ks[1], (out_c,), jnp.float32),
            "be1": 0.1 * jax.random.normal(ks[2], (out_c,), jnp.float32),
            "m1": 0.1 * jax.random.normal(ks[3], (out_c,), jnp.float32),
            "v1": 1.0 + 0.2 * jax.random.uniform(ks[4], (out_c,), jnp.float32),
            "w2": 0.1 * jax.random.normal(ks[5], (out_c, out_c, 3, 3), jnp.float32),
            "g2": 1.0 + 0.1 * jax.random.normal(ks[6], (out_c,), jnp.float32),
            "be2": 0.1 * jax.random.normal(ks[7], (out_c,), jnp.float32),
            "m2": 0.1 * jax.random.normal(ks[8], (out_c,), jnp.float32),
            "v2": 1.0 + 0.2 * jax.random.uniform(ks[9], (out_c,), jnp.float32),
        }
        if with_shortcut:
            p.update({
                "ws": 0.1 * jax.random.normal(ks[10], (out_c, in_c, 1, 1), jnp.float32),
                "gs": 1.0 + 0.1 * jax.random.normal(ks[11], (out_c,), jnp.float32),
                "bes": 0.1 * jax.random.normal(ks[12], (out_c,), jnp.float32),
                "ms": 0.1 * jax.random.normal(ks[13], (out_c,), jnp.float32),
                "vs": 1.0 + 0.2 * jax.random.uniform(ks[14], (out_c,), jnp.float32),
            })
        return p

    k1, k2, k3, k4 = jax.random.split(root, 4)
    fwd = jax.jit(basic_block_forward, static_argnums=2)

    # Case 1: downsampling block (stride 2, channel change) -> fused 1x1 shortcut.
    in_c, out_c, stride = 4, 8, 2
    N, H, W = 2, 16, 16
    params = make_params(k1, in_c, out_c, True)
    x = jax.random.normal(k2, (N, in_c, H, W), jnp.float32)   # NCHW like PyTorch

    y = fwd(x, params, stride)
    jax.block_until_ready(y)
    y_ref = _reference_block(x, params, stride)
    assert y.shape == (N, out_c, H // stride, W // stride), y.shape
    assert bool(jnp.all(y >= 0.0))                            # final ReLU
    assert bool(jnp.allclose(y, y_ref, rtol=5e-2, atol=5e-2)), \
        float(jnp.max(jnp.abs(y - y_ref)))

    # Case 2: identity-shortcut block (stride 1, same channels).
    params2 = make_params(k3, 8, 8, False)
    x2 = jax.random.normal(k4, (2, 8, 8, 8), jnp.float32)
    y2 = fwd(x2, params2, 1)
    jax.block_until_ready(y2)
    y2_ref = _reference_block(x2, params2, 1)
    assert bool(jnp.all(y2 >= 0.0))
    assert bool(jnp.allclose(y2, y2_ref, rtol=5e-2, atol=5e-2)), \
        float(jnp.max(jnp.abs(y2 - y2_ref)))

    print("KERNEL_OK")
</pallas_src>

<mosaic_0001>
module attributes {stable_mosaic.version = 11 : i64} {
  func.func @kernel(%arg0: i32, %arg1: memref<1x4x100x128xbf16, #tpu.memory_space<vmem>>, %arg2: memref<9x128x128xbf16, #tpu.memory_space<vmem>>, %arg3: memref<1x128xf32, #tpu.memory_space<vmem>>, %arg4: memref<1x128xf32, #tpu.memory_space<vmem>>, %arg5: memref<1x80x128xbf16, #tpu.memory_space<vmem>>) attributes {dimension_semantics = [#tpu.dimension_semantics<parallel>], iteration_bounds = array<i64: 2>, scalar_prefetch = 0 : i64, scratch_operands = 0 : i64, tpu.core_type = #tpu.core_type<tc>, window_params = [{transform_indices = @transform_0, window_bounds = array<i64: 1, 4, 100, 128>}, {pipeline_mode = #tpu.pipeline_mode<synchronous>, transform_indices = @transform_1, window_bounds = array<i64: 9, 128, 128>}, {pipeline_mode = #tpu.pipeline_mode<synchronous>, transform_indices = @transform_2, window_bounds = array<i64: 1, 128>}, {pipeline_mode = #tpu.pipeline_mode<synchronous>, transform_indices = @transform_3, window_bounds = array<i64: 1, 128>}, {transform_indices = @transform_4, window_bounds = array<i64: 1, 80, 128>}]} {
    %cst = arith.constant 0.000000e+00 : f32
    %0 = vector.broadcast %cst : f32 to vector<80x128xf32>
    %c0 = arith.constant 0 : index
    %c0_0 = arith.constant 0 : index
    %c0_1 = arith.constant 0 : index
    %c0_2 = arith.constant 0 : index
    %1 = vector.load %arg1[%c0, %c0_0, %c0_1, %c0_2] : memref<1x4x100x128xbf16, #tpu.memory_space<vmem>>, vector<1x1x80x128xbf16>
    %2 = vector.shape_cast %1 : vector<1x1x80x128xbf16> to vector<80x128xbf16>
    %c0_3 = arith.constant 0 : index
    %c0_4 = arith.constant 0 : index
    %c0_5 = arith.constant 0 : index
    %3 = vector.load %arg2[%c0_3, %c0_4, %c0_5] : memref<9x128x128xbf16, #tpu.memory_space<vmem>>, vector<1x128x128xbf16>
    %4 = vector.shape_cast %3 : vector<1x128x128xbf16> to vector<128x128xbf16>
    %cst_6 = arith.constant dense<0.000000e+00> : vector<80x128xf32>
    %5 = tpu.matmul %2, %4, %cst_6 {dimension_numbers = #tpu.dot_dimension_numbers<[1], [0], [0], [1], [0, 0, 1, 1], [], []>} : vector<80x128xbf16>, vector<128x128xbf16>, vector<80x128xf32> -> vector<80x128xf32>
    %6 = arith.addf %0, %5 : vector<80x128xf32>
    %c0_7 = arith.constant 0 : index
    %c1 = arith.constant 1 : index
    %c0_8 = arith.constant 0 : index
    %c0_9 = arith.constant 0 : index
    %7 = vector.load %arg1[%c0_7, %c1, %c0_8, %c0_9] : memref<1x4x100x128xbf16, #tpu.memory_space<vmem>>, vector<1x1x80x128xbf16>
    %8 = vector.shape_cast %7 : vector<1x1x80x128xbf16> to vector<80x128xbf16>
    %c1_10 = arith.constant 1 : index
    %c0_11 = arith.constant 0 : index
    %c0_12 = arith.constant 0 : index
    %9 = vector.load %arg2[%c1_10, %c0_11, %c0_12] : memref<9x128x128xbf16, #tpu.memory_space<vmem>>, vector<1x128x128xbf16>
    %10 = vector.shape_cast %9 : vector<1x128x128xbf16> to vector<128x128xbf16>
    %cst_13 = arith.constant dense<0.000000e+00> : vector<80x128xf32>
    %11 = tpu.matmul %8, %10, %cst_13 {dimension_numbers = #tpu.dot_dimension_numbers<[1], [0], [0], [1], [0, 0, 1, 1], [], []>} : vector<80x128xbf16>, vector<128x128xbf16>, vector<80x128xf32> -> vector<80x128xf32>
    %12 = arith.addf %6, %11 : vector<80x128xf32>
    %c0_14 = arith.constant 0 : index
    %c0_15 = arith.constant 0 : index
    %c1_16 = arith.constant 1 : index
    %c0_17 = arith.constant 0 : index
    %13 = vector.load %arg1[%c0_14, %c0_15, %c1_16, %c0_17] : memref<1x4x100x128xbf16, #tpu.memory_space<vmem>>, vector<1x1x80x128xbf16>
    %14 = vector.shape_cast %13 : vector<1x1x80x128xbf16> to vector<80x128xbf16>
    %c2 = arith.constant 2 : index
    %c0_18 = arith.constant 0 : index
    %c0_19 = arith.constant 0 : index
    %15 = vector.load %arg2[%c2, %c0_18, %c0_19] : memref<9x128x128xbf16, #tpu.memory_space<vmem>>, vector<1x128x128xbf16>
    %16 = vector.shape_cast %15 : vector<1x128x128xbf16> to vector<128x128xbf16>
    %cst_20 = arith.constant dense<0.000000e+00> : vector<80x128xf32>
    %17 = tpu.matmul %14, %16, %cst_20 {dimension_numbers = #tpu.dot_dimension_numbers<[1], [0], [0], [1], [0, 0, 1, 1], [], []>} : vector<80x128xbf16>, vector<128x128xbf16>, vector<80x128xf32> -> vector<80x128xf32>
    %18 = arith.addf %12, %17 : vector<80x128xf32>
    %c0_21 = arith.constant 0 : index
    %c2_22 = arith.constant 2 : index
    %c0_23 = arith.constant 0 : index
    %c0_24 = arith.constant 0 : index
    %19 = vector.load %arg1[%c0_21, %c2_22, %c0_23, %c0_24] : memref<1x4x100x128xbf16, #tpu.memory_space<vmem>>, vector<1x1x80x128xbf16>
    %20 = vector.shape_cast %19 : vector<1x1x80x128xbf16> to vector<80x128xbf16>
    %c3 = arith.constant 3 : index
    %c0_25 = arith.constant 0 : index
    %c0_26 = arith.constant 0 : index
    %21 = vector.load %arg2[%c3, %c0_25, %c0_26] : memref<9x128x128xbf16, #tpu.memory_space<vmem>>, vector<1x128x128xbf16>
    %22 = vector.shape_cast %21 : vector<1x128x128xbf16> to vector<128x128xbf16>
    %cst_27 = arith.constant dense<0.000000e+00> : vector<80x128xf32>
    %23 = tpu.matmul %20, %22, %cst_27 {dimension_numbers = #tpu.dot_dimension_numbers<[1], [0], [0], [1], [0, 0, 1, 1], [], []>} : vector<80x128xbf16>, vector<128x128xbf16>, vector<80x128xf32> -> vector<80x128xf32>
    %24 = arith.addf %18, %23 : vector<80x128xf32>
    %c0_28 = arith.constant 0 : index
    %c3_29 = arith.constant 3 : index
    %c0_30 = arith.constant 0 : index
    %c0_31 = arith.constant 0 : index
    %25 = vector.load %arg1[%c0_28, %c3_29, %c0_30, %c0_31] : memref<1x4x100x128xbf16, #tpu.memory_space<vmem>>, vector<1x1x80x128xbf16>
    %26 = vector.shape_cast %25 : vector<1x1x80x128xbf16> to vector<80x128xbf16>
    %c4 = arith.constant 4 : index
    %c0_32 = arith.constant 0 : index
    %c0_33 = arith.constant 0 : index
    %27 = vector.load %arg2[%c4, %c0_32, %c0_33] : memref<9x128x128xbf16, #tpu.memory_space<vmem>>, vector<1x128x128xbf16>
    %28 = vector.shape_cast %27 : vector<1x128x128xbf16> to vector<128x128xbf16>
    %cst_34 = arith.constant dense<0.000000e+00> : vector<80x128xf32>
    %29 = tpu.matmul %26, %28, %cst_34 {dimension_numbers = #tpu.dot_dimension_numbers<[1], [0], [0], [1], [0, 0, 1, 1], [], []>} : vector<80x128xbf16>, vector<128x128xbf16>, vector<80x128xf32> -> vector<80x128xf32>
    %30 = arith.addf %24, %29 : vector<80x128xf32>
    %c0_35 = arith.constant 0 : index
    %c2_36 = arith.constant 2 : index
    %c1_37 = arith.constant 1 : index
    %c0_38 = arith.constant 0 : index
    %31 = vector.load %arg1[%c0_35, %c2_36, %c1_37, %c0_38] : memref<1x4x100x128xbf16, #tpu.memory_space<vmem>>, vector<1x1x80x128xbf16>
    %32 = vector.shape_cast %31 : vector<1x1x80x128xbf16> to vector<80x128xbf16>
    %c5 = arith.constant 5 : index
    %c0_39 = arith.constant 0 : index
    %c0_40 = arith.constant 0 : index
    %33 = vector.load %arg2[%c5, %c0_39, %c0_40] : memref<9x128x128xbf16, #tpu.memory_space<vmem>>, vector<1x128x128xbf16>
    %34 = vector.shape_cast %33 : vector<1x128x128xbf16> to vector<128x128xbf16>
    %cst_41 = arith.constant dense<0.000000e+00> : vector<80x128xf32>
    %35 = tpu.matmul %32, %34, %cst_41 {dimension_numbers = #tpu.dot_dimension_numbers<[1], [0], [0], [1], [0, 0, 1, 1], [], []>} : vector<80x128xbf16>, vector<128x128xbf16>, vector<80x128xf32> -> vector<80x128xf32>
    %36 = arith.addf %30, %35 : vector<80x128xf32>
    %c0_42 = arith.constant 0 : index
    %c0_43 = arith.constant 0 : index
    %c10 = arith.constant 10 : index
    %c0_44 = arith.constant 0 : index
    %37 = vector.load %arg1[%c0_42, %c0_43, %c10, %c0_44] : memref<1x4x100x128xbf16, #tpu.memory_space<vmem>>, vector<1x1x80x128xbf16>
    %38 = vector.shape_cast %37 : vector<1x1x80x128xbf16> to vector<80x128xbf16>
    %c6 = arith.constant 6 : index
    %c0_45 = arith.constant 0 : index
    %c0_46 = arith.constant 0 : index
    %39 = vector.load %arg2[%c6, %c0_45, %c0_46] : memref<9x128x128xbf16, #tpu.memory_space<vmem>>, vector<1x128x128xbf16>
    %40 = vector.shape_cast %39 : vector<1x128x128xbf16> to vector<128x128xbf16>
    %cst_47 = arith.constant dense<0.000000e+00> : vector<80x128xf32>
    %41 = tpu.matmul %38, %40, %cst_47 {dimension_numbers = #tpu.dot_dimension_numbers<[1], [0], [0], [1], [0, 0, 1, 1], [], []>} : vector<80x128xbf16>, vector<128x128xbf16>, vector<80x128xf32> -> vector<80x128xf32>
    %42 = arith.addf %36, %41 : vector<80x128xf32>
    %c0_48 = arith.constant 0 : index
    %c1_49 = arith.constant 1 : index
    %c10_50 = arith.constant 10 : index
    %c0_51 = arith.constant 0 : index
    %43 = vector.load %arg1[%c0_48, %c1_49, %c10_50, %c0_51] : memref<1x4x100x128xbf16, #tpu.memory_space<vmem>>, vector<1x1x80x128xbf16>
    %44 = vector.shape_cast %43 : vector<1x1x80x128xbf16> to vector<80x128xbf16>
    %c7 = arith.constant 7 : index
    %c0_52 = arith.constant 0 : index
    %c0_53 = arith.constant 0 : index
    %45 = vector.load %arg2[%c7, %c0_52, %c0_53] : memref<9x128x128xbf16, #tpu.memory_space<vmem>>, vector<1x128x128xbf16>
    %46 = vector.shape_cast %45 : vector<1x128x128xbf16> to vector<128x128xbf16>
    %cst_54 = arith.constant dense<0.000000e+00> : vector<80x128xf32>
    %47 = tpu.matmul %44, %46, %cst_54 {dimension_numbers = #tpu.dot_dimension_numbers<[1], [0], [0], [1], [0, 0, 1, 1], [], []>} : vector<80x128xbf16>, vector<128x128xbf16>, vector<80x128xf32> -> vector<80x128xf32>
    %48 = arith.addf %42, %47 : vector<80x128xf32>
    %c0_55 = arith.constant 0 : index
    %c0_56 = arith.constant 0 : index
    %c11 = arith.constant 11 : index
    %c0_57 = arith.constant 0 : index
    %49 = vector.load %arg1[%c0_55, %c0_56, %c11, %c0_57] : memref<1x4x100x128xbf16, #tpu.memory_space<vmem>>, vector<1x1x80x128xbf16>
    %50 = vector.shape_cast %49 : vector<1x1x80x128xbf16> to vector<80x128xbf16>
    %c8 = arith.constant 8 : index
    %c0_58 = arith.constant 0 : index
    %c0_59 = arith.constant 0 : index
    %51 = vector.load %arg2[%c8, %c0_58, %c0_59] : memref<9x128x128xbf16, #tpu.memory_space<vmem>>, vector<1x128x128xbf16>
    %52 = vector.shape_cast %51 : vector<1x128x128xbf16> to vector<128x128xbf16>
    %cst_60 = arith.constant dense<0.000000e+00> : vector<80x128xf32>
    %53 = tpu.matmul %50, %52, %cst_60 {dimension_numbers = #tpu.dot_dimension_numbers<[1], [0], [0], [1], [0, 0, 1, 1], [], []>} : vector<80x128xbf16>, vector<128x128xbf16>, vector<80x128xf32> -> vector<80x128xf32>
    %54 = arith.addf %48, %53 : vector<80x128xf32>
    %c0_61 = arith.constant 0 : index
    %c0_62 = arith.constant 0 : index
    %55 = vector.load %arg3[%c0_61, %c0_62] : memref<1x128xf32, #tpu.memory_space<vmem>>, vector<1x128xf32>
    %56 = vector.broadcast %55 : vector<1x128xf32> to vector<80x128xf32>
    %57 = arith.mulf %54, %56 : vector<80x128xf32>
    %c0_63 = arith.constant 0 : index
    %c0_64 = arith.constant 0 : index
    %58 = vector.load %arg4[%c0_63, %c0_64] : memref<1x128xf32, #tpu.memory_space<vmem>>, vector<1x128xf32>
    %59 = vector.broadcast %58 : vector<1x128xf32> to vector<80x128xf32>
    %60 = arith.addf %57, %59 : vector<80x128xf32>
    %cst_65 = arith.constant 0.000000e+00 : f32
    %61 = vector.broadcast %cst_65 : f32 to vector<80x128xf32>
    %62 = arith.maximumf %60, %61 : vector<80x128xf32>
    %63 = arith.truncf %62 : vector<80x128xf32> to vector<80x128xbf16>
    %c0_66 = arith.constant 0 : index
    %c0_67 = arith.constant 0 : index
    %c0_68 = arith.constant 0 : index
    %64 = vector.load %arg5[%c0_66, %c0_67, %c0_68] : memref<1x80x128xbf16, #tpu.memory_space<vmem>>, vector<1x80x128xbf16>
    %65 = vector.shape_cast %64 : vector<1x80x128xbf16> to vector<80x128xbf16>
    %66 = vector.shape_cast %63 : vector<80x128xbf16> to vector<1x80x128xbf16>
    tpu.vector_store %arg5[%c0_66, %c0_67, %c0_68], %66 {strides = array<i32>} : memref<1x80x128xbf16, #tpu.memory_space<vmem>>, vector<1x80x128xbf16>,
    return
  }
  func.func @transform_0(%arg0: i32) -> (i32, i32, i32, i32) {
    %c0_i32 = arith.constant 0 : i32
    %c0_i32_0 = arith.constant 0 : i32
    %c0_i32_1 = arith.constant 0 : i32
    %c0_i32_2 = arith.constant 0 : i32
    return %arg0, %c0_i32, %c0_i32_0, %c0_i32_1 : i32, i32, i32, i32
  }
  func.func @transform_1(%arg0: i32) -> (i32, i32, i32) {
    %c0_i32 = arith.constant 0 : i32
    %c0_i32_0 = arith.constant 0 : i32
    %c0_i32_1 = arith.constant 0 : i32
    %c0_i32_2 = arith.constant 0 : i32
    return %c0_i32, %c0_i32_0, %c0_i32_1 : i32, i32, i32
  }
  func.func @transform_2(%arg0: i32) -> (i32, i32) {
    %c0_i32 = arith.constant 0 : i32
    %c0_i32_0 = arith.constant 0 : i32
    %c0_i32_1 = arith.constant 0 : i32
    return %c0_i32, %c0_i32_0 : i32, i32
  }
  func.func @transform_3(%arg0: i32) -> (i32, i32) {
    %c0_i32 = arith.constant 0 : i32
    %c0_i32_0 = arith.constant 0 : i32
    %c0_i32_1 = arith.constant 0 : i32
    return %c0_i32, %c0_i32_0 : i32, i32
  }
  func.func @transform_4(%arg0: i32) -> (i32, i32, i32) {
    %c0_i32 = arith.constant 0 : i32
    %c0_i32_0 = arith.constant 0 : i32
    %c0_i32_1 = arith.constant 0 : i32
    return %arg0, %c0_i32, %c0_i32_0 : i32, i32, i32
  }
}

module attributes {stable_mosaic.version = 11 : i64} {
  func.func @kernel(%arg0: i32, %arg1: memref<1x1x110x128xbf16, #tpu.memory_space<vmem>>, %arg2: memref<9x128x128xbf16, #tpu.memory_space<vmem>>, %arg3: memref<1x128xf32, #tpu.memory_space<vmem>>, %arg4: memref<1x128xf32, #tpu.memory_space<vmem>>, %arg5: memref<1x80x128xbf16, #tpu.memory_space<vmem>>, %arg6: memref<128x128xbf16, #tpu.memory_space<vmem>>, %arg7: memref<1x128xf32, #tpu.memory_space<vmem>>, %arg8: memref<1x128xf32, #tpu.memory_space<vmem>>, %arg9: memref<1x80x128xf32, #tpu.memory_space<vmem>>) attributes {dimension_semantics = [#tpu.dimension_semantics<parallel>], iteration_bounds = array<i64: 2>, scalar_prefetch = 0 : i64, scratch_operands = 0 : i64, tpu.core_type = #tpu.core_type<tc>, window_params = [{transform_indices = @transform_0, window_bounds = array<i64: 1, 1, 110, 128>}, {pipeline_mode = #tpu.pipeline_mode<synchronous>, transform_indices = @transform_1, window_bounds = array<i64: 9, 128, 128>}, {pipeline_mode = #tpu.pipeline_mode<synchronous>, transform_indices = @transform_2, window_bounds = array<i64: 1, 128>}, {pipeline_mode = #tpu.pipeline_mode<synchronous>, transform_indices = @transform_3, window_bounds = array<i64: 1, 128>}, {transform_indices = @transform_4, window_bounds = array<i64: 1, 80, 128>}, {pipeline_mode = #tpu.pipeline_mode<synchronous>, transform_indices = @transform_5, window_bounds = array<i64: 128, 128>}, {pipeline_mode = #tpu.pipeline_mode<synchronous>, transform_indices = @transform_6, window_bounds = array<i64: 1, 128>}, {pipeline_mode = #tpu.pipeline_mode<synchronous>, transform_indices = @transform_7, window_bounds = array<i64: 1, 128>}, {transform_indices = @transform_8, window_bounds = array<i64: 1, 80, 128>}]} {
    %cst = arith.constant 0.000000e+00 : f32
    %0 = vector.broadcast %cst : f32 to vector<80x128xf32>
    %c0 = arith.constant 0 : index
    %c0_0 = arith.constant 0 : index
    %c0_1 = arith.constant 0 : index
    %c0_2 = arith.constant 0 : index
    %1 = vector.load %arg1[%c0, %c0_0, %c0_1, %c0_2] : memref<1x1x110x128xbf16, #tpu.memory_space<vmem>>, vector<1x1x80x128xbf16>
    %2 = vector.shape_cast %1 : vector<1x1x80x128xbf16> to vector<80x128xbf16>
    %c0_3 = arith.constant 0 : index
    %c0_4 = arith.constant 0 : index
    %c0_5 = arith.constant 0 : index
    %3 = vector.load %arg2[%c0_3, %c0_4, %c0_5] : memref<9x128x128xbf16, #tpu.memory_space<vmem>>, vector<1x128x128xbf16>
    %4 = vector.shape_cast %3 : vector<1x128x128xbf16> to vector<128x128xbf16>
    %cst_6 = arith.constant dense<0.000000e+00> : vector<80x128xf32>
    %5 = tpu.matmul %2, %4, %cst_6 {dimension_numbers = #tpu.dot_dimension_numbers<[1], [0], [0], [1], [0, 0, 1, 1], [], []>} : vector<80x128xbf16>, vector<128x128xbf16>, vector<80x128xf32> -> vector<80x128xf32>
    %6 = arith.addf %0, %5 : vector<80x128xf32>
    %c0_7 = arith.constant 0 : index
    %c0_8 = arith.constant 0 : index
    %c1 = arith.constant 1 : index
    %c0_9 = arith.constant 0 : index
    %7 = vector.load %arg1[%c0_7, %c0_8, %c1, %c0_9] : memref<1x1x110x128xbf16, #tpu.memory_space<vmem>>, vector<1x1x80x128xbf16>
    %8 = vector.shape_cast %7 : vector<1x1x80x128xbf16> to vector<80x128xbf16>
    %c1_10 = arith.constant 1 : index
    %c0_11 = arith.constant 0 : index
    %c0_12 = arith.constant 0 : index
    %9 = vector.load %arg2[%c1_10, %c0_11, %c0_12] : memref<9x128x128xbf16, #tpu.memory_space<vmem>>, vector<1x128x128xbf16>
    %10 = vector.shape_cast %9 : vector<1x128x128xbf16> to vector<128x128xbf16>
    %cst_13 = arith.constant dense<0.000000e+00> : vector<80x128xf32>
    %11 = tpu.matmul %8, %10, %cst_13 {dimension_numbers = #tpu.dot_dimension_numbers<[1], [0], [0], [1], [0, 0, 1, 1], [], []>} : vector<80x128xbf16>, vector<128x128xbf16>, vector<80x128xf32> -> vector<80x128xf32>
    %12 = arith.addf %6, %11 : vector<80x128xf32>
    %c0_14 = arith.constant 0 : index
    %c0_15 = arith.constant 0 : index
    %c2 = arith.constant 2 : index
    %c0_16 = arith.constant 0 : index
    %13 = vector.load %arg1[%c0_14, %c0_15, %c2, %c0_16] : memref<1x1x110x128xbf16, #tpu.memory_space<vmem>>, vector<1x1x80x128xbf16>
    %14 = vector.shape_cast %13 : vector<1x1x80x128xbf16> to vector<80x128xbf16>
    %c2_17 = arith.constant 2 : index
    %c0_18 = arith.constant 0 : index
    %c0_19 = arith.constant 0 : index
    %15 = vector.load %arg2[%c2_17, %c0_18, %c0_19] : memref<9x128x128xbf16, #tpu.memory_space<vmem>>, vector<1x128x128xbf16>
    %16 = vector.shape_cast %15 : vector<1x128x128xbf16> to vector<128x128xbf16>
    %cst_20 = arith.constant dense<0.000000e+00> : vector<80x128xf32>
    %17 = tpu.matmul %14, %16, %cst_20 {dimension_numbers = #tpu.dot_dimension_numbers<[1], [0], [0], [1], [0, 0, 1, 1], [], []>} : vector<80x128xbf16>, vector<128x128xbf16>, vector<80x128xf32> -> vector<80x128xf32>
    %18 = arith.addf %12, %17 : vector<80x128xf32>
    %c0_21 = arith.constant 0 : index
    %c0_22 = arith.constant 0 : index
    %c10 = arith.constant 10 : index
    %c0_23 = arith.constant 0 : index
    %19 = vector.load %arg1[%c0_21, %c0_22, %c10, %c0_23] : memref<1x1x110x128xbf16, #tpu.memory_space<vmem>>, vector<1x1x80x128xbf16>
    %20 = vector.shape_cast %19 : vector<1x1x80x128xbf16> to vector<80x128xbf16>
    %c3 = arith.constant 3 : index
    %c0_24 = arith.constant 0 : index
    %c0_25 = arith.constant 0 : index
    %21 = vector.load %arg2[%c3, %c0_24, %c0_25] : memref<9x128x128xbf16, #tpu.memory_space<vmem>>, vector<1x128x128xbf16>
    %22 = vector.shape_cast %21 : vector<1x128x128xbf16> to vector<128x128xbf16>
    %cst_26 = arith.constant dense<0.000000e+00> : vector<80x128xf32>
    %23 = tpu.matmul %20, %22, %cst_26 {dimension_numbers = #tpu.dot_dimension_numbers<[1], [0], [0], [1], [0, 0, 1, 1], [], []>} : vector<80x128xbf16>, vector<128x128xbf16>, vector<80x128xf32> -> vector<80x128xf32>
    %24 = arith.addf %18, %23 : vector<80x128xf32>
    %c0_27 = arith.constant 0 : index
    %c0_28 = arith.constant 0 : index
    %c11 = arith.constant 11 : index
    %c0_29 = arith.constant 0 : index
    %25 = vector.load %arg1[%c0_27, %c0_28, %c11, %c0_29] : memref<1x1x110x128xbf16, #tpu.memory_space<vmem>>, vector<1x1x80x128xbf16>
    %26 = vector.shape_cast %25 : vector<1x1x80x128xbf16> to vector<80x128xbf16>
    %c4 = arith.constant 4 : index
    %c0_30 = arith.constant 0 : index
    %c0_31 = arith.constant 0 : index
    %27 = vector.load %arg2[%c4, %c0_30, %c0_31] : memref<9x128x128xbf16, #tpu.memory_space<vmem>>, vector<1x128x128xbf16>
    %28 = vector.shape_cast %27 : vector<1x128x128xbf16> to vector<128x128xbf16>
    %cst_32 = arith.constant dense<0.000000e+00> : vector<80x128xf32>
    %29 = tpu.matmul %26, %28, %cst_32 {dimension_numbers = #tpu.dot_dimension_numbers<[1], [0], [0], [1], [0, 0, 1, 1], [], []>} : vector<80x128xbf16>, vector<128x128xbf16>, vector<80x128xf32> -> vector<80x128xf32>
    %30 = arith.addf %24, %29 : vector<80x128xf32>
    %c0_33 = arith.constant 0 : index
    %c0_34 = arith.constant 0 : index
    %c12 = arith.constant 12 : index
    %c0_35 = arith.constant 0 : index
    %31 = vector.load %arg1[%c0_33, %c0_34, %c12, %c0_35] : memref<1x1x110x128xbf16, #tpu.memory_space<vmem>>, vector<1x1x80x128xbf16>
    %32 = vector.shape_cast %31 : vector<1x1x80x128xbf16> to vector<80x128xbf16>
    %c5 = arith.constant 5 : index
    %c0_36 = arith.constant 0 : index
    %c0_37 = arith.constant 0 : index
    %33 = vector.load %arg2[%c5, %c0_36, %c0_37] : memref<9x128x128xbf16, #tpu.memory_space<vmem>>, vector<1x128x128xbf16>
    %34 = vector.shape_cast %33 : vector<1x128x128xbf16> to vector<128x128xbf16>
    %cst_38 = arith.constant dense<0.000000e+00> : vector<80x128xf32>
    %35 = tpu.matmul %32, %34, %cst_38 {dimension_numbers = #tpu.dot_dimension_numbers<[1], [0], [0], [1], [0, 0, 1, 1], [], []>} : vector<80x128xbf16>, vector<128x128xbf16>, vector<80x128xf32> -> vector<80x128xf32>
    %36 = arith.addf %30, %35 : vector<80x128xf32>
    %c0_39 = arith.constant 0 : index
    %c0_40 = arith.constant 0 : index
    %c20 = arith.constant 20 : index
    %c0_41 = arith.constant 0 : index
    %37 = vector.load %arg1[%c0_39, %c0_40, %c20, %c0_41] : memref<1x1x110x128xbf16, #tpu.memory_space<vmem>>, vector<1x1x80x128xbf16>
    %38 = vector.shape_cast %37 : vector<1x1x80x128xbf16> to vector<80x128xbf16>
    %c6 = arith.constant 6 : index
    %c0_42 = arith.constant 0 : index
    %c0_43 = arith.constant 0 : index
    %39 = vector.load %arg2[%c6, %c0_42, %c0_43] : memref<9x128x128xbf16, #tpu.memory_space<vmem>>, vector<1x128x128xbf16>
    %40 = vector.shape_cast %39 : vector<1x128x128xbf16> to vector<128x128xbf16>
    %cst_44 = arith.constant dense<0.000000e+00> : vector<80x128xf32>
    %41 = tpu.matmul %38, %40, %cst_44 {dimension_numbers = #tpu.dot_dimension_numbers<[1], [0], [0], [1], [0, 0, 1, 1], [], []>} : vector<80x128xbf16>, vector<128x128xbf16>, vector<80x128xf32> -> vector<80x128xf32>
    %42 = arith.addf %36, %41 : vector<80x128xf32>
    %c0_45 = arith.constant 0 : index
    %c0_46 = arith.constant 0 : index
    %c21 = arith.constant 21 : index
    %c0_47 = arith.constant 0 : index
    %43 = vector.load %arg1[%c0_45, %c0_46, %c21, %c0_47] : memref<1x1x110x128xbf16, #tpu.memory_space<vmem>>, vector<1x1x80x128xbf16>
    %44 = vector.shape_cast %43 : vector<1x1x80x128xbf16> to vector<80x128xbf16>
    %c7 = arith.constant 7 : index
    %c0_48 = arith.constant 0 : index
    %c0_49 = arith.constant 0 : index
    %45 = vector.load %arg2[%c7, %c0_48, %c0_49] : memref<9x128x128xbf16, #tpu.memory_space<vmem>>, vector<1x128x128xbf16>
    %46 = vector.shape_cast %45 : vector<1x128x128xbf16> to vector<128x128xbf16>
    %cst_50 = arith.constant dense<0.000000e+00> : vector<80x128xf32>
    %47 = tpu.matmul %44, %46, %cst_50 {dimension_numbers = #tpu.dot_dimension_numbers<[1], [0], [0], [1], [0, 0, 1, 1], [], []>} : vector<80x128xbf16>, vector<128x128xbf16>, vector<80x128xf32> -> vector<80x128xf32>
    %48 = arith.addf %42, %47 : vector<80x128xf32>
    %c0_51 = arith.constant 0 : index
    %c0_52 = arith.constant 0 : index
    %c22 = arith.constant 22 : index
    %c0_53 = arith.constant 0 : index
    %49 = vector.load %arg1[%c0_51, %c0_52, %c22, %c0_53] : memref<1x1x110x128xbf16, #tpu.memory_space<vmem>>, vector<1x1x80x128xbf16>
    %50 = vector.shape_cast %49 : vector<1x1x80x128xbf16> to vector<80x128xbf16>
    %c8 = arith.constant 8 : index
    %c0_54 = arith.constant 0 : index
    %c0_55 = arith.constant 0 : index
    %51 = vector.load %arg2[%c8, %c0_54, %c0_55] : memref<9x128x128xbf16, #tpu.memory_space<vmem>>, vector<1x128x128xbf16>
    %52 = vector.shape_cast %51 : vector<1x128x128xbf16> to vector<128x128xbf16>
    %cst_56 = arith.constant dense<0.000000e+00> : vector<80x128xf32>
    %53 = tpu.matmul %50, %52, %cst_56 {dimension_numbers = #tpu.dot_dimension_numbers<[1], [0], [0], [1], [0, 0, 1, 1], [], []>} : vector<80x128xbf16>, vector<128x128xbf16>, vector<80x128xf32> -> vector<80x128xf32>
    %54 = arith.addf %48, %53 : vector<80x128xf32>
    %c0_57 = arith.constant 0 : index
    %c0_58 = arith.constant 0 : index
    %55 = vector.load %arg3[%c0_57, %c0_58] : memref<1x128xf32, #tpu.memory_space<vmem>>, vector<1x128xf32>
    %56 = vector.broadcast %55 : vector<1x128xf32> to vector<80x128xf32>
    %57 = arith.mulf %54, %56 : vector<80x128xf32>
    %c0_59 = arith.constant 0 : index
    %c0_60 = arith.constant 0 : index
    %58 = vector.load %arg4[%c0_59, %c0_60] : memref<1x128xf32, #tpu.memory_space<vmem>>, vector<1x128xf32>
    %59 = vector.broadcast %58 : vector<1x128xf32> to vector<80x128xf32>
    %60 = arith.addf %57, %59 : vector<80x128xf32>
    %c0_61 = arith.constant 0 : index
    %c0_62 = arith.constant 0 : index
    %c0_63 = arith.constant 0 : index
    %61 = vector.load %arg5[%c0_61, %c0_62, %c0_63] : memref<1x80x128xbf16, #tpu.memory_space<vmem>>, vector<1x80x128xbf16>
    %62 = vector.shape_cast %61 : vector<1x80x128xbf16> to vector<80x128xbf16>
    %c0_64 = arith.constant 0 : index
    %c0_65 = arith.constant 0 : index
    %63 = vector.load %arg6[%c0_64, %c0_65] : memref<128x128xbf16, #tpu.memory_space<vmem>>, vector<128x128xbf16>
    %cst_66 = arith.constant dense<0.000000e+00> : vector<80x128xf32>
    %64 = tpu.matmul %62, %63, %cst_66 {dimension_numbers = #tpu.dot_dimension_numbers<[1], [0], [0], [1], [0, 0, 1, 1], [], []>} : vector<80x128xbf16>, vector<128x128xbf16>, vector<80x128xf32> -> vector<80x128xf32>
    %c0_67 = arith.constant 0 : index
    %c0_68 = arith.constant 0 : index
    %65 = vector.load %arg7[%c0_67, %c0_68] : memref<1x128xf32, #tpu.memory_space<vmem>>, vector<1x128xf32>
    %66 = vector.broadcast %65 : vector<1x128xf32> to vector<80x128xf32>
    %67 = arith.mulf %64, %66 : vector<80x128xf32>
    %c0_69 = arith.constant 0 : index
    %c0_70 = arith.constant 0 : index
    %68 = vector.load %arg8[%c0_69, %c0_70] : memref<1x128xf32, #tpu.memory_space<vmem>>, vector<1x128xf32>
    %69 = vector.broadcast %68 : vector<1x128xf32> to vector<80x128xf32>
    %70 = arith.addf %67, %69 : vector<80x128xf32>
    %71 = arith.addf %60, %70 : vector<80x128xf32>
    %cst_71 = arith.constant 0.000000e+00 : f32
    %72 = vector.broadcast %cst_71 : f32 to vector<80x128xf32>
    %73 = arith.maximumf %71, %72 : vector<80x128xf32>
    %c0_72 = arith.constant 0 : index
    %c0_73 = arith.constant 0 : index
    %c0_74 = arith.constant 0 : index
    %74 = vector.load %arg9[%c0_72, %c0_73, %c0_74] : memref<1x80x128xf32, #tpu.memory_space<vmem>>, vector<1x80x128xf32>
    %75 = vector.shape_cast %74 : vector<1x80x128xf32> to vector<80x128xf32>
    %76 = vector.shape_cast %73 : vector<80x128xf32> to vector<1x80x128xf32>
    tpu.vector_store %arg9[%c0_72, %c0_73, %c0_74], %76 {strides = array<i32>} : memref<1x80x128xf32, #tpu.memory_space<vmem>>, vector<1x80x128xf32>,
    return
  }
  func.func @transform_0(%arg0: i32) -> (i32, i32, i32, i32) {
    %c0_i32 = arith.constant 0 : i32
    %c0_i32_0 = arith.constant 0 : i32
    %c0_i32_1 = arith.constant 0 : i32
    %c0_i32_2 = arith.constant 0 : i32
    return %arg0, %c0_i32, %c0_i32_0, %c0_i32_1 : i32, i32, i32, i32
  }
  func.func @transform_1(%arg0: i32) -> (i32, i32, i32) {
    %c0_i32 = arith.constant 0 : i32
    %c0_i32_0 = arith.constant 0 : i32
    %c0_i32_1 = arith.constant 0 : i32
    %c0_i32_2 = arith.constant 0 : i32
    return %c0_i32, %c0_i32_0, %c0_i32_1 : i32, i32, i32
  }
  func.func @transform_2(%arg0: i32) -> (i32, i32) {
    %c0_i32 = arith.constant 0 : i32
    %c0_i32_0 = arith.constant 0 : i32
    %c0_i32_1 = arith.constant 0 : i32
    return %c0_i32, %c0_i32_0 : i32, i32
  }
  func.func @transform_3(%arg0: i32) -> (i32, i32) {
    %c0_i32 = arith.constant 0 : i32
    %c0_i32_0 = arith.constant 0 : i32
    %c0_i32_1 = arith.constant 0 : i32
    return %c0_i32, %c0_i32_0 : i32, i32
  }
  func.func @transform_4(%arg0: i32) -> (i32, i32, i32) {
    %c0_i32 = arith.constant 0 : i32
    %c0_i32_0 = arith.constant 0 : i32
    %c0_i32_1 = arith.constant 0 : i32
    return %arg0, %c0_i32, %c0_i32_0 : i32, i32, i32
  }
  func.func @transform_5(%arg0: i32) -> (i32, i32) {
    %c0_i32 = arith.constant 0 : i32
    %c0_i32_0 = arith.constant 0 : i32
    %c0_i32_1 = arith.constant 0 : i32
    return %c0_i32, %c0_i32_0 : i32, i32
  }
  func.func @transform_6(%arg0: i32) -> (i32, i32) {
    %c0_i32 = arith.constant 0 : i32
    %c0_i32_0 = arith.constant 0 : i32
    %c0_i32_1 = arith.constant 0 : i32
    return %c0_i32, %c0_i32_0 : i32, i32
  }
  func.func @transform_7(%arg0: i32) -> (i32, i32) {
    %c0_i32 = arith.constant 0 : i32
    %c0_i32_0 = arith.constant 0 : i32
    %c0_i32_1 = arith.constant 0 : i32
    return %c0_i32, %c0_i32_0 : i32, i32
  }
  func.func @transform_8(%arg0: i32) -> (i32, i32, i32) {
    %c0_i32 = arith.constant 0 : i32
    %c0_i32_0 = arith.constant 0 : i32
    %c0_i32_1 = arith.constant 0 : i32
    return %arg0, %c0_i32, %c0_i32_0 : i32, i32, i32
  }
}

</mosaic_0001>

<llo_original>
// kernel: basic_block_forward.2
$region0: #{basic_block_forward.2}
  #allocation0 [shape = 'u32[]', space=smem, size = 0x4, offset = 0x4, fixed_abs, tag = 'smem constant byte address 0x4 - core index']
  #allocation1 [shape = 'u32[144,128]{1,0:T(1,128)}', space=vmem, size = 0x12000, scoped, tag = 'internal scratch']
  %s0 = inlined_call_operand.vmem [shape: bf16[2,4,100,128], index: 0, kind: input, shape index: {}]
  %s1 = inlined_call_operand.vmem [shape: bf16[9,128,128], index: 1, kind: input, shape index: {}]
  %s2 = inlined_call_operand.vmem [shape: f32[1,128], index: 2, kind: input, shape index: {}]
  %s3 = inlined_call_operand.vmem [shape: f32[1,128], index: 3, kind: input, shape index: {}]
  %s4 = inlined_call_operand.vmem [shape: bf16[2,80,128], index: 4, kind: output, shape index: {}]
  %s5 = sld [smem:[#allocation0]]
  $region49: #{basic_block_forward.2} parent=0
    _
  %s7 = ssub.s32 1, %s5
  %s8 = scalar_select 0, %s7, %s5
  loop: start=0, step=1, limit=4
  $region2: #{basic_block_forward.2} parent=0 // loop_pre_header
    _
  $region3: #{basic_block_forward.2} parent=0 // loop_header
    %s10 = sphi 0, %s14
    %p11 = scmp.ge.s32.totalorder %s10, 4
    %s20 = sphi 0, %s22
    %s23 = sphi 0, %s20
    %s24 = sphi 0, %s23
    %s40 = sphi 0, %s24
    %s44 = sphi 0, %s44
    %s46 = sphi 0, %s44
    %s47 = sphi 0, %s46
    %s61 = sphi 0, %s47
    %s65 = sphi 0, %s65
    %s67 = sphi 0, %s65
    %s68 = sphi 0, %s67
    %s82 = sphi 0, %s68
    %s86 = sphi 0, %s86
    %s88 = sphi 0, %s86
    %s89 = sphi 0, %s88
    %s103 = sphi 0, %s89
    %s109 = sphi 0, %s111
    %s112 = sphi 0, %s109
    %s113 = sphi 0, %s112
    %s129 = sphi 0, %s113
  $region4: #{basic_block_forward.2} parent=0 // loop_header_branch
    %13 = sbr.rel (%p11) target = $region8
  $region5: #{basic_block_forward.2} parent=0 // loop_body
    %s15 = ssub.s32 %s10, 1
    %s16 = ssub.s32 %s10, 2
    %s17 = sadd.s32 %s10, 1
    %s18 = ssub.s32 %s10, %s17
    %p19 = scmp.eq.s32.totalorder %s18, 0
    %s21 = sadd.s32 %s20, 1
    %s22 = scalar_select %p19, %s20, %s21
    %p25 = pneg %p19
    %p26 = scmp.eq.s32.totalorder %s10, 1
    %p27 = por %p25, %p26
    %p28 = scmp.ne.s32.totalorder %s20, %s23
    %p29 = scmp.eq.s32.totalorder %s10, 0
    %p30 = por %p28, %p29
    %p31 = scmp.ne.s32.totalorder %s20, %s23
    %p32 = scmp.eq.s32.totalorder %s15, 1
    %p33 = por %p31, %p32
    %p34 = scmp.ne.s32.totalorder %s23, %s24
    %p35 = scmp.eq.s32.totalorder %s15, 0
    %p36 = por %p34, %p35
    %p37 = scmp.ne.s32.totalorder %s23, %s24
    %p38 = scmp.eq.s32.totalorder %s16, 1
    %p39 = por %p37, %p38
    %p41 = scmp.ne.s32.totalorder %s24, %s40
    %p42 = scmp.eq.s32.totalorder %s16, 0
    %p43 = por %p41, %p42
    %s45 = sadd.s32 %s44, 1
    %p48 = scmp.eq.s32.totalorder %s10, 1
    %p49 = scmp.ne.s32.totalorder %s44, %s46
    %p50 = scmp.eq.s32.totalorder %s10, 0
    %p51 = por %p49, %p50
    %p52 = scmp.ne.s32.totalorder %s44, %s46
    %p53 = scmp.eq.s32.totalorder %s15, 1
    %p54 = por %p52, %p53
    %p55 = scmp.ne.s32.totalorder %s46, %s47
    %p56 = scmp.eq.s32.totalorder %s15, 0
    %p57 = por %p55, %p56
    %p58 = scmp.ne.s32.totalorder %s46, %s47
    %p59 = scmp.eq.s32.totalorder %s16, 1
    %p60 = por %p58, %p59
    %p62 = scmp.ne.s32.totalorder %s47, %s61
    %p63 = scmp.eq.s32.totalorder %s16, 0
    %p64 = por %p62, %p63
    %s66 = sadd.s32 %s65, 1
    %p69 = scmp.eq.s32.totalorder %s10, 1
    %p70 = scmp.ne.s32.totalorder %s65, %s67
    %p71 = scmp.eq.s32.totalorder %s10, 0
    %p72 = por %p70, %p71
    %p73 = scmp.ne.s32.totalorder %s65, %s67
    %p74 = scmp.eq.s32.totalorder %s15, 1
    %p75 = por %p73, %p74
    %p76 = scmp.ne.s32.totalorder %s67, %s68
    %p77 = scmp.eq.s32.totalorder %s15, 0
    %p78 = por %p76, %p77
    %p79 = scmp.ne.s32.totalorder %s67, %s68
    %p80 = scmp.eq.s32.totalorder %s16, 1
    %p81 = por %p79, %p80
    %p83 = scmp.ne.s32.totalorder %s68, %s82
    %p84 = scmp.eq.s32.totalorder %s16, 0
    %p85 = por %p83, %p84
    %s87 = sadd.s32 %s86, 1
    %p90 = scmp.eq.s32.totalorder %s10, 1
    %p91 = scmp.ne.s32.totalorder %s86, %s88
    %p92 = scmp.eq.s32.totalorder %s10, 0
    %p93 = por %p91, %p92
    %p94 = scmp.ne.s32.totalorder %s86, %s88
    %p95 = scmp.eq.s32.totalorder %s15, 1
    %p96 = por %p94, %p95
    %p97 = scmp.ne.s32.totalorder %s88, %s89
    %p98 = scmp.eq.s32.totalorder %s15, 0
    %p99 = por %p97, %p98
    %p100 = scmp.ne.s32.totalorder %s88, %s89
    %p101 = scmp.eq.s32.totalorder %s16, 1
    %p102 = por %p100, %p101
    %p104 = scmp.ne.s32.totalorder %s89, %s103
    %p105 = scmp.eq.s32.totalorder %s16, 0
    %p106 = por %p104, %p105
    %s107 = ssub.s32 %s10, %s17
    %p108 = scmp.eq.s32.totalorder %s107, 0
    %s110 = sadd.s32 %s109, 1
    %s111 = scalar_select %p108, %s109, %s110
    %p114 = pneg %p108
    %p115 = scmp.eq.s32.totalorder %s10, 1
    %p116 = por %p114, %p115
    %p117 = scmp.ne.s32.totalorder %s109, %s112
    %p118 = scmp.eq.s32.totalorder %s10, 0
    %p119 = por %p117, %p118
    %p120 = scmp.ne.s32.totalorder %s109, %s112
    %p121 = scmp.eq.s32.totalorder %s15, 1
    %p122 = por %p120, %p121
    %p123 = scmp.ne.s32.totalorder %s112, %s113
    %p124 = scmp.eq.s32.totalorder %s15, 0
    %p125 = por %p123, %p124
    %p126 = scmp.ne.s32.totalorder %s112, %s113
    %p127 = scmp.eq.s32.totalorder %s16, 1
    %p128 = por %p126, %p127
    %p130 = scmp.ne.s32.totalorder %s113, %s129
    %p131 = scmp.eq.s32.totalorder %s16, 0
    %p132 = por %p130, %p131
    %p133 = scmp.le.s32.totalorder 1, %s10
    %p134 = scmp.lt.s32.totalorder %s10, 3
    %p135 = pnand %p133, %p134
    %p136 = pneg %p135
    // Predicated region
    $region9: #{basic_block_forward.2} parent=5 // pred_check
      _
    $region10: #{basic_block_forward.2} parent=5 // pred_check_branch
      %138 = sbr.rel (%p135) target = $region12
    $region11: #{basic_block_forward.2} parent=5 // pred_region
      %s139 = ssub.s32 %s10, 1
      // Predicated region
      $region13: #{basic_block_forward.2} parent=11 // pred_check
        %p140 = pneg %p57
      $region14: #{basic_block_forward.2} parent=11 // pred_check_branch
        %142 = sbr.rel (%p140) target = $region16
      $region15: #{basic_block_forward.2} parent=11 // pred_region
        _
      $region16: #{basic_block_forward.2} parent=11 // pred_fallthru
        _
      // Predicated region
      $region17: #{basic_block_forward.2} parent=11 // pred_check
        %p143 = pneg %p78
      $region18: #{basic_block_forward.2} parent=11 // pred_check_branch
        %145 = sbr.rel (%p143) target = $region20
      $region19: #{basic_block_forward.2} parent=11 // pred_region
        _
      $region20: #{basic_block_forward.2} parent=11 // pred_fallthru
        _
      // Predicated region
      $region21: #{basic_block_forward.2} parent=11 // pred_check
        %p146 = pneg %p99
      $region22: #{basic_block_forward.2} parent=11 // pred_check_branch
        %148 = sbr.rel (%p146) target = $region24
      $region23: #{basic_block_forward.2} parent=11 // pred_region
        _
      $region24: #{basic_block_forward.2} parent=11 // pred_fallthru
        _
    $region12: #{basic_block_forward.2} parent=5 // pred_fallthru
      _
    %p149 = scmp.lt.s32.totalorder %s10, 2
    // Predicated region
    $region25: #{basic_block_forward.2} parent=5 // pred_check
      %p150 = pneg %p149
    $region26: #{basic_block_forward.2} parent=5 // pred_check_branch
      %152 = sbr.rel (%p150) target = $region28
    $region27: #{basic_block_forward.2} parent=5 // pred_region
      // Predicated region
      $region29: #{basic_block_forward.2} parent=27 // pred_check
        %p153 = pneg %p30
      $region30: #{basic_block_forward.2} parent=27 // pred_check_branch
        %155 = sbr.rel (%p153) target = $region32
      $region31: #{basic_block_forward.2} parent=27 // pred_region
        %p156 = scmp.lt.s32.totalorder %s10, 1
        %s157 = scalar_select %p156, %s10, 1
        %s158 = smul.addr %s157, 52
        %s159 = smul.addr %s158, 4
        %s160 = scalar_lea.vmem %s0, %s159
      $region32: #{basic_block_forward.2} parent=27 // pred_fallthru
        _
    $region28: #{basic_block_forward.2} parent=5 // pred_fallthru
      _
    %p161 = scmp.le.s32.totalorder 1, %s10
    %p162 = scmp.lt.s32.totalorder %s10, 3
    %p163 = pnand %p161, %p162
    %p164 = pneg %p163
    // Predicated region
    $region33: #{basic_block_forward.2} parent=5 // pred_check
      _
    $region34: #{basic_block_forward.2} parent=5 // pred_check_branch
      %166 = sbr.rel (%p163) target = $region36
    $region35: #{basic_block_forward.2} parent=5 // pred_region
      %s167 = ssub.s32 %s10, 1
      %p168 = scmp.lt.s32.totalorder %s15, 1
      %s169 = scalar_select %p168, %s15, 1
      %s170 = smul.addr %s169, 52
      %s171 = smul.addr %s170, 4
      %s172 = scalar_lea.vmem %s0, %s171
      %p173 = pneg %p36
      %p174 = pneg %p33
      %p175 = pneg %p57
      %p176 = pneg %p54
      %p177 = pneg %p78
      %p178 = pneg %p75
      %p179 = pneg %p99
      %p180 = pneg %p96
      %p181 = pneg %p125
      %p182 = pneg %p122
      %p183 = scmp.lt.s32.totalorder %s15, 1
      %s184 = scalar_select %p183, %s15, 1
      %s185 = smul.addr %s184, 10
      %s186 = smul.addr %s185, 4
      %s187 = scalar_lea.vmem %s4, %s186
      %p188 = scmp.lt.s32.totalorder %s15, 1
      %s189 = scalar_select %p188, %s15, 1
      %s190 = smul.addr %s189, 52
      %s191 = smul.addr %s190, 4
      %s192 = scalar_lea.vmem %s0, %s191
      %p193 = scmp.lt.s32.totalorder %s15, 1
      %s194 = scalar_select %p193, %s15, 1
      %s195 = smul.addr %s194, 10
      %s196 = smul.addr %s195, 4
      %s197 = scalar_lea.vmem %s4, %s196
      %v199 = vld [vmem:[%s192] sm:$0xf]
      %v200 = vld [vmem:[%s192 + $0x4] sm:$0xf]
      %v201 = vld [vmem:[%s192 + $0x8] sm:$0xf]
      %v202 = vld [vmem:[%s192 + $0xc] sm:$0xf]
      %v203 = vld [vmem:[%s192 + $0x10] sm:$0xf]
      %v204 = vld [vmem:[%s192 + $0x14] sm:$0xf]
      %v205 = vld [vmem:[%s192 + $0x18] sm:$0xf]
      %v206 = vld [vmem:[%s192 + $0x1c] sm:$0xf]
      %v207 = vld [vmem:[%s192 + $0x20] sm:$0xf]
      %v208 = vld [vmem:[%s192 + $0x24] sm:$0xf]
      %v209 = vld [vmem:[%s1] sm:$0xf]
      %v210 = vld [vmem:[%s1 + $0x4] sm:$0xf]
      %v211 = vld [vmem:[%s1 + $0x8] sm:$0xf]
      %v212 = vld [vmem:[%s1 + $0xc] sm:$0xf]
      %v213 = vld [vmem:[%s1 + $0x10] sm:$0xf]
      %v214 = vld [vmem:[%s1 + $0x14] sm:$0xf]
      %v215 = vld [vmem:[%s1 + $0x18] sm:$0xf]
      %v216 = vld [vmem:[%s1 + $0x1c] sm:$0xf]
      %v217 = vld [vmem:[%s1 + $0x20] sm:$0xf]
      %v218 = vld [vmem:[%s1 + $0x24] sm:$0xf]
      %v219 = vld [vmem:[%s1 + $0x28] sm:$0xf]
      %v220 = vld [vmem:[%s1 + $0x2c] sm:$0xf]
      %v221 = vld [vmem:[%s1 + $0x30] sm:$0xf]
      %v222 = vld [vmem:[%s1 + $0x34] sm:$0xf]
      %v223 = vld [vmem:[%s1 + $0x38] sm:$0xf]
      %v224 = vld [vmem:[%s1 + $0x3c] sm:$0xf]
      %s225 = scalar_lea.vmem %s192, 52
      %v226 = vld [vmem:[%s225] sm:$0xf]
      %v227 = vld [vmem:[%s225 + $0x4] sm:$0xf]
      %v228 = vld [vmem:[%s225 + $0x8] sm:$0xf]
      %v229 = vld [vmem:[%s225 + $0xc] sm:$0xf]
      %v230 = vld [vmem:[%s225 + $0x10] sm:$0xf]
      %v231 = vld [vmem:[%s225 + $0x14] sm:$0xf]
      %v232 = vld [vmem:[%s225 + $0x18] sm:$0xf]
      %v233 = vld [vmem:[%s225 + $0x1c] sm:$0xf]
      %v234 = vld [vmem:[%s225 + $0x20] sm:$0xf]
      %v235 = vld [vmem:[%s225 + $0x24] sm:$0xf]
      %s236 = scalar_lea.vmem %s1, 64
      %v237 = vld [vmem:[%s236] sm:$0xf]
      %v238 = vld [vmem:[%s236 + $0x4] sm:$0xf]
      %v239 = vld [vmem:[%s236 + $0x8] sm:$0xf]
      %v240 = vld [vmem:[%s236 + $0xc] sm:$0xf]
      %v241 = vld [vmem:[%s236 + $0x10] sm:$0xf]
      %v242 = vld [vmem:[%s236 + $0x14] sm:$0xf]
      %v243 = vld [vmem:[%s236 + $0x18] sm:$0xf]
      %v244 = vld [vmem:[%s236 + $0x1c] sm:$0xf]
      %v245 = vld [vmem:[%s236 + $0x20] sm:$0xf]
      %v246 = vld [vmem:[%s236 + $0x24] sm:$0xf]
      %v247 = vld [vmem:[%s236 + $0x28] sm:$0xf]
      %v248 = vld [vmem:[%s236 + $0x2c] sm:$0xf]
      %v249 = vld [vmem:[%s236 + $0x30] sm:$0xf]
      %v250 = vld [vmem:[%s236 + $0x34] sm:$0xf]
      %v251 = vld [vmem:[%s236 + $0x38] sm:$0xf]
      %v252 = vld [vmem:[%s236 + $0x3c] sm:$0xf]
      %v263 = vunpack.c.l.b16 %v226
      %v264 = vunpack.c.l.b16 %v227
      %v265 = vunpack.c.l.b16 %v228
      %v266 = vunpack.c.l.b16 %v229
      %v267 = vunpack.c.l.b16 %v230
      %v268 = vunpack.c.l.b16 %v231
      %v269 = vunpack.c.l.b16 %v232
      %v270 = vunpack.c.l.b16 %v233
      %v271 = vunpack.c.l.b16 %v234
      %v272 = vunpack.c.l.b16 %v235
      %v273 = vpack.c.b16 %v264, %v263
      %v274 = vpack.c.b16 %v266, %v265
      %v275 = vpack.c.b16 %v268, %v267
      %v276 = vpack.c.b16 %v270, %v269
      %v277 = vpack.c.b16 %v272, %v271
      %v299 = vunpack.c.l.b16 %v237
      %v300 = vunpack.c.l.b16 %v238
      %v301 = vunpack.c.l.b16 %v239
      %v302 = vunpack.c.l.b16 %v240
      %v303 = vunpack.c.l.b16 %v241
      %v304 = vunpack.c.l.b16 %v242
      %v305 = vunpack.c.l.b16 %v243
      %v306 = vunpack.c.l.b16 %v244
      %v307 = vunpack.c.l.b16 %v245
      %v308 = vunpack.c.l.b16 %v246
      %v309 = vunpack.c.l.b16 %v247
      %v310 = vunpack.c.l.b16 %v248
      %v311 = vunpack.c.l.b16 %v249
      %v312 = vunpack.c.l.b16 %v250
      %v313 = vunpack.c.l.b16 %v251
      %v314 = vunpack.c.l.b16 %v252
      %v315 = vpack.c.b16 %v300, %v299
      %v316 = vpack.c.b16 %v302, %v301
      %v317 = vpack.c.b16 %v304, %v303
      %v318 = vpack.c.b16 %v306, %v305
      %v319 = vpack.c.b16 %v308, %v307
      %v320 = vpack.c.b16 %v310, %v309
      %v321 = vpack.c.b16 %v312, %v311
      %v322 = vpack.c.b16 %v314, %v313
      %331 = vmatprep.subr.bf16.mxu0 0
      %332 = vmatpush1.bf16.msra.mxu0 %v315
      %333 = vmatprep.subr.bf16.mxu0 0
      %334 = vmatpush1.bf16.msra.mxu0 %v316
      %335 = vmatprep.subr.bf16.mxu0 0
      %336 = vmatpush1.bf16.msra.mxu0 %v317
      %337 = vmatprep.subr.bf16.mxu0 0
      %338 = vmatpush1.bf16.msra.mxu0 %v318
      %339 = vmatprep.subr.bf16.mxu0 0
      %340 = vmatpush1.bf16.msra.mxu0 %v319
      %341 = vmatprep.subr.bf16.mxu0 0
      %342 = vmatpush1.bf16.msra.mxu0 %v320
      %343 = vmatprep.subr.bf16.mxu0 0
      %344 = vmatpush1.bf16.msra.mxu0 %v321
      %345 = vmatprep.subr.bf16.mxu0 0
      %346 = vmatpush1.bf16.msra.mxu0 %v322
      %347 = vmatprep.subr.bf16.mxu0 0
      %348 = vmatpush1.bf16.msra.mxu0 0
      %349 = vmatprep.subr.bf16.mxu0 0
      %350 = vmatpush1.bf16.msra.mxu0 0
      %351 = vmatprep.subr.bf16.mxu0 0
      %352 = vmatpush1.bf16.msra.mxu0 0
      %353 = vmatprep.subr.bf16.mxu0 0
      %354 = vmatpush1.bf16.msra.mxu0 0
      %355 = vmatprep.subr.bf16.mxu0 0
      %356 = vmatpush1.bf16.msra.mxu0 0
      %357 = vmatprep.subr.bf16.mxu0 0
      %358 = vmatpush1.bf16.msra.mxu0 0
      %359 = vmatprep.subr.bf16.mxu0 0
      %360 = vmatpush1.bf16.msra.mxu0 0
      %361 = vmatprep.subr.bf16.mxu0 0
      %362 = vmatpush1.bf16.msra.mxu0 0
      %363 = vmatprep.mubr.bf16.mxu0 0
      %364 = vmatmul.mubr.bf16.gmra.mrb[0].mxu0 %v273
      %v365 = vpop.f32.mrb[0].mxu0
      %v366 = vadd.f32 0.0, %v365
      %v367 = vpop.f32.mrb[0].mxu0
      %v368 = vpop.f32.mrb[0].mxu0
      %v369 = vadd.f32 0.0, %v368
      %v370 = vpop.f32.mrb[0].mxu0
      %371 = vmatprep.mubr.bf16.mxu0 0
      %372 = vmatmul.mubr.bf16.gmra.mrb[0].mxu0 %v274
      %v373 = vpop.f32.mrb[0].mxu0
      %v374 = vadd.f32 0.0, %v373
      %v375 = vpop.f32.mrb[0].mxu0
      %v376 = vpop.f32.mrb[0].mxu0
      %v377 = vadd.f32 0.0, %v376
      %v378 = vpop.f32.mrb[0].mxu0
      %379 = vmatprep.mubr.bf16.mxu0 0
      %380 = vmatmul.mubr.bf16.gmra.mrb[0].mxu0 %v275
      %v381 = vpop.f32.mrb[0].mxu0
      %v382 = vadd.f32 0.0, %v381
      %v383 = vpop.f32.mrb[0].mxu0
      %v384 = vpop.f32.mrb[0].mxu0
      %v385 = vadd.f32 0.0, %v384
      %v386 = vpop.f32.mrb[0].mxu0
      %387 = vmatprep.mubr.bf16.mxu0 0
      %388 = vmatmul.mubr.bf16.gmra.mrb[0].mxu0 %v276
      %v389 = vpop.f32.mrb[0].mxu0
      %v390 = vadd.f32 0.0, %v389
      %v391 = vpop.f32.mrb[0].mxu0
      %v392 = vpop.f32.mrb[0].mxu0
      %v393 = vadd.f32 0.0, %v392
      %v394 = vpop.f32.mrb[0].mxu0
      %395 = vmatprep.mubr.bf16.mxu0 0
      %396 = vmatmul.mubr.bf16.gmra.mrb[0].mxu0 %v277
      %v397 = vpop.f32.mrb[0].mxu0
      %v398 = vadd.f32 0.0, %v397
      %v399 = vpop.f32.mrb[0].mxu0
      %v400 = vpop.f32.mrb[0].mxu0
      %v401 = vadd.f32 0.0, %v400
      %v402 = vpop.f32.mrb[0].mxu0
      %403 = vdwg.mxu0
      %v414 = vunpack.c.l.b16 %v199
      %v415 = vunpack.c.l.b16 %v200
      %v416 = vunpack.c.l.b16 %v201
      %v417 = vunpack.c.l.b16 %v202
      %v418 = vunpack.c.l.b16 %v203
      %v419 = vunpack.c.l.b16 %v204
      %v420 = vunpack.c.l.b16 %v205
      %v421 = vunpack.c.l.b16 %v206
      %v422 = vunpack.c.l.b16 %v207
      %v423 = vunpack.c.l.b16 %v208
      %v424 = vpack.c.b16 %v415, %v414
      %v425 = vpack.c.b16 %v417, %v416
      %v426 = vpack.c.b16 %v419, %v418
      %v427 = vpack.c.b16 %v421, %v420
      %v428 = vpack.c.b16 %v423, %v422
      %v450 = vunpack.c.l.b16 %v209
      %v451 = vunpack.c.l.b16 %v210
      %v452 = vunpack.c.l.b16 %v211
      %v453 = vunpack.c.l.b16 %v212
      %v454 = vunpack.c.l.b16 %v213
      %v455 = vunpack.c.l.b16 %v214
      %v456 = vunpack.c.l.b16 %v215
      %v457 = vunpack.c.l.b16 %v216
      %v458 = vunpack.c.l.b16 %v217
      %v459 = vunpack.c.l.b16 %v218
      %v460 = vunpack.c.l.b16 %v219
      %v461 = vunpack.c.l.b16 %v220
      %v462 = vunpack.c.l.b16 %v221
      %v463 = vunpack.c.l.b16 %v222
      %v464 = vunpack.c.l.b16 %v223
      %v465 = vunpack.c.l.b16 %v224
      %v466 = vpack.c.b16 %v451, %v450
      %v467 = vpack.c.b16 %v453, %v452
      %v468 = vpack.c.b16 %v455, %v454
      %v469 = vpack.c.b16 %v457, %v456
      %v470 = vpack.c.b16 %v459, %v458
      %v471 = vpack.c.b16 %v461, %v460
      %v472 = vpack.c.b16 %v463, %v462
      %v473 = vpack.c.b16 %v465, %v464
      %482 = vmatprep.subr.bf16.mxu0 0
      %483 = vmatpush1.bf16.msra.mxu0 %v466
      %484 = vmatprep.subr.bf16.mxu0 0
      %485 = vmatpush1.bf16.msra.mxu0 %v467
      %486 = vmatprep.subr.bf16.mxu0 0
      %487 = vmatpush1.bf16.msra.mxu0 %v468
      %488 = vmatprep.subr.bf16.mxu0 0
      %489 = vmatpush1.bf16.msra.mxu0 %v469
      %490 = vmatprep.subr.bf16.mxu0 0
      %491 = vmatpush1.bf16.msra.mxu0 %v470
      %492 = vmatprep.subr.bf16.mxu0 0
      %493 = vmatpush1.bf16.msra.mxu0 %v471
      %494 = vmatprep.subr.bf16.mxu0 0
      %495 = vmatpush1.bf16.msra.mxu0 %v472
      %496 = vmatprep.subr.bf16.mxu0 0
      %497 = vmatpush1.bf16.msra.mxu0 %v473
      %498 = vmatprep.subr.bf16.mxu0 0
      %499 = vmatpush1.bf16.msra.mxu0 0
      %500 = vmatprep.subr.bf16.mxu0 0
      %501 = vmatpush1.bf16.msra.mxu0 0
      %502 = vmatprep.subr.bf16.mxu0 0
      %503 = vmatpush1.bf16.msra.mxu0 0
      %504 = vmatprep.subr.bf16.mxu0 0
      %505 = vmatpush1.bf16.msra.mxu0 0
      %506 = vmatprep.subr.bf16.mxu0 0
      %507 = vmatpush1.bf16.msra.mxu0 0
      %508 = vmatprep.subr.bf16.mxu0 0
      %509 = vmatpush1.bf16.msra.mxu0 0
      %510 = vmatprep.subr.bf16.mxu0 0
      %511 = vmatpush1.bf16.msra.mxu0 0
      %512 = vmatprep.subr.bf16.mxu0 0
      %513 = vmatpush1.bf16.msra.mxu0 0
      %514 = vmatprep.mubr.bf16.mxu0 0
      %515 = vmatmul.mubr.bf16.gmra.mrb[0].mxu0 %v424
      %v516 = vpop.f32.mrb[0].mxu0
      %v517 = vadd.f32 %v366, %v516
      %v518 = vpop.f32.mrb[0].mxu0
      %v519 = vpop.f32.mrb[0].mxu0
      %v520 = vadd.f32 %v369, %v519
      %v521 = vpop.f32.mrb[0].mxu0
      %522 = vmatprep.mubr.bf16.mxu0 0
      %523 = vmatmul.mubr.bf16.gmra.mrb[0].mxu0 %v425
      %v524 = vpop.f32.mrb[0].mxu0
      %v525 = vadd.f32 %v374, %v524
      %v526 = vpop.f32.mrb[0].mxu0
      %v527 = vpop.f32.mrb[0].mxu0
      %v528 = vadd.f32 %v377, %v527
      %v529 = vpop.f32.mrb[0].mxu0
      %530 = vmatprep.mubr.bf16.mxu0 0
      %531 = vmatmul.mubr.bf16.gmra.mrb[0].mxu0 %v426
      %v532 = vpop.f32.mrb[0].mxu0
      %v533 = vadd.f32 %v382, %v532
      %v534 = vpop.f32.mrb[0].mxu0
      %v535 = vpop.f32.mrb[0].mxu0
      %v536 = vadd.f32 %v385, %v535
      %v537 = vpop.f32.mrb[0].mxu0
      %538 = vmatprep.mubr.bf16.mxu0 0
      %539 = vmatmul.mubr.bf16.gmra.mrb[0].mxu0 %v427
      %v540 = vpop.f32.mrb[0].mxu0
      %v541 = vadd.f32 %v390, %v540
      %v542 = vpop.f32.mrb[0].mxu0
      %v543 = vpop.f32.mrb[0].mxu0
      %v544 = vadd.f32 %v393, %v543
      %v545 = vpop.f32.mrb[0].mxu0
      %546 = vmatprep.mubr.bf16.mxu0 0
      %547 = vmatmul.mubr.bf16.gmra.mrb[0].mxu0 %v428
      %v548 = vpop.f32.mrb[0].mxu0
      %v549 = vadd.f32 %v398, %v548
      %v550 = vpop.f32.mrb[0].mxu0
      %v551 = vpop.f32.mrb[0].mxu0
      %v552 = vadd.f32 %v401, %v551
      %v553 = vpop.f32.mrb[0].mxu0
      %554 = vdwg.mxu0
      %v555 = vld [vmem:[%s192] sm:$0xf]
      %v556 = vld [vmem:[%s192 + $0x4] sm:$0xf]
      %v557 = vld [vmem:[%s192 + $0x8] sm:$0xf]
      %v558 = vld [vmem:[%s192 + $0xc] sm:$0xf]
      %v559 = vld [vmem:[%s192 + $0x10] sm:$0xf]
      %v560 = vld [vmem:[%s192 + $0x14] sm:$0xf]
      %v561 = vld [vmem:[%s192 + $0x18] sm:$0xf]
      %v562 = vld [vmem:[%s192 + $0x1c] sm:$0xf]
      %v563 = vld [vmem:[%s192 + $0x20] sm:$0xf]
      %v564 = vld [vmem:[%s192 + $0x24] sm:$0xf]
      %v565 = vld [vmem:[%s192 + $0x28] sm:$0x1]
      %s566 = scalar_lea.vmem %s1, 128
      %v567 = vld [vmem:[%s566] sm:$0xf]
      %v568 = vld [vmem:[%s566 + $0x4] sm:$0xf]
      %v569 = vld [vmem:[%s566 + $0x8] sm:$0xf]
      %v570 = vld [vmem:[%s566 + $0xc] sm:$0xf]
      %v571 = vld [vmem:[%s566 + $0x10] sm:$0xf]
      %v572 = vld [vmem:[%s566 + $0x14] sm:$0xf]
      %v573 = vld [vmem:[%s566 + $0x18] sm:$0xf]
      %v574 = vld [vmem:[%s566 + $0x1c] sm:$0xf]
      %v575 = vld [vmem:[%s566 + $0x20] sm:$0xf]
      %v576 = vld [vmem:[%s566 + $0x24] sm:$0xf]
      %v577 = vld [vmem:[%s566 + $0x28] sm:$0xf]
      %v578 = vld [vmem:[%s566 + $0x2c] sm:$0xf]
      %v579 = vld [vmem:[%s566 + $0x30] sm:$0xf]
      %v580 = vld [vmem:[%s566 + $0x34] sm:$0xf]
      %v581 = vld [vmem:[%s566 + $0x38] sm:$0xf]
      %v582 = vld [vmem:[%s566 + $0x3c] sm:$0xf]
      %v594 = vunpack.c.l.b16 %v555
      %v595 = vunpack.c.l.b16 %v556
      %v596 = vunpack.c.l.b16 %v557
      %v597 = vunpack.c.l.b16 %v558
      %v598 = vunpack.c.l.b16 %v559
      %v599 = vunpack.c.l.b16 %v560
      %v600 = vunpack.c.l.b16 %v561
      %v601 = vunpack.c.l.b16 %v562
      %v602 = vunpack.c.l.b16 %v563
      %v603 = vunpack.c.l.b16 %v564
      %v604 = vunpack.c.l.b16 %v565
      %v605 = vpack.c.b16 %v595, %v594
      %v606 = vpack.c.b16 %v597, %v596
      %v607 = vpack.c.b16 %v599, %v598
      %v608 = vpack.c.b16 %v601, %v600
      %v609 = vpack.c.b16 %v603, %v602
      %v610 = vpack.c.b16 %v604, %v604
      %vm611 = vsmask.f32 7424
      %v613 = vshrl.u32 %v605, 16
      %v615 = vshll.u32 %v605, 16
      %v617 = vrot.slane %v615, 1
      %v618 = vor.u32 %v613, %v617
      %v620 = vshll.u32 %v606, 16
      %v622 = vrot.slane %v620, 1
      %v623 = vsel %vm611, %v618, %v622
      %v624 = vshrl.u32 %v606, 16
      %v626 = vor.u32 %v624, %v622
      %v628 = vshll.u32 %v607, 16
      %v630 = vrot.slane %v628, 1
      %v631 = vsel %vm611, %v626, %v630
      %v632 = vshrl.u32 %v607, 16
      %v634 = vor.u32 %v632, %v630
      %v636 = vshll.u32 %v608, 16
      %v638 = vrot.slane %v636, 1
      %v639 = vsel %vm611, %v634, %v638
      %v640 = vshrl.u32 %v608, 16
      %v642 = vor.u32 %v640, %v638
      %v644 = vshll.u32 %v609, 16
      %v646 = vrot.slane %v644, 1
      %v647 = vsel %vm611, %v642, %v646
      %v648 = vshrl.u32 %v609, 16
      %v650 = vor.u32 %v648, %v646
      %v652 = vshll.u32 %v610, 16
      %v654 = vrot.slane %v652, 1
      %v655 = vsel %vm611, %v650, %v654
      %v677 = vunpack.c.l.b16 %v567
      %v678 = vunpack.c.l.b16 %v568
      %v679 = vunpack.c.l.b16 %v569
      %v680 = vunpack.c.l.b16 %v570
      %v681 = vunpack.c.l.b16 %v571
      %v682 = vunpack.c.l.b16 %v572
      %v683 = vunpack.c.l.b16 %v573
      %v684 = vunpack.c.l.b16 %v574
      %v685 = vunpack.c.l.b16 %v575
      %v686 = vunpack.c.l.b16 %v576
      %v687 = vunpack.c.l.b16 %v577
      %v688 = vunpack.c.l.b16 %v578
      %v689 = vunpack.c.l.b16 %v579
      %v690 = vunpack.c.l.b16 %v580
      %v691 = vunpack.c.l.b16 %v581
      %v692 = vunpack.c.l.b16 %v582
      %v693 = vpack.c.b16 %v678, %v677
      %v694 = vpack.c.b16 %v680, %v679
      %v695 = vpack.c.b16 %v682, %v681
      %v696 = vpack.c.b16 %v684, %v683
      %v697 = vpack.c.b16 %v686, %v685
      %v698 = vpack.c.b16 %v688, %v687
      %v699 = vpack.c.b16 %v690, %v689
      %v700 = vpack.c.b16 %v692, %v691
      %709 = vmatprep.subr.bf16.mxu0 0
      %710 = vmatpush1.bf16.msra.mxu0 %v693
      %711 = vmatprep.subr.bf16.mxu0 0
      %712 = vmatpush1.bf16.msra.mxu0 %v694
      %713 = vmatprep.subr.bf16.mxu0 0
      %714 = vmatpush1.bf16.msra.mxu0 %v695
      %715 = vmatprep.subr.bf16.mxu0 0
      %716 = vmatpush1.bf16.msra.mxu0 %v696
      %717 = vmatprep.subr.bf16.mxu0 0
      %718 = vmatpush1.bf16.msra.mxu0 %v697
      %719 = vmatprep.subr.bf16.mxu0 0
      %720 = vmatpush1.bf16.msra.mxu0 %v698
      %721 = vmatprep.subr.bf16.mxu0 0
      %722 = vmatpush1.bf16.msra.mxu0 %v699
      %723 = vmatprep.subr.bf16.mxu0 0
      %724 = vmatpush1.bf16.msra.mxu0 %v700
      %725 = vmatprep.subr.bf16.mxu0 0
      %726 = vmatpush1.bf16.msra.mxu0 0
      %727 = vmatprep.subr.bf16.mxu0 0
      %728 = vmatpush1.bf16.msra.mxu0 0
      %729 = vmatprep.subr.bf16.mxu0 0
      %730 = vmatpush1.bf16.msra.mxu0 0
      %731 = vmatprep.subr.bf16.mxu0 0
      %732 = vmatpush1.bf16.msra.mxu0 0
      %733 = vmatprep.subr.bf16.mxu0 0
      %734 = vmatpush1.bf16.msra.mxu0 0
      %735 = vmatprep.subr.bf16.mxu0 0
      %736 = vmatpush1.bf16.msra.mxu0 0
      %737 = vmatprep.subr.bf16.mxu0 0
      %738 = vmatpush1.bf16.msra.mxu0 0
      %739 = vmatprep.subr.bf16.mxu0 0
      %740 = vmatpush1.bf16.msra.mxu0 0
      %741 = vmatprep.mubr.bf16.mxu0 0
      %742 = vmatmul.mubr.bf16.gmra.mrb[0].mxu0 %v623
      %v743 = vpop.f32.mrb[0].mxu0
      %v744 = vadd.f32 0.0, %v743
      %v745 = vpop.f32.mrb[0].mxu0
      %v746 = vpop.f32.mrb[0].mxu0
      %v747 = vadd.f32 0.0, %v746
      %v748 = vpop.f32.mrb[0].mxu0
      %749 = vmatprep.mubr.bf16.mxu0 0
      %750 = vmatmul.mubr.bf16.gmra.mrb[0].mxu0 %v631
      %v751 = vpop.f32.mrb[0].mxu0
      %v752 = vadd.f32 0.0, %v751
      %v753 = vpop.f32.mrb[0].mxu0
      %v754 = vpop.f32.mrb[0].mxu0
      %v755 = vadd.f32 0.0, %v754
      %v756 = vpop.f32.mrb[0].mxu0
      %757 = vmatprep.mubr.bf16.mxu0 0
      %758 = vmatmul.mubr.bf16.gmra.mrb[0].mxu0 %v639
      %v759 = vpop.f32.mrb[0].mxu0
      %v760 = vadd.f32 0.0, %v759
      %v761 = vpop.f32.mrb[0].mxu0
      %v762 = vpop.f32.mrb[0].mxu0
      %v763 = vadd.f32 0.0, %v762
      %v764 = vpop.f32.mrb[0].mxu0
      %765 = vmatprep.mubr.bf16.mxu0 0
      %766 = vmatmul.mubr.bf16.gmra.mrb[0].mxu0 %v647
      %v767 = vpop.f32.mrb[0].mxu0
      %v768 = vadd.f32 0.0, %v767
      %v769 = vpop.f32.mrb[0].mxu0
      %v770 = vpop.f32.mrb[0].mxu0
      %v771 = vadd.f32 0.0, %v770
      %v772 = vpop.f32.mrb[0].mxu0
      %773 = vmatprep.mubr.bf16.mxu0 0
      %774 = vmatmul.mubr.bf16.gmra.mrb[0].mxu0 %v655
      %v775 = vpop.f32.mrb[0].mxu0
      %v776 = vadd.f32 0.0, %v775
      %v777 = vpop.f32.mrb[0].mxu0
      %v778 = vpop.f32.mrb[0].mxu0
      %v779 = vadd.f32 0.0, %v778
      %v780 = vpop.f32.mrb[0].mxu0
      %781 = vdwg.mxu0
      %v782 = vadd.f32 %v517, %v744
      %v783 = vadd.f32 %v520, %v747
      %v784 = vadd.f32 %v525, %v752
      %v785 = vadd.f32 %v528, %v755
      %v786 = vadd.f32 %v533, %v760
      %v787 = vadd.f32 %v536, %v763
      %v788 = vadd.f32 %v541, %v768
      %v789 = vadd.f32 %v544, %v771
      %v790 = vadd.f32 %v549, %v776
      %v791 = vadd.f32 %v552, %v779
      %s792 = scalar_lea.vmem %s192, 104
      %v793 = vld [vmem:[%s792] sm:$0xf]
      %v794 = vld [vmem:[%s792 + $0x4] sm:$0xf]
      %v795 = vld [vmem:[%s792 + $0x8] sm:$0xf]
      %v796 = vld [vmem:[%s792 + $0xc] sm:$0xf]
      %v797 = vld [vmem:[%s792 + $0x10] sm:$0xf]
      %v798 = vld [vmem:[%s792 + $0x14] sm:$0xf]
      %v799 = vld [vmem:[%s792 + $0x18] sm:$0xf]
      %v800 = vld [vmem:[%s792 + $0x1c] sm:$0xf]
      %v801 = vld [vmem:[%s792 + $0x20] sm:$0xf]
      %v802 = vld [vmem:[%s792 + $0x24] sm:$0xf]
      %s803 = scalar_lea.vmem %s1, 192
      %v804 = vld [vmem:[%s803] sm:$0xf]
      %v805 = vld [vmem:[%s803 + $0x4] sm:$0xf]
      %v806 = vld [vmem:[%s803 + $0x8] sm:$0xf]
      %v807 = vld [vmem:[%s803 + $0xc] sm:$0xf]
      %v808 = vld [vmem:[%s803 + $0x10] sm:$0xf]
      %v809 = vld [vmem:[%s803 + $0x14] sm:$0xf]
      %v810 = vld [vmem:[%s803 + $0x18] sm:$0xf]
      %v811 = vld [vmem:[%s803 + $0x1c] sm:$0xf]
      %v812 = vld [vmem:[%s803 + $0x20] sm:$0xf]
      %v813 = vld [vmem:[%s803 + $0x24] sm:$0xf]
      %v814 = vld [vmem:[%s803 + $0x28] sm:$0xf]
      %v815 = vld [vmem:[%s803 + $0x2c] sm:$0xf]
      %v816 = vld [vmem:[%s803 + $0x30] sm:$0xf]
      %v817 = vld [vmem:[%s803 + $0x34] sm:$0xf]
      %v818 = vld [vmem:[%s803 + $0x38] sm:$0xf]
      %v819 = vld [vmem:[%s803 + $0x3c] sm:$0xf]
      %v830 = vunpack.c.l.b16 %v793
      %v831 = vunpack.c.l.b16 %v794
      %v832 = vunpack.c.l.b16 %v795
      %v833 = vunpack.c.l.b16 %v796
      %v834 = vunpack.c.l.b16 %v797
      %v835 = vunpack.c.l.b16 %v798
      %v836 = vunpack.c.l.b16 %v799
      %v837 = vunpack.c.l.b16 %v800
      %v838 = vunpack.c.l.b16 %v801
      %v839 = vunpack.c.l.b16 %v802
      %v840 = vpack.c.b16 %v831, %v830
      %v841 = vpack.c.b16 %v833, %v832
      %v842 = vpack.c.b16 %v835, %v834
      %v843 = vpack.c.b16 %v837, %v836
      %v844 = vpack.c.b16 %v839, %v838
      %v866 = vunpack.c.l.b16 %v804
      %v867 = vunpack.c.l.b16 %v805
      %v868 = vunpack.c.l.b16 %v806
      %v869 = vunpack.c.l.b16 %v807
      %v870 = vunpack.c.l.b16 %v808
      %v871 = vunpack.c.l.b16 %v809
      %v872 = vunpack.c.l.b16 %v810
      %v873 = vunpack.c.l.b16 %v811
      %v874 = vunpack.c.l.b16 %v812
      %v875 = vunpack.c.l.b16 %v813
      %v876 = vunpack.c.l.b16 %v814
      %v877 = vunpack.c.l.b16 %v815
      %v878 = vunpack.c.l.b16 %v816
      %v879 = vunpack.c.l.b16 %v817
      %v880 = vunpack.c.l.b16 %v818
      %v881 = vunpack.c.l.b16 %v819
      %v882 = vpack.c.b16 %v867, %v866
      %v883 = vpack.c.b16 %v869, %v868
      %v884 = vpack.c.b16 %v871, %v870
      %v885 = vpack.c.b16 %v873, %v872
      %v886 = vpack.c.b16 %v875, %v874
      %v887 = vpack.c.b16 %v877, %v876
      %v888 = vpack.c.b16 %v879, %v878
      %v889 = vpack.c.b16 %v881, %v880
      %898 = vmatprep.subr.bf16.mxu0 0
      %899 = vmatpush1.bf16.msra.mxu0 %v882
      %900 = vmatprep.subr.bf16.mxu0 0
      %901 = vmatpush1.bf16.msra.mxu0 %v883
      %902 = vmatprep.subr.bf16.mxu0 0
      %903 = vmatpush1.bf16.msra.mxu0 %v884
      %904 = vmatprep.subr.bf16.mxu0 0
      %905 = vmatpush1.bf16.msra.mxu0 %v885
      %906 = vmatprep.subr.bf16.mxu0 0
      %907 = vmatpush1.bf16.msra.mxu0 %v886
      %908 = vmatprep.subr.bf16.mxu0 0
      %909 = vmatpush1.bf16.msra.mxu0 %v887
      %910 = vmatprep.subr.bf16.mxu0 0
      %911 = vmatpush1.bf16.msra.mxu0 %v888
      %912 = vmatprep.subr.bf16.mxu0 0
      %913 = vmatpush1.bf16.msra.mxu0 %v889
      %914 = vmatprep.subr.bf16.mxu0 0
      %915 = vmatpush1.bf16.msra.mxu0 0
      %916 = vmatprep.subr.bf16.mxu0 0
      %917 = vmatpush1.bf16.msra.mxu0 0
      %918 = vmatprep.subr.bf16.mxu0 0
      %919 = vmatpush1.bf16.msra.mxu0 0
      %920 = vmatprep.subr.bf16.mxu0 0
      %921 = vmatpush1.bf16.msra.mxu0 0
      %922 = vmatprep.subr.bf16.mxu0 0
      %923 = vmatpush1.bf16.msra.mxu0 0
      %924 = vmatprep.subr.bf16.mxu0 0
      %925 = vmatpush1.bf16.msra.mxu0 0
      %926 = vmatprep.subr.bf16.mxu0 0
      %927 = vmatpush1.bf16.msra.mxu0 0
      %928 = vmatprep.subr.bf16.mxu0 0
      %929 = vmatpush1.bf16.msra.mxu0 0
      %930 = vmatprep.mubr.bf16.mxu0 0
      %931 = vmatmul.mubr.bf16.gmra.mrb[0].mxu0 %v840
      %v932 = vpop.f32.mrb[0].mxu0
      %v933 = vadd.f32 0.0, %v932
      %v934 = vpop.f32.mrb[0].mxu0
      %v935 = vpop.f32.mrb[0].mxu0
      %v936 = vadd.f32 0.0, %v935
      %v937 = vpop.f32.mrb[0].mxu0
      %938 = vmatprep.mubr.bf16.mxu0 0
      %939 = vmatmul.mubr.bf16.gmra.mrb[0].mxu0 %v841
      %v940 = vpop.f32.mrb[0].mxu0
      %v941 = vadd.f32 0.0, %v940
      %v942 = vpop.f32.mrb[0].mxu0
      %v943 = vpop.f32.mrb[0].mxu0
      %v944 = vadd.f32 0.0, %v943
      %v945 = vpop.f32.mrb[0].mxu0
      %946 = vmatprep.mubr.bf16.mxu0 0
      %947 = vmatmul.mubr.bf16.gmra.mrb[0].mxu0 %v842
      %v948 = vpop.f32.mrb[0].mxu0
      %v949 = vadd.f32 0.0, %v948
      %v950 = vpop.f32.mrb[0].mxu0
      %v951 = vpop.f32.mrb[0].mxu0
      %v952 = vadd.f32 0.0, %v951
      %v953 = vpop.f32.mrb[0].mxu0
      %954 = vmatprep.mubr.bf16.mxu0 0
      %955 = vmatmul.mubr.bf16.gmra.mrb[0].mxu0 %v843
      %v956 = vpop.f32.mrb[0].mxu0
      %v957 = vadd.f32 0.0, %v956
      %v958 = vpop.f32.mrb[0].mxu0
      %v959 = vpop.f32.mrb[0].mxu0
      %v960 = vadd.f32 0.0, %v959
      %v961 = vpop.f32.mrb[0].mxu0
      %962 = vmatprep.mubr.bf16.mxu0 0
      %963 = vmatmul.mubr.bf16.gmra.mrb[0].mxu0 %v844
      %v964 = vpop.f32.mrb[0].mxu0
      %v965 = vadd.f32 0.0, %v964
      %v966 = vpop.f32.mrb[0].mxu0
      %v967 = vpop.f32.mrb[0].mxu0
      %v968 = vadd.f32 0.0, %v967
      %v969 = vpop.f32.mrb[0].mxu0
      %970 = vdwg.mxu0
      %v971 = vadd.f32 %v782, %v933
      %v972 = vadd.f32 %v783, %v936
      %v973 = vadd.f32 %v784, %v941
      %v974 = vadd.f32 %v785, %v944
      %v975 = vadd.f32 %v786, %v949
      %v976 = vadd.f32 %v787, %v952
      %v977 = vadd.f32 %v788, %v957
      %v978 = vadd.f32 %v789, %v960
      %v979 = vadd.f32 %v790, %v965
      %v980 = vadd.f32 %v791, %v968
      %s981 = scalar_lea.vmem %s192, 156
      %v982 = vld [vmem:[%s981] sm:$0xf]
      %v983 = vld [vmem:[%s981 + $0x4] sm:$0xf]
      %v984 = vld [vmem:[%s981 + $0x8] sm:$0xf]
      %v985 = vld [vmem:[%s981 + $0xc] sm:$0xf]
      %v986 = vld [vmem:[%s981 + $0x10] sm:$0xf]
      %v987 = vld [vmem:[%s981 + $0x14] sm:$0xf]
      %v988 = vld [vmem:[%s981 + $0x18] sm:$0xf]
      %v989 = vld [vmem:[%s981 + $0x1c] sm:$0xf]
      %v990 = vld [vmem:[%s981 + $0x20] sm:$0xf]
      %v991 = vld [vmem:[%s981 + $0x24] sm:$0xf]
      %s992 = scalar_lea.vmem %s1, 256
      %v993 = vld [vmem:[%s992] sm:$0xf]
      %v994 = vld [vmem:[%s992 + $0x4] sm:$0xf]
      %v995 = vld [vmem:[%s992 + $0x8] sm:$0xf]
      %v996 = vld [vmem:[%s992 + $0xc] sm:$0xf]
      %v997 = vld [vmem:[%s992 + $0x10] sm:$0xf]
      %v998 = vld [vmem:[%s992 + $0x14] sm:$0xf]
      %v999 = vld [vmem:[%s992 + $0x18] sm:$0xf]
      %v1000 = vld [vmem:[%s992 + $0x1c] sm:$0xf]
      %v1001 = vld [vmem:[%s992 + $0x20] sm:$0xf]
      %v1002 = vld [vmem:[%s992 + $0x24] sm:$0xf]
      %v1003 = vld [vmem:[%s992 + $0x28] sm:$0xf]
      %v1004 = vld [vmem:[%s992 + $0x2c] sm:$0xf]
      %v1005 = vld [vmem:[%s992 + $0x30] sm:$0xf]
      %v1006 = vld [vmem:[%s992 + $0x34] sm:$0xf]
      %v1007 = vld [vmem:[%s992 + $0x38] sm:$0xf]
      %v1008 = vld [vmem:[%s992 + $0x3c] sm:$0xf]
      %v1019 = vunpack.c.l.b16 %v982
      %v1020 = vunpack.c.l.b16 %v983
      %v1021 = vunpack.c.l.b16 %v984
      %v1022 = vunpack.c.l.b16 %v985
      %v1023 = vunpack.c.l.b16 %v986
      %v1024 = vunpack.c.l.b16 %v987
      %v1025 = vunpack.c.l.b16 %v988
      %v1026 = vunpack.c.l.b16 %v989
      %v1027 = vunpack.c.l.b16 %v990
      %v1028 = vunpack.c.l.b16 %v991
      %v1029 = vpack.c.b16 %v1020, %v1019
      %v1030 = vpack.c.b16 %v1022, %v1021
      %v1031 = vpack.c.b16 %v1024, %v1023
      %v1032 = vpack.c.b16 %v1026, %v1025
      %v1033 = vpack.c.b16 %v1028, %v1027
      %v1055 = vunpack.c.l.b16 %v993
      %v1056 = vunpack.c.l.b16 %v994
      %v1057 = vunpack.c.l.b16 %v995
      %v1058 = vunpack.c.l.b16 %v996
      %v1059 = vunpack.c.l.b16 %v997
      %v1060 = vunpack.c.l.b16 %v998
      %v1061 = vunpack.c.l.b16 %v999
      %v1062 = vunpack.c.l.b16 %v1000
      %v1063 = vunpack.c.l.b16 %v1001
      %v1064 = vunpack.c.l.b16 %v1002
      %v1065 = vunpack.c.l.b16 %v1003
      %v1066 = vunpack.c.l.b16 %v1004
      %v1067 = vunpack.c.l.b16 %v1005
      %v1068 = vunpack.c.l.b16 %v1006
      %v1069 = vunpack.c.l.b16 %v1007
      %v1070 = vunpack.c.l.b16 %v1008
      %v1071 = vpack.c.b16 %v1056, %v1055
      %v1072 = vpack.c.b16 %v1058, %v1057
      %v1073 = vpack.c.b16 %v1060, %v1059
      %v1074 = vpack.c.b16 %v1062, %v1061
      %v1075 = vpack.c.b16 %v1064, %v1063
      %v1076 = vpack.c.b16 %v1066, %v1065
      %v1077 = vpack.c.b16 %v1068, %v1067
      %v1078 = vpack.c.b16 %v1070, %v1069
      %1087 = vmatprep.subr.bf16.mxu0 0
      %1088 = vmatpush1.bf16.msra.mxu0 %v1071
      %1089 = vmatprep.subr.bf16.mxu0 0
      %1090 = vmatpush1.bf16.msra.mxu0 %v1072
      %1091 = vmatprep.subr.bf16.mxu0 0
      %1092 = vmatpush1.bf16.msra.mxu0 %v1073
      %1093 = vmatprep.subr.bf16.mxu0 0
      %1094 = vmatpush1.bf16.msra.mxu0 %v1074
      %1095 = vmatprep.subr.bf16.mxu0 0
      %1096 = vmatpush1.bf16.msra.mxu0 %v1075
      %1097 = vmatprep.subr.bf16.mxu0 0
      %1098 = vmatpush1.bf16.msra.mxu0 %v1076
      %1099 = vmatprep.subr.bf16.mxu0 0
      %1100 = vmatpush1.bf16.msra.mxu0 %v1077
      %1101 = vmatprep.subr.bf16.mxu0 0
      %1102 = vmatpush1.bf16.msra.mxu0 %v1078
      %1103 = vmatprep.subr.bf16.mxu0 0
      %1104 = vmatpush1.bf16.msra.mxu0 0
      %1105 = vmatprep.subr.bf16.mxu0 0
      %1106 = vmatpush1.bf16.msra.mxu0 0
      %1107 = vmatprep.subr.bf16.mxu0 0
      %1108 = vmatpush1.bf16.msra.mxu0 0
      %1109 = vmatprep.subr.bf16.mxu0 0
      %1110 = vmatpush1.bf16.msra.mxu0 0
      %1111 = vmatprep.subr.bf16.mxu0 0
      %1112 = vmatpush1.bf16.msra.mxu0 0
      %1113 = vmatprep.subr.bf16.mxu0 0
      %1114 = vmatpush1.bf16.msra.mxu0 0
      %1115 = vmatprep.subr.bf16.mxu0 0
      %1116 = vmatpush1.bf16.msra.mxu0 0
      %1117 = vmatprep.subr.bf16.mxu0 0
      %1118 = vmatpush1.bf16.msra.mxu0 0
      %1119 = vmatprep.mubr.bf16.mxu0 0
      %1120 = vmatmul.mubr.bf16.gmra.mrb[0].mxu0 %v1029
      %v1121 = vpop.f32.mrb[0].mxu0
      %v1122 = vadd.f32 0.0, %v1121
      %v1123 = vpop.f32.mrb[0].mxu0
      %v1124 = vpop.f32.mrb[0].mxu0
      %v1125 = vadd.f32 0.0, %v1124
      %v1126 = vpop.f32.mrb[0].mxu0
      %1127 = vmatprep.mubr.bf16.mxu0 0
      %1128 = vmatmul.mubr.bf16.gmra.mrb[0].mxu0 %v1030
      %v1129 = vpop.f32.mrb[0].mxu0
      %v1130 = vadd.f32 0.0, %v1129
      %v1131 = vpop.f32.mrb[0].mxu0
      %v1132 = vpop.f32.mrb[0].mxu0
      %v1133 = vadd.f32 0.0, %v1132
      %v1134 = vpop.f32.mrb[0].mxu0
      %1135 = vmatprep.mubr.bf16.mxu0 0
      %1136 = vmatmul.mubr.bf16.gmra.mrb[0].mxu0 %v1031
      %v1137 = vpop.f32.mrb[0].mxu0
      %v1138 = vadd.f32 0.0, %v1137
      %v1139 = vpop.f32.mrb[0].mxu0
      %v1140 = vpop.f32.mrb[0].mxu0
      %v1141 = vadd.f32 0.0, %v1140
      %v1142 = vpop.f32.mrb[0].mxu0
      %1143 = vmatprep.mubr.bf16.mxu0 0
      %1144 = vmatmul.mubr.bf16.gmra.mrb[0].mxu0 %v1032
      %v1145 = vpop.f32.mrb[0].mxu0
      %v1146 = vadd.f32 0.0, %v1145
      %v1147 = vpop.f32.mrb[0].mxu0
      %v1148 = vpop.f32.mrb[0].mxu0
      %v1149 = vadd.f32 0.0, %v1148
      %v1150 = vpop.f32.mrb[0].mxu0
      %1151 = vmatprep.mubr.bf16.mxu0 0
      %1152 = vmatmul.mubr.bf16.gmra.mrb[0].mxu0 %v1033
      %v1153 = vpop.f32.mrb[0].mxu0
      %v1154 = vadd.f32 0.0, %v1153
      %v1155 = vpop.f32.mrb[0].mxu0
      %v1156 = vpop.f32.mrb[0].mxu0
      %v1157 = vadd.f32 0.0, %v1156
      %v1158 = vpop.f32.mrb[0].mxu0
      %1159 = vdwg.mxu0
      %v1160 = vadd.f32 %v971, %v1122
      %v1161 = vadd.f32 %v972, %v1125
      %v1162 = vadd.f32 %v973, %v1130
      %v1163 = vadd.f32 %v974, %v1133
      %v1164 = vadd.f32 %v975, %v1138
      %v1165 = vadd.f32 %v976, %v1141
      %v1166 = vadd.f32 %v977, %v1146
      %v1167 = vadd.f32 %v978, %v1149
      %v1168 = vadd.f32 %v979, %v1154
      %v1169 = vadd.f32 %v980, %v1157
      %v1170 = vld [vmem:[%s792] sm:$0xf]
      %v1171 = vld [vmem:[%s792 + $0x4] sm:$0xf]
      %v1172 = vld [vmem:[%s792 + $0x8] sm:$0xf]
      %v1173 = vld [vmem:[%s792 + $0xc] sm:$0xf]
      %v1174 = vld [vmem:[%s792 + $0x10] sm:$0xf]
      %v1175 = vld [vmem:[%s792 + $0x14] sm:$0xf]
      %v1176 = vld [vmem:[%s792 + $0x18] sm:$0xf]
      %v1177 = vld [vmem:[%s792 + $0x1c] sm:$0xf]
      %v1178 = vld [vmem:[%s792 + $0x20] sm:$0xf]
      %v1179 = vld [vmem:[%s792 + $0x24] sm:$0xf]
      %v1180 = vld [vmem:[%s792 + $0x28] sm:$0x1]
      %s1181 = scalar_lea.vmem %s1, 320
      %v1182 = vld [vmem:[%s1181] sm:$0xf]
      %v1183 = vld [vmem:[%s1181 + $0x4] sm:$0xf]
      %v1184 = vld [vmem:[%s1181 + $0x8] sm:$0xf]
      %v1185 = vld [vmem:[%s1181 + $0xc] sm:$0xf]
      %v1186 = vld [vmem:[%s1181 + $0x10] sm:$0xf]
      %v1187 = vld [vmem:[%s1181 + $0x14] sm:$0xf]
      %v1188 = vld [vmem:[%s1181 + $0x18] sm:$0xf]
      %v1189 = vld [vmem:[%s1181 + $0x1c] sm:$0xf]
      %v1190 = vld [vmem:[%s1181 + $0x20] sm:$0xf]
      %v1191 = vld [vmem:[%s1181 + $0x24] sm:$0xf]
      %v1192 = vld [vmem:[%s1181 + $0x28] sm:$0xf]
      %v1193 = vld [vmem:[%s1181 + $0x2c] sm:$0xf]
      %v1194 = vld [vmem:[%s1181 + $0x30] sm:$0xf]
      %v1195 = vld [vmem:[%s1181 + $0x34] sm:$0xf]
      %v1196 = vld [vmem:[%s1181 + $0x38] sm:$0xf]
      %v1197 = vld [vmem:[%s1181 + $0x3c] sm:$0xf]
      %v1209 = vunpack.c.l.b16 %v1170
      %v1210 = vunpack.c.l.b16 %v1171
      %v1211 = vunpack.c.l.b16 %v1172
      %v1212 = vunpack.c.l.b16 %v1173
      %v1213 = vunpack.c.l.b16 %v1174
      %v1214 = vunpack.c.l.b16 %v1175
      %v1215 = vunpack.c.l.b16 %v1176
      %v1216 = vunpack.c.l.b16 %v1177
      %v1217 = vunpack.c.l.b16 %v1178
      %v1218 = vunpack.c.l.b16 %v1179
      %v1219 = vunpack.c.l.b16 %v1180
      %v1220 = vpack.c.b16 %v1210, %v1209
      %v1221 = vpack.c.b16 %v1212, %v1211
      %v1222 = vpack.c.b16 %v1214, %v1213
      %v1223 = vpack.c.b16 %v1216, %v1215
      %v1224 = vpack.c.b16 %v1218, %v1217
      %v1225 = vpack.c.b16 %v1219, %v1219
      %v1227 = vshrl.u32 %v1220, 16
      %v1229 = vshll.u32 %v1220, 16
      %v1231 = vrot.slane %v1229, 1
      %v1232 = vor.u32 %v1227, %v1231
      %v1234 = vshll.u32 %v1221, 16
      %v1236 = vrot.slane %v1234, 1
      %v1237 = vsel %vm611, %v1232, %v1236
      %v1238 = vshrl.u32 %v1221, 16
      %v1240 = vor.u32 %v1238, %v1236
      %v1242 = vshll.u32 %v1222, 16
      %v1244 = vrot.slane %v1242, 1
      %v1245 = vsel %vm611, %v1240, %v1244
      %v1246 = vshrl.u32 %v1222, 16
      %v1248 = vor.u32 %v1246, %v1244
      %v1250 = vshll.u32 %v1223, 16
      %v1252 = vrot.slane %v1250, 1
      %v1253 = vsel %vm611, %v1248, %v1252
      %v1254 = vshrl.u32 %v1223, 16
      %v1256 = vor.u32 %v1254, %v1252
      %v1258 = vshll.u32 %v1224, 16
      %v1260 = vrot.slane %v1258, 1
      %v1261 = vsel %vm611, %v1256, %v1260
      %v1262 = vshrl.u32 %v1224, 16
      %v1264 = vor.u32 %v1262, %v1260
      %v1266 = vshll.u32 %v1225, 16
      %v1268 = vrot.slane %v1266, 1
      %v1269 = vsel %vm611, %v1264, %v1268
      %v1291 = vunpack.c.l.b16 %v1182
      %v1292 = vunpack.c.l.b16 %v1183
      %v1293 = vunpack.c.l.b16 %v1184
      %v1294 = vunpack.c.l.b16 %v1185
      %v1295 = vunpack.c.l.b16 %v1186
      %v1296 = vunpack.c.l.b16 %v1187
      %v1297 = vunpack.c.l.b16 %v1188
      %v1298 = vunpack.c.l.b16 %v1189
      %v1299 = vunpack.c.l.b16 %v1190
      %v1300 = vunpack.c.l.b16 %v1191
      %v1301 = vunpack.c.l.b16 %v1192
      %v1302 = vunpack.c.l.b16 %v1193
      %v1303 = vunpack.c.l.b16 %v1194
      %v1304 = vunpack.c.l.b16 %v1195
      %v1305 = vunpack.c.l.b16 %v1196
      %v1306 = vunpack.c.l.b16 %v1197
      %v1307 = vpack.c.b16 %v1292, %v1291
      %v1308 = vpack.c.b16 %v1294, %v1293
      %v1309 = vpack.c.b16 %v1296, %v1295
      %v1310 = vpack.c.b16 %v1298, %v1297
      %v1311 = vpack.c.b16 %v1300, %v1299
      %v1312 = vpack.c.b16 %v1302, %v1301
      %v1313 = vpack.c.b16 %v1304, %v1303
      %v1314 = vpack.c.b16 %v1306, %v1305
      %1323 = vmatprep.subr.bf16.mxu0 0
      %1324 = vmatpush1.bf16.msra.mxu0 %v1307
      %1325 = vmatprep.subr.bf16.mxu0 0
      %1326 = vmatpush1.bf16.msra.mxu0 %v1308
      %1327 = vmatprep.subr.bf16.mxu0 0
      %1328 = vmatpush1.bf16.msra.mxu0 %v1309
      %1329 = vmatprep.subr.bf16.mxu0 0
      %1330 = vmatpush1.bf16.msra.mxu0 %v1310
      %1331 = vmatprep.subr.bf16.mxu0 0
      %1332 = vmatpush1.bf16.msra.mxu0 %v1311
      %1333 = vmatprep.subr.bf16.mxu0 0
      %1334 = vmatpush1.bf16.msra.mxu0 %v1312
      %1335 = vmatprep.subr.bf16.mxu0 0
      %1336 = vmatpush1.bf16.msra.mxu0 %v1313
      %1337 = vmatprep.subr.bf16.mxu0 0
      %1338 = vmatpush1.bf16.msra.mxu0 %v1314
      %1339 = vmatprep.subr.bf16.mxu0 0
      %1340 = vmatpush1.bf16.msra.mxu0 0
      %1341 = vmatprep.subr.bf16.mxu0 0
      %1342 = vmatpush1.bf16.msra.mxu0 0
      %1343 = vmatprep.subr.bf16.mxu0 0
      %1344 = vmatpush1.bf16.msra.mxu0 0
      %1345 = vmatprep.subr.bf16.mxu0 0
      %1346 = vmatpush1.bf16.msra.mxu0 0
      %1347 = vmatprep.subr.bf16.mxu0 0
      %1348 = vmatpush1.bf16.msra.mxu0 0
      %1349 = vmatprep.subr.bf16.mxu0 0
      %1350 = vmatpush1.bf16.msra.mxu0 0
      %1351 = vmatprep.subr.bf16.mxu0 0
      %1352 = vmatpush1.bf16.msra.mxu0 0
      %1353 = vmatprep.subr.bf16.mxu0 0
      %1354 = vmatpush1.bf16.msra.mxu0 0
      %1355 = vmatprep.mubr.bf16.mxu0 0
      %1356 = vmatmul.mubr.bf16.gmra.mrb[0].mxu0 %v1237
      %v1357 = vpop.f32.mrb[0].mxu0
      %v1358 = vadd.f32 0.0, %v1357
      %v1359 = vpop.f32.mrb[0].mxu0
      %v1360 = vpop.f32.mrb[0].mxu0
      %v1361 = vadd.f32 0.0, %v1360
      %v1362 = vpop.f32.mrb[0].mxu0
      %1363 = vmatprep.mubr.bf16.mxu0 0
      %1364 = vmatmul.mubr.bf16.gmra.mrb[0].mxu0 %v1245
      %v1365 = vpop.f32.mrb[0].mxu0
      %v1366 = vadd.f32 0.0, %v1365
      %v1367 = vpop.f32.mrb[0].mxu0
      %v1368 = vpop.f32.mrb[0].mxu0
      %v1369 = vadd.f32 0.0, %v1368
      %v1370 = vpop.f32.mrb[0].mxu0
      %1371 = vmatprep.mubr.bf16.mxu0 0
      %1372 = vmatmul.mubr.bf16.gmra.mrb[0].mxu0 %v1253
      %v1373 = vpop.f32.mrb[0].mxu0
      %v1374 = vadd.f32 0.0, %v1373
      %v1375 = vpop.f32.mrb[0].mxu0
      %v1376 = vpop.f32.mrb[0].mxu0
      %v1377 = vadd.f32 0.0, %v1376
      %v1378 = vpop.f32.mrb[0].mxu0
      %1379 = vmatprep.mubr.bf16.mxu0 0
      %1380 = vmatmul.mubr.bf16.gmra.mrb[0].mxu0 %v1261
      %v1381 = vpop.f32.mrb[0].mxu0
      %v1382 = vadd.f32 0.0, %v1381
      %v1383 = vpop.f32.mrb[0].mxu0
      %v1384 = vpop.f32.mrb[0].mxu0
      %v1385 = vadd.f32 0.0, %v1384
      %v1386 = vpop.f32.mrb[0].mxu0
      %1387 = vmatprep.mubr.bf16.mxu0 0
      %1388 = vmatmul.mubr.bf16.gmra.mrb[0].mxu0 %v1269
      %v1389 = vpop.f32.mrb[0].mxu0
      %v1390 = vadd.f32 0.0, %v1389
      %v1391 = vpop.f32.mrb[0].mxu0
      %v1392 = vpop.f32.mrb[0].mxu0
      %v1393 = vadd.f32 0.0, %v1392
      %v1394 = vpop.f32.mrb[0].mxu0
      %1395 = vdwg.mxu0
      %v1396 = vadd.f32 %v1160, %v1358
      %v1397 = vadd.f32 %v1161, %v1361
      %v1398 = vadd.f32 %v1162, %v1366
      %v1399 = vadd.f32 %v1163, %v1369
      %v1400 = vadd.f32 %v1164, %v1374
      %v1401 = vadd.f32 %v1165, %v1377
      %v1402 = vadd.f32 %v1166, %v1382
      %v1403 = vadd.f32 %v1167, %v1385
      %v1404 = vadd.f32 %v1168, %v1390
      %v1405 = vadd.f32 %v1169, %v1393
      %v1406 = vld [vmem:[%s192 + $0x4] sm:$0xe]
      %v1407 = vld [vmem:[%s192 + $0x8] sm:$0xf]
      %v1408 = vld [vmem:[%s192 + $0xc] sm:$0xf]
      %v1409 = vld [vmem:[%s192 + $0x10] sm:$0xf]
      %v1410 = vld [vmem:[%s192 + $0x14] sm:$0xf]
      %v1411 = vld [vmem:[%s192 + $0x18] sm:$0xf]
      %v1412 = vld [vmem:[%s192 + $0x1c] sm:$0xf]
      %v1413 = vld [vmem:[%s192 + $0x20] sm:$0xf]
      %v1414 = vld [vmem:[%s192 + $0x24] sm:$0xf]
      %v1415 = vld [vmem:[%s192 + $0x28] sm:$0xf]
      %v1416 = vld [vmem:[%s192 + $0x2c] sm:$0x1]
      %s1417 = scalar_lea.vmem %s1, 384
      %v1418 = vld [vmem:[%s1417] sm:$0xf]
      %v1419 = vld [vmem:[%s1417 + $0x4] sm:$0xf]
      %v1420 = vld [vmem:[%s1417 + $0x8] sm:$0xf]
      %v1421 = vld [vmem:[%s1417 + $0xc] sm:$0xf]
      %v1422 = vld [vmem:[%s1417 + $0x10] sm:$0xf]
      %v1423 = vld [vmem:[%s1417 + $0x14] sm:$0xf]
      %v1424 = vld [vmem:[%s1417 + $0x18] sm:$0xf]
      %v1425 = vld [vmem:[%s1417 + $0x1c] sm:$0xf]
      %v1426 = vld [vmem:[%s1417 + $0x20] sm:$0xf]
      %v1427 = vld [vmem:[%s1417 + $0x24] sm:$0xf]
      %v1428 = vld [vmem:[%s1417 + $0x28] sm:$0xf]
      %v1429 = vld [vmem:[%s1417 + $0x2c] sm:$0xf]
      %v1430 = vld [vmem:[%s1417 + $0x30] sm:$0xf]
      %v1431 = vld [vmem:[%s1417 + $0x34] sm:$0xf]
      %v1432 = vld [vmem:[%s1417 + $0x38] sm:$0xf]
      %v1433 = vld [vmem:[%s1417 + $0x3c] sm:$0xf]
      %v1445 = vunpack.c.l.b16 %v1406
      %v1446 = vunpack.c.l.b16 %v1407
      %v1447 = vunpack.c.l.b16 %v1408
      %v1448 = vunpack.c.l.b16 %v1409
      %v1449 = vunpack.c.l.b16 %v1410
      %v1450 = vunpack.c.l.b16 %v1411
      %v1451 = vunpack.c.l.b16 %v1412
      %v1452 = vunpack.c.l.b16 %v1413
      %v1453 = vunpack.c.l.b16 %v1414
      %v1454 = vunpack.c.l.b16 %v1415
      %v1455 = vunpack.c.l.b16 %v1416
      %v1456 = vpack.c.b16 %v1446, %v1445
      %v1457 = vpack.c.b16 %v1448, %v1447
      %v1458 = vpack.c.b16 %v1450, %v1449
      %v1459 = vpack.c.b16 %v1452, %v1451
      %v1460 = vpack.c.b16 %v1454, %v1453
      %v1461 = vpack.c.b16 %v1455, %v1455
      %vm1462 = vcmask 1046528
      %v1463 = vrot.slane %v1456, 1
      %v1464 = vrot.slane %v1457, 1
      %v1465 = vsel %vm1462, %v1463, %v1464
      %v1466 = vrot.slane %v1458, 1
      %v1467 = vsel %vm1462, %v1464, %v1466
      %v1468 = vrot.slane %v1459, 1
      %v1469 = vsel %vm1462, %v1466, %v1468
      %v1470 = vrot.slane %v1460, 1
      %v1471 = vsel %vm1462, %v1468, %v1470
      %v1472 = vrot.slane %v1461, 1
      %v1473 = vsel %vm1462, %v1470, %v1472
      %v1495 = vunpack.c.l.b16 %v1418
      %v1496 = vunpack.c.l.b16 %v1419
      %v1497 = vunpack.c.l.b16 %v1420
      %v1498 = vunpack.c.l.b16 %v1421
      %v1499 = vunpack.c.l.b16 %v1422
      %v1500 = vunpack.c.l.b16 %v1423
      %v1501 = vunpack.c.l.b16 %v1424
      %v1502 = vunpack.c.l.b16 %v1425
      %v1503 = vunpack.c.l.b16 %v1426
      %v1504 = vunpack.c.l.b16 %v1427
      %v1505 = vunpack.c.l.b16 %v1428
      %v1506 = vunpack.c.l.b16 %v1429
      %v1507 = vunpack.c.l.b16 %v1430
      %v1508 = vunpack.c.l.b16 %v1431
      %v1509 = vunpack.c.l.b16 %v1432
      %v1510 = vunpack.c.l.b16 %v1433
      %v1511 = vpack.c.b16 %v1496, %v1495
      %v1512 = vpack.c.b16 %v1498, %v1497
      %v1513 = vpack.c.b16 %v1500, %v1499
      %v1514 = vpack.c.b16 %v1502, %v1501
      %v1515 = vpack.c.b16 %v1504, %v1503
      %v1516 = vpack.c.b16 %v1506, %v1505
      %v1517 = vpack.c.b16 %v1508, %v1507
      %v1518 = vpack.c.b16 %v1510, %v1509
      %1527 = vmatprep.subr.bf16.mxu0 0
      %1528 = vmatpush1.bf16.msra.mxu0 %v1511
      %1529 = vmatprep.subr.bf16.mxu0 0
      %1530 = vmatpush1.bf16.msra.mxu0 %v1512
      %1531 = vmatprep.subr.bf16.mxu0 0
      %1532 = vmatpush1.bf16.msra.mxu0 %v1513
      %1533 = vmatprep.subr.bf16.mxu0 0
      %1534 = vmatpush1.bf16.msra.mxu0 %v1514
      %1535 = vmatprep.subr.bf16.mxu0 0
      %1536 = vmatpush1.bf16.msra.mxu0 %v1515
      %1537 = vmatprep.subr.bf16.mxu0 0
      %1538 = vmatpush1.bf16.msra.mxu0 %v1516
      %1539 = vmatprep.subr.bf16.mxu0 0
      %1540 = vmatpush1.bf16.msra.mxu0 %v1517
      %1541 = vmatprep.subr.bf16.mxu0 0
      %1542 = vmatpush1.bf16.msra.mxu0 %v1518
      %1543 = vmatprep.subr.bf16.mxu0 0
      %1544 = vmatpush1.bf16.msra.mxu0 0
      %1545 = vmatprep.subr.bf16.mxu0 0
      %1546 = vmatpush1.bf16.msra.mxu0 0
      %1547 = vmatprep.subr.bf16.mxu0 0
      %1548 = vmatpush1.bf16.msra.mxu0 0
      %1549 = vmatprep.subr.bf16.mxu0 0
      %1550 = vmatpush1.bf16.msra.mxu0 0
      %1551 = vmatprep.subr.bf16.mxu0 0
      %1552 = vmatpush1.bf16.msra.mxu0 0
      %1553 = vmatprep.subr.bf16.mxu0 0
      %1554 = vmatpush1.bf16.msra.mxu0 0
      %1555 = vmatprep.subr.bf16.mxu0 0
      %1556 = vmatpush1.bf16.msra.mxu0 0
      %1557 = vmatprep.subr.bf16.mxu0 0
      %1558 = vmatpush1.bf16.msra.mxu0 0
      %1559 = vmatprep.mubr.bf16.mxu0 0
      %1560 = vmatmul.mubr.bf16.gmra.mrb[0].mxu0 %v1465
      %v1561 = vpop.f32.mrb[0].mxu0
      %v1562 = vadd.f32 0.0, %v1561
      %v1563 = vpop.f32.mrb[0].mxu0
      %v1564 = vpop.f32.mrb[0].mxu0
      %v1565 = vadd.f32 0.0, %v1564
      %v1566 = vpop.f32.mrb[0].mxu0
      %1567 = vmatprep.mubr.bf16.mxu0 0
      %1568 = vmatmul.mubr.bf16.gmra.mrb[0].mxu0 %v1467
      %v1569 = vpop.f32.mrb[0].mxu0
      %v1570 = vadd.f32 0.0, %v1569
      %v1571 = vpop.f32.mrb[0].mxu0
      %v1572 = vpop.f32.mrb[0].mxu0
      %v1573 = vadd.f32 0.0, %v1572
      %v1574 = vpop.f32.mrb[0].mxu0
      %1575 = vmatprep.mubr.bf16.mxu0 0
      %1576 = vmatmul.mubr.bf16.gmra.mrb[0].mxu0 %v1469
      %v1577 = vpop.f32.mrb[0].mxu0
      %v1578 = vadd.f32 0.0, %v1577
      %v1579 = vpop.f32.mrb[0].mxu0
      %v1580 = vpop.f32.mrb[0].mxu0
      %v1581 = vadd.f32 0.0, %v1580
      %v1582 = vpop.f32.mrb[0].mxu0
      %1583 = vmatprep.mubr.bf16.mxu0 0
      %1584 = vmatmul.mubr.bf16.gmra.mrb[0].mxu0 %v1471
      %v1585 = vpop.f32.mrb[0].mxu0
      %v1586 = vadd.f32 0.0, %v1585
      %v1587 = vpop.f32.mrb[0].mxu0
      %v1588 = vpop.f32.mrb[0].mxu0
      %v1589 = vadd.f32 0.0, %v1588
      %v1590 = vpop.f32.mrb[0].mxu0
      %1591 = vmatprep.mubr.bf16.mxu0 0
      %1592 = vmatmul.mubr.bf16.gmra.mrb[0].mxu0 %v1473
      %v1593 = vpop.f32.mrb[0].mxu0
      %v1594 = vadd.f32 0.0, %v1593
      %v1595 = vpop.f32.mrb[0].mxu0
      %v1596 = vpop.f32.mrb[0].mxu0
      %v1597 = vadd.f32 0.0, %v1596
      %v1598 = vpop.f32.mrb[0].mxu0
      %1599 = vdwg.mxu0
      %v1600 = vadd.f32 %v1396, %v1562
      %v1601 = vadd.f32 %v1397, %v1565
      %v1602 = vadd.f32 %v1398, %v1570
      %v1603 = vadd.f32 %v1399, %v1573
      %v1604 = vadd.f32 %v1400, %v1578
      %v1605 = vadd.f32 %v1401, %v1581
      %v1606 = vadd.f32 %v1402, %v1586
      %v1607 = vadd.f32 %v1403, %v1589
      %v1608 = vadd.f32 %v1404, %v1594
      %v1609 = vadd.f32 %v1405, %v1597
      %v1610 = vld [vmem:[%s225 + $0x4] sm:$0xe]
      %v1611 = vld [vmem:[%s225 + $0x8] sm:$0xf]
      %v1612 = vld [vmem:[%s225 + $0xc] sm:$0xf]
      %v1613 = vld [vmem:[%s225 + $0x10] sm:$0xf]
      %v1614 = vld [vmem:[%s225 + $0x14] sm:$0xf]
      %v1615 = vld [vmem:[%s225 + $0x18] sm:$0xf]
      %v1616 = vld [vmem:[%s225 + $0x1c] sm:$0xf]
      %v1617 = vld [vmem:[%s225 + $0x20] sm:$0xf]
      %v1618 = vld [vmem:[%s225 + $0x24] sm:$0xf]
      %v1619 = vld [vmem:[%s225 + $0x28] sm:$0xf]
      %v1620 = vld [vmem:[%s225 + $0x2c] sm:$0x1]
      %s1621 = scalar_lea.vmem %s1, 448
      %v1622 = vld [vmem:[%s1621] sm:$0xf]
      %v1623 = vld [vmem:[%s1621 + $0x4] sm:$0xf]
      %v1624 = vld [vmem:[%s1621 + $0x8] sm:$0xf]
      %v1625 = vld [vmem:[%s1621 + $0xc] sm:$0xf]
      %v1626 = vld [vmem:[%s1621 + $0x10] sm:$0xf]
      %v1627 = vld [vmem:[%s1621 + $0x14] sm:$0xf]
      %v1628 = vld [vmem:[%s1621 + $0x18] sm:$0xf]
      %v1629 = vld [vmem:[%s1621 + $0x1c] sm:$0xf]
      %v1630 = vld [vmem:[%s1621 + $0x20] sm:$0xf]
      %v1631 = vld [vmem:[%s1621 + $0x24] sm:$0xf]
      %v1632 = vld [vmem:[%s1621 + $0x28] sm:$0xf]
      %v1633 = vld [vmem:[%s1621 + $0x2c] sm:$0xf]
      %v1634 = vld [vmem:[%s1621 + $0x30] sm:$0xf]
      %v1635 = vld [vmem:[%s1621 + $0x34] sm:$0xf]
      %v1636 = vld [vmem:[%s1621 + $0x38] sm:$0xf]
      %v1637 = vld [vmem:[%s1621 + $0x3c] sm:$0xf]
      %v1649 = vunpack.c.l.b16 %v1610
      %v1650 = vunpack.c.l.b16 %v1611
      %v1651 = vunpack.c.l.b16 %v1612
      %v1652 = vunpack.c.l.b16 %v1613
      %v1653 = vunpack.c.l.b16 %v1614
      %v1654 = vunpack.c.l.b16 %v1615
      %v1655 = vunpack.c.l.b16 %v1616
      %v1656 = vunpack.c.l.b16 %v1617
      %v1657 = vunpack.c.l.b16 %v1618
      %v1658 = vunpack.c.l.b16 %v1619
      %v1659 = vunpack.c.l.b16 %v1620
      %v1660 = vpack.c.b16 %v1650, %v1649
      %v1661 = vpack.c.b16 %v1652, %v1651
      %v1662 = vpack.c.b16 %v1654, %v1653
      %v1663 = vpack.c.b16 %v1656, %v1655
      %v1664 = vpack.c.b16 %v1658, %v1657
      %v1665 = vpack.c.b16 %v1659, %v1659
      %v1666 = vrot.slane %v1660, 1
      %v1667 = vrot.slane %v1661, 1
      %v1668 = vsel %vm1462, %v1666, %v1667
      %v1669 = vrot.slane %v1662, 1
      %v1670 = vsel %vm1462, %v1667, %v1669
      %v1671 = vrot.slane %v1663, 1
      %v1672 = vsel %vm1462, %v1669, %v1671
      %v1673 = vrot.slane %v1664, 1
      %v1674 = vsel %vm1462, %v1671, %v1673
      %v1675 = vrot.slane %v1665, 1
      %v1676 = vsel %vm1462, %v1673, %v1675
      %v1698 = vunpack.c.l.b16 %v1622
      %v1699 = vunpack.c.l.b16 %v1623
      %v1700 = vunpack.c.l.b16 %v1624
      %v1701 = vunpack.c.l.b16 %v1625
      %v1702 = vunpack.c.l.b16 %v1626
      %v1703 = vunpack.c.l.b16 %v1627
      %v1704 = vunpack.c.l.b16 %v1628
      %v1705 = vunpack.c.l.b16 %v1629
      %v1706 = vunpack.c.l.b16 %v1630
      %v1707 = vunpack.c.l.b16 %v1631
      %v1708 = vunpack.c.l.b16 %v1632
      %v1709 = vunpack.c.l.b16 %v1633
      %v1710 = vunpack.c.l.b16 %v1634
      %v1711 = vunpack.c.l.b16 %v1635
      %v1712 = vunpack.c.l.b16 %v1636
      %v1713 = vunpack.c.l.b16 %v1637
      %v1714 = vpack.c.b16 %v1699, %v1698
      %v1715 = vpack.c.b16 %v1701, %v1700
      %v1716 = vpack.c.b16 %v1703, %v1702
      %v1717 = vpack.c.b16 %v1705, %v1704
      %v1718 = vpack.c.b16 %v1707, %v1706
      %v1719 = vpack.c.b16 %v1709, %v1708
      %v1720 = vpack.c.b16 %v1711, %v1710
      %v1721 = vpack.c.b16 %v1713, %v1712
      %1730 = vmatprep.subr.bf16.mxu0 0
      %1731 = vmatpush1.bf16.msra.mxu0 %v1714
      %1732 = vmatprep.subr.bf16.mxu0 0
      %1733 = vmatpush1.bf16.msra.mxu0 %v1715
      %1734 = vmatprep.subr.bf16.mxu0 0
      %1735 = vmatpush1.bf16.msra.mxu0 %v1716
      %1736 = vmatprep.subr.bf16.mxu0 0
      %1737 = vmatpush1.bf16.msra.mxu0 %v1717
      %1738 = vmatprep.subr.bf16.mxu0 0
      %1739 = vmatpush1.bf16.msra.mxu0 %v1718
      %1740 = vmatprep.subr.bf16.mxu0 0
      %1741 = vmatpush1.bf16.msra.mxu0 %v1719
      %1742 = vmatprep.subr.bf16.mxu0 0
      %1743 = vmatpush1.bf16.msra.mxu0 %v1720
      %1744 = vmatprep.subr.bf16.mxu0 0
      %1745 = vmatpush1.bf16.msra.mxu0 %v1721
      %1746 = vmatprep.subr.bf16.mxu0 0
      %1747 = vmatpush1.bf16.msra.mxu0 0
      %1748 = vmatprep.subr.bf16.mxu0 0
      %1749 = vmatpush1.bf16.msra.mxu0 0
      %1750 = vmatprep.subr.bf16.mxu0 0
      %1751 = vmatpush1.bf16.msra.mxu0 0
      %1752 = vmatprep.subr.bf16.mxu0 0
      %1753 = vmatpush1.bf16.msra.mxu0 0
      %1754 = vmatprep.subr.bf16.mxu0 0
      %1755 = vmatpush1.bf16.msra.mxu0 0
      %1756 = vmatprep.subr.bf16.mxu0 0
      %1757 = vmatpush1.bf16.msra.mxu0 0
      %1758 = vmatprep.subr.bf16.mxu0 0
      %1759 = vmatpush1.bf16.msra.mxu0 0
      %1760 = vmatprep.subr.bf16.mxu0 0
      %1761 = vmatpush1.bf16.msra.mxu0 0
      %1762 = vmatprep.mubr.bf16.mxu0 0
      %1763 = vmatmul.mubr.bf16.gmra.mrb[0].mxu0 %v1668
      %v1764 = vpop.f32.mrb[0].mxu0
      %v1765 = vadd.f32 0.0, %v1764
      %v1766 = vpop.f32.mrb[0].mxu0
      %v1767 = vpop.f32.mrb[0].mxu0
      %v1768 = vadd.f32 0.0, %v1767
      %v1769 = vpop.f32.mrb[0].mxu0
      %1770 = vmatprep.mubr.bf16.mxu0 0
      %1771 = vmatmul.mubr.bf16.gmra.mrb[0].mxu0 %v1670
      %v1772 = vpop.f32.mrb[0].mxu0
      %v1773 = vadd.f32 0.0, %v1772
      %v1774 = vpop.f32.mrb[0].mxu0
      %v1775 = vpop.f32.mrb[0].mxu0
      %v1776 = vadd.f32 0.0, %v1775
      %v1777 = vpop.f32.mrb[0].mxu0
      %1778 = vmatprep.mubr.bf16.mxu0 0
      %1779 = vmatmul.mubr.bf16.gmra.mrb[0].mxu0 %v1672
      %v1780 = vpop.f32.mrb[0].mxu0
      %v1781 = vadd.f32 0.0, %v1780
      %v1782 = vpop.f32.mrb[0].mxu0
      %v1783 = vpop.f32.mrb[0].mxu0
      %v1784 = vadd.f32 0.0, %v1783
      %v1785 = vpop.f32.mrb[0].mxu0
      %1786 = vmatprep.mubr.bf16.mxu0 0
      %1787 = vmatmul.mubr.bf16.gmra.mrb[0].mxu0 %v1674
      %v1788 = vpop.f32.mrb[0].mxu0
      %v1789 = vadd.f32 0.0, %v1788
      %v1790 = vpop.f32.mrb[0].mxu0
      %v1791 = vpop.f32.mrb[0].mxu0
      %v1792 = vadd.f32 0.0, %v1791
      %v1793 = vpop.f32.mrb[0].mxu0
      %1794 = vmatprep.mubr.bf16.mxu0 0
      %1795 = vmatmul.mubr.bf16.gmra.mrb[0].mxu0 %v1676
      %v1796 = vpop.f32.mrb[0].mxu0
      %v1797 = vadd.f32 0.0, %v1796
      %v1798 = vpop.f32.mrb[0].mxu0
      %v1799 = vpop.f32.mrb[0].mxu0
      %v1800 = vadd.f32 0.0, %v1799
      %v1801 = vpop.f32.mrb[0].mxu0
      %1802 = vdwg.mxu0
      %v1803 = vadd.f32 %v1600, %v1765
      %v1804 = vadd.f32 %v1601, %v1768
      %v1805 = vadd.f32 %v1602, %v1773
      %v1806 = vadd.f32 %v1603, %v1776
      %v1807 = vadd.f32 %v1604, %v1781
      %v1808 = vadd.f32 %v1605, %v1784
      %v1809 = vadd.f32 %v1606, %v1789
      %v1810 = vadd.f32 %v1607, %v1792
      %v1811 = vadd.f32 %v1608, %v1797
      %v1812 = vadd.f32 %v1609, %v1800
      %v1813 = vld [vmem:[%s192 + $0x2c] sm:$0x3]
      %s1814 = scalar_lea.vmem %s1, 512
      %v1815 = vld [vmem:[%s1814] sm:$0xf]
      %v1816 = vld [vmem:[%s1814 + $0x4] sm:$0xf]
      %v1817 = vld [vmem:[%s1814 + $0x8] sm:$0xf]
      %v1818 = vld [vmem:[%s1814 + $0xc] sm:$0xf]
      %v1819 = vld [vmem:[%s1814 + $0x10] sm:$0xf]
      %v1820 = vld [vmem:[%s1814 + $0x14] sm:$0xf]
      %v1821 = vld [vmem:[%s1814 + $0x18] sm:$0xf]
      %v1822 = vld [vmem:[%s1814 + $0x1c] sm:$0xf]
      %v1823 = vld [vmem:[%s1814 + $0x20] sm:$0xf]
      %v1824 = vld [vmem:[%s1814 + $0x24] sm:$0xf]
      %v1825 = vld [vmem:[%s1814 + $0x28] sm:$0xf]
      %v1826 = vld [vmem:[%s1814 + $0x2c] sm:$0xf]
      %v1827 = vld [vmem:[%s1814 + $0x30] sm:$0xf]
      %v1828 = vld [vmem:[%s1814 + $0x34] sm:$0xf]
      %v1829 = vld [vmem:[%s1814 + $0x38] sm:$0xf]
      %v1830 = vld [vmem:[%s1814 + $0x3c] sm:$0xf]
      %v1832 = vunpack.c.l.b16 %v1813
      %v1833 = vpack.c.b16 %v1832, %v1832
      %vm1834 = vsmask.f32 6400
      %v1836 = vshrl.u32 %v1456, 16
      %v1838 = vrot.slane %v1836, 1
      %v1839 = vshll.u32 %v1456, 16
      %v1841 = vrot.slane %v1839, 2
      %v1842 = vor.u32 %v1838, %v1841
      %v1844 = vshrl.u32 %v1457, 16
      %v1846 = vrot.slane %v1844, 1
      %v1847 = vshll.u32 %v1457, 16
      %v1849 = vrot.slane %v1847, 2
      %v1850 = vor.u32 %v1846, %v1849
      %v1851 = vsel %vm1834, %v1842, %v1850
      %v1853 = vshrl.u32 %v1458, 16
      %v1855 = vrot.slane %v1853, 1
      %v1856 = vshll.u32 %v1458, 16
      %v1858 = vrot.slane %v1856, 2
      %v1859 = vor.u32 %v1855, %v1858
      %v1860 = vsel %vm1834, %v1850, %v1859
      %v1862 = vshrl.u32 %v1459, 16
      %v1864 = vrot.slane %v1862, 1
      %v1865 = vshll.u32 %v1459, 16
      %v1867 = vrot.slane %v1865, 2
      %v1868 = vor.u32 %v1864, %v1867
      %v1869 = vsel %vm1834, %v1859, %v1868
      %v1871 = vshrl.u32 %v1460, 16
      %v1873 = vrot.slane %v1871, 1
      %v1874 = vshll.u32 %v1460, 16
      %v1876 = vrot.slane %v1874, 2
      %v1877 = vor.u32 %v1873, %v1876
      %v1878 = vsel %vm1834, %v1868, %v1877
      %v1880 = vshrl.u32 %v1833, 16
      %v1882 = vrot.slane %v1880, 1
      %v1883 = vshll.u32 %v1833, 16
      %v1885 = vrot.slane %v1883, 2
      %v1886 = vor.u32 %v1882, %v1885
      %v1887 = vsel %vm1834, %v1877, %v1886
      %v1909 = vunpack.c.l.b16 %v1815
      %v1910 = vunpack.c.l.b16 %v1816
      %v1911 = vunpack.c.l.b16 %v1817
      %v1912 = vunpack.c.l.b16 %v1818
      %v1913 = vunpack.c.l.b16 %v1819
      %v1914 = vunpack.c.l.b16 %v1820
      %v1915 = vunpack.c.l.b16 %v1821
      %v1916 = vunpack.c.l.b16 %v1822
      %v1917 = vunpack.c.l.b16 %v1823
      %v1918 = vunpack.c.l.b16 %v1824
      %v1919 = vunpack.c.l.b16 %v1825
      %v1920 = vunpack.c.l.b16 %v1826
      %v1921 = vunpack.c.l.b16 %v1827
      %v1922 = vunpack.c.l.b16 %v1828
      %v1923 = vunpack.c.l.b16 %v1829
      %v1924 = vunpack.c.l.b16 %v1830
      %v1925 = vpack.c.b16 %v1910, %v1909
      %v1926 = vpack.c.b16 %v1912, %v1911
      %v1927 = vpack.c.b16 %v1914, %v1913
      %v1928 = vpack.c.b16 %v1916, %v1915
      %v1929 = vpack.c.b16 %v1918, %v1917
      %v1930 = vpack.c.b16 %v1920, %v1919
      %v1931 = vpack.c.b16 %v1922, %v1921
      %v1932 = vpack.c.b16 %v1924, %v1923
      %1941 = vmatprep.subr.bf16.mxu0 0
      %1942 = vmatpush1.bf16.msra.mxu0 %v1925
      %1943 = vmatprep.subr.bf16.mxu0 0
      %1944 = vmatpush1.bf16.msra.mxu0 %v1926
      %1945 = vmatprep.subr.bf16.mxu0 0
      %1946 = vmatpush1.bf16.msra.mxu0 %v1927
      %1947 = vmatprep.subr.bf16.mxu0 0
      %1948 = vmatpush1.bf16.msra.mxu0 %v1928
      %1949 = vmatprep.subr.bf16.mxu0 0
      %1950 = vmatpush1.bf16.msra.mxu0 %v1929
      %1951 = vmatprep.subr.bf16.mxu0 0
      %1952 = vmatpush1.bf16.msra.mxu0 %v1930
      %1953 = vmatprep.subr.bf16.mxu0 0
      %1954 = vmatpush1.bf16.msra.mxu0 %v1931
      %1955 = vmatprep.subr.bf16.mxu0 0
      %1956 = vmatpush1.bf16.msra.mxu0 %v1932
      %1957 = vmatprep.subr.bf16.mxu0 0
      %1958 = vmatpush1.bf16.msra.mxu0 0
      %1959 = vmatprep.subr.bf16.mxu0 0
      %1960 = vmatpush1.bf16.msra.mxu0 0
      %1961 = vmatprep.subr.bf16.mxu0 0
      %1962 = vmatpush1.bf16.msra.mxu0 0
      %1963 = vmatprep.subr.bf16.mxu0 0
      %1964 = vmatpush1.bf16.msra.mxu0 0
      %1965 = vmatprep.subr.bf16.mxu0 0
      %1966 = vmatpush1.bf16.msra.mxu0 0
      %1967 = vmatprep.subr.bf16.mxu0 0
      %1968 = vmatpush1.bf16.msra.mxu0 0
      %1969 = vmatprep.subr.bf16.mxu0 0
      %1970 = vmatpush1.bf16.msra.mxu0 0
      %1971 = vmatprep.subr.bf16.mxu0 0
      %1972 = vmatpush1.bf16.msra.mxu0 0
      %1973 = vmatprep.mubr.bf16.mxu0 0
      %1974 = vmatmul.mubr.bf16.gmra.mrb[0].mxu0 %v1851
      %v1975 = vpop.f32.mrb[0].mxu0
      %v1976 = vadd.f32 0.0, %v1975
      %v1977 = vpop.f32.mrb[0].mxu0
      %v1978 = vpop.f32.mrb[0].mxu0
      %v1979 = vadd.f32 0.0, %v1978
      %v1980 = vpop.f32.mrb[0].mxu0
      %1981 = vmatprep.mubr.bf16.mxu0 0
      %1982 = vmatmul.mubr.bf16.gmra.mrb[0].mxu0 %v1860
      %v1983 = vpop.f32.mrb[0].mxu0
      %v1984 = vadd.f32 0.0, %v1983
      %v1985 = vpop.f32.mrb[0].mxu0
      %v1986 = vpop.f32.mrb[0].mxu0
      %v1987 = vadd.f32 0.0, %v1986
      %v1988 = vpop.f32.mrb[0].mxu0
      %1989 = vmatprep.mubr.bf16.mxu0 0
      %1990 = vmatmul.mubr.bf16.gmra.mrb[0].mxu0 %v1869
      %v1991 = vpop.f32.mrb[0].mxu0
      %v1992 = vadd.f32 0.0, %v1991
      %v1993 = vpop.f32.mrb[0].mxu0
      %v1994 = vpop.f32.mrb[0].mxu0
      %v1995 = vadd.f32 0.0, %v1994
      %v1996 = vpop.f32.mrb[0].mxu0
      %1997 = vmatprep.mubr.bf16.mxu0 0
      %1998 = vmatmul.mubr.bf16.gmra.mrb[0].mxu0 %v1878
      %v1999 = vpop.f32.mrb[0].mxu0
      %v2000 = vadd.f32 0.0, %v1999
      %v2001 = vpop.f32.mrb[0].mxu0
      %v2002 = vpop.f32.mrb[0].mxu0
      %v2003 = vadd.f32 0.0, %v2002
      %v2004 = vpop.f32.mrb[0].mxu0
      %2005 = vmatprep.mubr.bf16.mxu0 0
      %2006 = vmatmul.mubr.bf16.gmra.mrb[0].mxu0 %v1887
      %v2007 = vpop.f32.mrb[0].mxu0
      %v2008 = vadd.f32 0.0, %v2007
      %v2009 = vpop.f32.mrb[0].mxu0
      %v2010 = vpop.f32.mrb[0].mxu0
      %v2011 = vadd.f32 0.0, %v2010
      %v2012 = vpop.f32.mrb[0].mxu0
      %2013 = vdwg.mxu0
      %v2014 = vadd.f32 %v1803, %v1976
      %v2015 = vadd.f32 %v1804, %v1979
      %v2016 = vadd.f32 %v1805, %v1984
      %v2017 = vadd.f32 %v1806, %v1987
      %v2018 = vadd.f32 %v1807, %v1992
      %v2019 = vadd.f32 %v1808, %v1995
      %v2020 = vadd.f32 %v1809, %v2000
      %v2021 = vadd.f32 %v1810, %v2003
      %v2022 = vadd.f32 %v1811, %v2008
      %v2023 = vadd.f32 %v1812, %v2011
      %v2024 = vld [vmem:[%s2] sm:$0x1]
      %v2026 = vlaneseq
      %v2027 = vshrl.u32 %v2026, 7
      %v2028 = vsub.s32 0, %v2027
      %v2029 = vrot.slane %v2024, %v2028
      %v2031 = vmul.f32 %v2014, %v2029
      %v2032 = vmul.f32 %v2015, %v2029
      %v2033 = vmul.f32 %v2016, %v2029
      %v2034 = vmul.f32 %v2017, %v2029
      %v2035 = vmul.f32 %v2018, %v2029
      %v2036 = vmul.f32 %v2019, %v2029
      %v2037 = vmul.f32 %v2020, %v2029
      %v2038 = vmul.f32 %v2021, %v2029
      %v2039 = vmul.f32 %v2022, %v2029
      %v2040 = vmul.f32 %v2023, %v2029
      %v2041 = vld [vmem:[%s3] sm:$0x1]
      %v2043 = vlaneseq
      %v2044 = vshrl.u32 %v2043, 7
      %v2045 = vsub.s32 0, %v2044
      %v2046 = vrot.slane %v2041, %v2045
      %v2048 = vadd.f32 %v2031, %v2046
      %v2049 = vadd.f32 %v2032, %v2046
      %v2050 = vadd.f32 %v2033, %v2046
      %v2051 = vadd.f32 %v2034, %v2046
      %v2052 = vadd.f32 %v2035, %v2046
      %v2053 = vadd.f32 %v2036, %v2046
      %v2054 = vadd.f32 %v2037, %v2046
      %v2055 = vadd.f32 %v2038, %v2046
      %v2056 = vadd.f32 %v2039, %v2046
      %v2057 = vadd.f32 %v2040, %v2046
      %v2058 = vmax.f32 %v2048, 0.0
      %v2059 = vmax.f32 %v2049, 0.0
      %v2060 = vmax.f32 %v2050, 0.0
      %v2061 = vmax.f32 %v2051, 0.0
      %v2062 = vmax.f32 %v2052, 0.0
      %v2063 = vmax.f32 %v2053, 0.0
      %v2064 = vmax.f32 %v2054, 0.0
      %v2065 = vmax.f32 %v2055, 0.0
      %v2066 = vmax.f32 %v2056, 0.0
      %v2067 = vmax.f32 %v2057, 0.0
      %v2068 = vpack.c.bf16 %v2059, %v2058
      %v2069 = vpack.c.bf16 %v2061, %v2060
      %v2070 = vpack.c.bf16 %v2063, %v2062
      %v2071 = vpack.c.bf16 %v2065, %v2064
      %v2072 = vpack.c.bf16 %v2067, %v2066
      %v2078 = vunpack.c.l.b16 %v2068
      %v2079 = vunpack.c.h.b16 %v2068
      %v2080 = vunpack.c.l.b16 %v2069
      %v2081 = vunpack.c.h.b16 %v2069
      %v2082 = vunpack.c.l.b16 %v2070
      %v2083 = vunpack.c.h.b16 %v2070
      %v2084 = vunpack.c.l.b16 %v2071
      %v2085 = vunpack.c.h.b16 %v2071
      %v2086 = vunpack.c.l.b16 %v2072
      %v2087 = vunpack.c.h.b16 %v2072
      %v2088 = vpack.c.b16 %v2078, %v2078
      %v2089 = vpack.c.b16 %v2079, %v2079
      %v2090 = vpack.c.b16 %v2080, %v2080
      %v2091 = vpack.c.b16 %v2081, %v2081
      %v2092 = vpack.c.b16 %v2082, %v2082
      %v2093 = vpack.c.b16 %v2083, %v2083
      %v2094 = vpack.c.b16 %v2084, %v2084
      %v2095 = vpack.c.b16 %v2085, %v2085
      %v2096 = vpack.c.b16 %v2086, %v2086
      %v2097 = vpack.c.b16 %v2087, %v2087
      %2108 = vst [vmem:[%s197] sm:$0xf] %v2088
      %2109 = vst [vmem:[%s197 + $0x4] sm:$0xf] %v2089
      %2110 = vst [vmem:[%s197 + $0x8] sm:$0xf] %v2090
      %2111 = vst [vmem:[%s197 + $0xc] sm:$0xf] %v2091
      %2112 = vst [vmem:[%s197 + $0x10] sm:$0xf] %v2092
      %2113 = vst [vmem:[%s197 + $0x14] sm:$0xf] %v2093
      %2114 = vst [vmem:[%s197 + $0x18] sm:$0xf] %v2094
      %2115 = vst [vmem:[%s197 + $0x1c] sm:$0xf] %v2095
      %2116 = vst [vmem:[%s197 + $0x20] sm:$0xf] %v2096
      %2117 = vst [vmem:[%s197 + $0x24] sm:$0xf] %v2097
      %p2118 = scmp.lt.s32.totalorder %s15, 1
      %s2119 = scalar_select %p2118, %s15, 1
      %s2120 = smul.addr %s2119, 10
      %s2121 = smul.addr %s2120, 4
      %s2122 = scalar_lea.vmem %s4, %s2121
      // Predicated region
      $region37: #{basic_block_forward.2} parent=35 // pred_check
        %p2123 = pneg %p122
      $region38: #{basic_block_forward.2} parent=35 // pred_check_branch
        %2125 = sbr.rel (%p2123) target = $region40
      $region39: #{basic_block_forward.2} parent=35 // pred_region
        _
      $region40: #{basic_block_forward.2} parent=35 // pred_fallthru
        _
    $region36: #{basic_block_forward.2} parent=5 // pred_fallthru
      _
    %p2126 = scmp.le.s32.totalorder 2, %s10
    // Predicated region
    $region41: #{basic_block_forward.2} parent=5 // pred_check
      %p2127 = pneg %p2126
    $region42: #{basic_block_forward.2} parent=5 // pred_check_branch
      %2129 = sbr.rel (%p2127) target = $region44
    $region43: #{basic_block_forward.2} parent=5 // pred_region
      %s2130 = ssub.s32 %s10, 2
      // Predicated region
      $region45: #{basic_block_forward.2} parent=43 // pred_check
        %p2131 = pneg %p128
      $region46: #{basic_block_forward.2} parent=43 // pred_check_branch
        %2133 = sbr.rel (%p2131) target = $region48
      $region47: #{basic_block_forward.2} parent=43 // pred_region
        %p2134 = scmp.lt.s32.totalorder %s16, 1
        %s2135 = scalar_select %p2134, %s16, 1
        %s2136 = smul.addr %s2135, 10
        %s2137 = smul.addr %s2136, 4
        %s2138 = scalar_lea.vmem %s4, %s2137
      $region48: #{basic_block_forward.2} parent=43 // pred_fallthru
        _
    $region44: #{basic_block_forward.2} parent=5 // pred_fallthru
      _
  $region6: #{basic_block_forward.2} parent=0 // loop_footer
    %s14 = sadd.s32 1, %s10
  $region7: #{basic_block_forward.2} parent=0 // loop_footer_branch
    %9 = sbr.rel target = $region3
  $region8: #{basic_block_forward.2} parent=0 // loop_exit
    _

// kernel: basic_block_forward.3
$region0: #{basic_block_forward.3}
  #allocation0 [shape = 'u32[]', space=smem, size = 0x4, offset = 0x4, fixed_abs, tag = 'smem constant byte address 0x4 - core index']
  #allocation1 [shape = 'u32[144,128]{1,0:T(1,128)}', space=vmem, size = 0x12000, scoped, tag = 'internal scratch']
  %s0 = inlined_call_operand.vmem [shape: bf16[2,1,110,128], index: 0, kind: input, shape index: {}]
  %s1 = inlined_call_operand.vmem [shape: bf16[9,128,128], index: 1, kind: input, shape index: {}]
  %s2 = inlined_call_operand.vmem [shape: f32[1,128], index: 2, kind: input, shape index: {}]
  %s3 = inlined_call_operand.vmem [shape: f32[1,128], index: 3, kind: input, shape index: {}]
  %s4 = inlined_call_operand.vmem [shape: bf16[2,80,128], index: 4, kind: input, shape index: {}]
  %s5 = inlined_call_operand.vmem [shape: bf16[128,128], index: 5, kind: input, shape index: {}]
  %s6 = inlined_call_operand.vmem [shape: f32[1,128], index: 6, kind: input, shape index: {}]
  %s7 = inlined_call_operand.vmem [shape: f32[1,128], index: 7, kind: input, shape index: {}]
  %s8 = inlined_call_operand.vmem [shape: f32[2,80,128], index: 8, kind: output, shape index: {}]
  %s9 = sld [smem:[#allocation0]]
  $region65: #{basic_block_forward.3} parent=0
    _
  %s11 = ssub.s32 1, %s9
  %s12 = scalar_select 0, %s11, %s9
  loop: start=0, step=1, limit=4
  $region2: #{basic_block_forward.3} parent=0 // loop_pre_header
    _
  $region3: #{basic_block_forward.3} parent=0 // loop_header
    %s14 = sphi 0, %s18
    %p15 = scmp.ge.s32.totalorder %s14, 4
    %s24 = sphi 0, %s26
    %s27 = sphi 0, %s24
    %s28 = sphi 0, %s27
    %s44 = sphi 0, %s28
    %s48 = sphi 0, %s48
    %s50 = sphi 0, %s48
    %s51 = sphi 0, %s50
    %s65 = sphi 0, %s51
    %s69 = sphi 0, %s69
    %s71 = sphi 0, %s69
    %s72 = sphi 0, %s71
    %s86 = sphi 0, %s72
    %s90 = sphi 0, %s90
    %s92 = sphi 0, %s90
    %s93 = sphi 0, %s92
    %s107 = sphi 0, %s93
    %s113 = sphi 0, %s115
    %s116 = sphi 0, %s113
    %s117 = sphi 0, %s116
    %s133 = sphi 0, %s117
    %s137 = sphi 0, %s137
    %s139 = sphi 0, %s137
    %s140 = sphi 0, %s139
    %s154 = sphi 0, %s140
    %s158 = sphi 0, %s158
    %s160 = sphi 0, %s158
    %s161 = sphi 0, %s160
    %s175 = sphi 0, %s161
    %s179 = sphi 0, %s179
    %s181 = sphi 0, %s179
    %s182 = sphi 0, %s181
    %s196 = sphi 0, %s182
    %s202 = sphi 0, %s204
    %s205 = sphi 0, %s202
    %s206 = sphi 0, %s205
    %s222 = sphi 0, %s206
  $region4: #{basic_block_forward.3} parent=0 // loop_header_branch
    %17 = sbr.rel (%p15) target = $region8
  $region5: #{basic_block_forward.3} parent=0 // loop_body
    %s19 = ssub.s32 %s14, 1
    %s20 = ssub.s32 %s14, 2
    %s21 = sadd.s32 %s14, 1
    %s22 = ssub.s32 %s14, %s21
    %p23 = scmp.eq.s32.totalorder %s22, 0
    %s25 = sadd.s32 %s24, 1
    %s26 = scalar_select %p23, %s24, %s25
    %p29 = pneg %p23
    %p30 = scmp.eq.s32.totalorder %s14, 1
    %p31 = por %p29, %p30
    %p32 = scmp.ne.s32.totalorder %s24, %s27
    %p33 = scmp.eq.s32.totalorder %s14, 0
    %p34 = por %p32, %p33
    %p35 = scmp.ne.s32.totalorder %s24, %s27
    %p36 = scmp.eq.s32.totalorder %s19, 1
    %p37 = por %p35, %p36
    %p38 = scmp.ne.s32.totalorder %s27, %s28
    %p39 = scmp.eq.s32.totalorder %s19, 0
    %p40 = por %p38, %p39
    %p41 = scmp.ne.s32.totalorder %s27, %s28
    %p42 = scmp.eq.s32.totalorder %s20, 1
    %p43 = por %p41, %p42
    %p45 = scmp.ne.s32.totalorder %s28, %s44
    %p46 = scmp.eq.s32.totalorder %s20, 0
    %p47 = por %p45, %p46
    %s49 = sadd.s32 %s48, 1
    %p52 = scmp.eq.s32.totalorder %s14, 1
    %p53 = scmp.ne.s32.totalorder %s48, %s50
    %p54 = scmp.eq.s32.totalorder %s14, 0
    %p55 = por %p53, %p54
    %p56 = scmp.ne.s32.totalorder %s48, %s50
    %p57 = scmp.eq.s32.totalorder %s19, 1
    %p58 = por %p56, %p57
    %p59 = scmp.ne.s32.totalorder %s50, %s51
    %p60 = scmp.eq.s32.totalorder %s19, 0
    %p61 = por %p59, %p60
    %p62 = scmp.ne.s32.totalorder %s50, %s51
    %p63 = scmp.eq.s32.totalorder %s20, 1
    %p64 = por %p62, %p63
    %p66 = scmp.ne.s32.totalorder %s51, %s65
    %p67 = scmp.eq.s32.totalorder %s20, 0
    %p68 = por %p66, %p67
    %s70 = sadd.s32 %s69, 1
    %p73 = scmp.eq.s32.totalorder %s14, 1
    %p74 = scmp.ne.s32.totalorder %s69, %s71
    %p75 = scmp.eq.s32.totalorder %s14, 0
    %p76 = por %p74, %p75
    %p77 = scmp.ne.s32.totalorder %s69, %s71
    %p78 = scmp.eq.s32.totalorder %s19, 1
    %p79 = por %p77, %p78
    %p80 = scmp.ne.s32.totalorder %s71, %s72
    %p81 = scmp.eq.s32.totalorder %s19, 0
    %p82 = por %p80, %p81
    %p83 = scmp.ne.s32.totalorder %s71, %s72
    %p84 = scmp.eq.s32.totalorder %s20, 1
    %p85 = por %p83, %p84
    %p87 = scmp.ne.s32.totalorder %s72, %s86
    %p88 = scmp.eq.s32.totalorder %s20, 0
    %p89 = por %p87, %p88
    %s91 = sadd.s32 %s90, 1
    %p94 = scmp.eq.s32.totalorder %s14, 1
    %p95 = scmp.ne.s32.totalorder %s90, %s92
    %p96 = scmp.eq.s32.totalorder %s14, 0
    %p97 = por %p95, %p96
    %p98 = scmp.ne.s32.totalorder %s90, %s92
    %p99 = scmp.eq.s32.totalorder %s19, 1
    %p100 = por %p98, %p99
    %p101 = scmp.ne.s32.totalorder %s92, %s93
    %p102 = scmp.eq.s32.totalorder %s19, 0
    %p103 = por %p101, %p102
    %p104 = scmp.ne.s32.totalorder %s92, %s93
    %p105 = scmp.eq.s32.totalorder %s20, 1
    %p106 = por %p104, %p105
    %p108 = scmp.ne.s32.totalorder %s93, %s107
    %p109 = scmp.eq.s32.totalorder %s20, 0
    %p110 = por %p108, %p109
    %s111 = ssub.s32 %s14, %s21
    %p112 = scmp.eq.s32.totalorder %s111, 0
    %s114 = sadd.s32 %s113, 1
    %s115 = scalar_select %p112, %s113, %s114
    %p118 = pneg %p112
    %p119 = scmp.eq.s32.totalorder %s14, 1
    %p120 = por %p118, %p119
    %p121 = scmp.ne.s32.totalorder %s113, %s116
    %p122 = scmp.eq.s32.totalorder %s14, 0
    %p123 = por %p121, %p122
    %p124 = scmp.ne.s32.totalorder %s113, %s116
    %p125 = scmp.eq.s32.totalorder %s19, 1
    %p126 = por %p124, %p125
    %p127 = scmp.ne.s32.totalorder %s116, %s117
    %p128 = scmp.eq.s32.totalorder %s19, 0
    %p129 = por %p127, %p128
    %p130 = scmp.ne.s32.totalorder %s116, %s117
    %p131 = scmp.eq.s32.totalorder %s20, 1
    %p132 = por %p130, %p131
    %p134 = scmp.ne.s32.totalorder %s117, %s133
    %p135 = scmp.eq.s32.totalorder %s20, 0
    %p136 = por %p134, %p135
    %s138 = sadd.s32 %s137, 1
    %p141 = scmp.eq.s32.totalorder %s14, 1
    %p142 = scmp.ne.s32.totalorder %s137, %s139
    %p143 = scmp.eq.s32.totalorder %s14, 0
    %p144 = por %p142, %p143
    %p145 = scmp.ne.s32.totalorder %s137, %s139
    %p146 = scmp.eq.s32.totalorder %s19, 1
    %p147 = por %p145, %p146
    %p148 = scmp.ne.s32.totalorder %s139, %s140
    %p149 = scmp.eq.s32.totalorder %s19, 0
    %p150 = por %p148, %p149
    %p151 = scmp.ne.s32.totalorder %s139, %s140
    %p152 = scmp.eq.s32.totalorder %s20, 1
    %p153 = por %p151, %p152
    %p155 = scmp.ne.s32.totalorder %s140, %s154
    %p156 = scmp.eq.s32.totalorder %s20, 0
    %p157 = por %p155, %p156
    %s159 = sadd.s32 %s158, 1
    %p162 = scmp.eq.s32.totalorder %s14, 1
    %p163 = scmp.ne.s32.totalorder %s158, %s160
    %p164 = scmp.eq.s32.totalorder %s14, 0
    %p165 = por %p163, %p164
    %p166 = scmp.ne.s32.totalorder %s158, %s160
    %p167 = scmp.eq.s32.totalorder %s19, 1
    %p168 = por %p166, %p167
    %p169 = scmp.ne.s32.totalorder %s160, %s161
    %p170 = scmp.eq.s32.totalorder %s19, 0
    %p171 = por %p169, %p170
    %p172 = scmp.ne.s32.totalorder %s160, %s161
    %p173 = scmp.eq.s32.totalorder %s20, 1
    %p174 = por %p172, %p173
    %p176 = scmp.ne.s32.totalorder %s161, %s175
    %p177 = scmp.eq.s32.totalorder %s20, 0
    %p178 = por %p176, %p177
    %s180 = sadd.s32 %s179, 1
    %p183 = scmp.eq.s32.totalorder %s14, 1
    %p184 = scmp.ne.s32.totalorder %s179, %s181
    %p185 = scmp.eq.s32.totalorder %s14, 0
    %p186 = por %p184, %p185
    %p187 = scmp.ne.s32.totalorder %s179, %s181
    %p188 = scmp.eq.s32.totalorder %s19, 1
    %p189 = por %p187, %p188
    %p190 = scmp.ne.s32.totalorder %s181, %s182
    %p191 = scmp.eq.s32.totalorder %s19, 0
    %p192 = por %p190, %p191
    %p193 = scmp.ne.s32.totalorder %s181, %s182
    %p194 = scmp.eq.s32.totalorder %s20, 1
    %p195 = por %p193, %p194
    %p197 = scmp.ne.s32.totalorder %s182, %s196
    %p198 = scmp.eq.s32.totalorder %s20, 0
    %p199 = por %p197, %p198
    %s200 = ssub.s32 %s14, %s21
    %p201 = scmp.eq.s32.totalorder %s200, 0
    %s203 = sadd.s32 %s202, 1
    %s204 = scalar_select %p201, %s202, %s203
    %p207 = pneg %p201
    %p208 = scmp.eq.s32.totalorder %s14, 1
    %p209 = por %p207, %p208
    %p210 = scmp.ne.s32.totalorder %s202, %s205
    %p211 = scmp.eq.s32.totalorder %s14, 0
    %p212 = por %p210, %p211
    %p213 = scmp.ne.s32.totalorder %s202, %s205
    %p214 = scmp.eq.s32.totalorder %s19, 1
    %p215 = por %p213, %p214
    %p216 = scmp.ne.s32.totalorder %s205, %s206
    %p217 = scmp.eq.s32.totalorder %s19, 0
    %p218 = por %p216, %p217
    %p219 = scmp.ne.s32.totalorder %s205, %s206
    %p220 = scmp.eq.s32.totalorder %s20, 1
    %p221 = por %p219, %p220
    %p223 = scmp.ne.s32.totalorder %s206, %s222
    %p224 = scmp.eq.s32.totalorder %s20, 0
    %p225 = por %p223, %p224
    %p226 = scmp.le.s32.totalorder 1, %s14
    %p227 = scmp.lt.s32.totalorder %s14, 3
    %p228 = pnand %p226, %p227
    %p229 = pneg %p228
    // Predicated region
    $region9: #{basic_block_forward.3} parent=5 // pred_check
      _
    $region10: #{basic_block_forward.3} parent=5 // pred_check_branch
      %231 = sbr.rel (%p228) target = $region12
    $region11: #{basic_block_forward.3} parent=5 // pred_region
      %s232 = ssub.s32 %s14, 1
      // Predicated region
      $region13: #{basic_block_forward.3} parent=11 // pred_check
        %p233 = pneg %p61
      $region14: #{basic_block_forward.3} parent=11 // pred_check_branch
        %235 = sbr.rel (%p233) target = $region16
      $region15: #{basic_block_forward.3} parent=11 // pred_region
        _
      $region16: #{basic_block_forward.3} parent=11 // pred_fallthru
        _
      // Predicated region
      $region17: #{basic_block_forward.3} parent=11 // pred_check
        %p236 = pneg %p82
      $region18: #{basic_block_forward.3} parent=11 // pred_check_branch
        %238 = sbr.rel (%p236) target = $region20
      $region19: #{basic_block_forward.3} parent=11 // pred_region
        _
      $region20: #{basic_block_forward.3} parent=11 // pred_fallthru
        _
      // Predicated region
      $region21: #{basic_block_forward.3} parent=11 // pred_check
        %p239 = pneg %p103
      $region22: #{basic_block_forward.3} parent=11 // pred_check_branch
        %241 = sbr.rel (%p239) target = $region24
      $region23: #{basic_block_forward.3} parent=11 // pred_region
        _
      $region24: #{basic_block_forward.3} parent=11 // pred_fallthru
        _
      // Predicated region
      $region25: #{basic_block_forward.3} parent=11 // pred_check
        %p242 = pneg %p150
      $region26: #{basic_block_forward.3} parent=11 // pred_check_branch
        %244 = sbr.rel (%p242) target = $region28
      $region27: #{basic_block_forward.3} parent=11 // pred_region
        _
      $region28: #{basic_block_forward.3} parent=11 // pred_fallthru
        _
      // Predicated region
      $region29: #{basic_block_forward.3} parent=11 // pred_check
        %p245 = pneg %p171
      $region30: #{basic_block_forward.3} parent=11 // pred_check_branch
        %247 = sbr.rel (%p245) target = $region32
      $region31: #{basic_block_forward.3} parent=11 // pred_region
        _
      $region32: #{basic_block_forward.3} parent=11 // pred_fallthru
        _
      // Predicated region
      $region33: #{basic_block_forward.3} parent=11 // pred_check
        %p248 = pneg %p192
      $region34: #{basic_block_forward.3} parent=11 // pred_check_branch
        %250 = sbr.rel (%p248) target = $region36
      $region35: #{basic_block_forward.3} parent=11 // pred_region
        _
      $region36: #{basic_block_forward.3} parent=11 // pred_fallthru
        _
    $region12: #{basic_block_forward.3} parent=5 // pred_fallthru
      _
    %p251 = scmp.lt.s32.totalorder %s14, 2
    // Predicated region
    $region37: #{basic_block_forward.3} parent=5 // pred_check
      %p252 = pneg %p251
    $region38: #{basic_block_forward.3} parent=5 // pred_check_branch
      %254 = sbr.rel (%p252) target = $region40
    $region39: #{basic_block_forward.3} parent=5 // pred_region
      // Predicated region
      $region41: #{basic_block_forward.3} parent=39 // pred_check
        %p255 = pneg %p34
      $region42: #{basic_block_forward.3} parent=39 // pred_check_branch
        %257 = sbr.rel (%p255) target = $region44
      $region43: #{basic_block_forward.3} parent=39 // pred_region
        %p258 = scmp.lt.s32.totalorder %s14, 1
        %s259 = scalar_select %p258, %s14, 1
        %s260 = smul.addr %s259, 14
        %s261 = smul.addr %s260, 4
        %s262 = scalar_lea.vmem %s0, %s261
      $region44: #{basic_block_forward.3} parent=39 // pred_fallthru
        _
      // Predicated region
      $region45: #{basic_block_forward.3} parent=39 // pred_check
        %p263 = pneg %p123
      $region46: #{basic_block_forward.3} parent=39 // pred_check_branch
        %265 = sbr.rel (%p263) target = $region48
      $region47: #{basic_block_forward.3} parent=39 // pred_region
        %p266 = scmp.lt.s32.totalorder %s14, 1
        %s267 = scalar_select %p266, %s14, 1
        %s268 = smul.addr %s267, 10
        %s269 = smul.addr %s268, 4
        %s270 = scalar_lea.vmem %s4, %s269
      $region48: #{basic_block_forward.3} parent=39 // pred_fallthru
        _
    $region40: #{basic_block_forward.3} parent=5 // pred_fallthru
      _
    %p271 = scmp.le.s32.totalorder 1, %s14
    %p272 = scmp.lt.s32.totalorder %s14, 3
    %p273 = pnand %p271, %p272
    %p274 = pneg %p273
    // Predicated region
    $region49: #{basic_block_forward.3} parent=5 // pred_check
      _
    $region50: #{basic_block_forward.3} parent=5 // pred_check_branch
      %276 = sbr.rel (%p273) target = $region52
    $region51: #{basic_block_forward.3} parent=5 // pred_region
      %s277 = ssub.s32 %s14, 1
      %p278 = scmp.lt.s32.totalorder %s19, 1
      %s279 = scalar_select %p278, %s19, 1
      %s280 = smul.addr %s279, 14
      %s281 = smul.addr %s280, 4
      %s282 = scalar_lea.vmem %s0, %s281
      %p283 = pneg %p40
      %p284 = pneg %p37
      %p285 = pneg %p61
      %p286 = pneg %p58
      %p287 = pneg %p82
      %p288 = pneg %p79
      %p289 = pneg %p103
      %p290 = pneg %p100
      %p291 = scmp.lt.s32.totalorder %s19, 1
      %s292 = scalar_select %p291, %s19, 1
      %s293 = smul.addr %s292, 10
      %s294 = smul.addr %s293, 4
      %s295 = scalar_lea.vmem %s4, %s294
      %p296 = pneg %p129
      %p297 = pneg %p126
      %p298 = pneg %p150
      %p299 = pneg %p147
      %p300 = pneg %p171
      %p301 = pneg %p168
      %p302 = pneg %p192
      %p303 = pneg %p189
      %p304 = pneg %p218
      %p305 = pneg %p215
      %p306 = scmp.lt.s32.totalorder %s19, 1
      %s307 = scalar_select %p306, %s19, 1
      %s308 = smul.addr %s307, 10
      %s309 = smul.addr %s308, 8
      %s310 = scalar_lea.vmem %s8, %s309
      %p311 = scmp.lt.s32.totalorder %s19, 1
      %s312 = scalar_select %p311, %s19, 1
      %s313 = smul.addr %s312, 14
      %s314 = smul.addr %s313, 4
      %s315 = scalar_lea.vmem %s0, %s314
      %p316 = scmp.lt.s32.totalorder %s19, 1
      %s317 = scalar_select %p316, %s19, 1
      %s318 = smul.addr %s317, 10
      %s319 = smul.addr %s318, 4
      %s320 = scalar_lea.vmem %s4, %s319
      %p321 = scmp.lt.s32.totalorder %s19, 1
      %s322 = scalar_select %p321, %s19, 1
      %s323 = smul.addr %s322, 10
      %s324 = smul.addr %s323, 8
      %s325 = scalar_lea.vmem %s8, %s324
      %v327 = vld [vmem:[%s315] sm:$0xf]
      %v328 = vld [vmem:[%s315 + $0x4] sm:$0xf]
      %v329 = vld [vmem:[%s315 + $0x8] sm:$0xf]
      %v330 = vld [vmem:[%s315 + $0xc] sm:$0xf]
      %v331 = vld [vmem:[%s315 + $0x10] sm:$0xf]
      %v332 = vld [vmem:[%s315 + $0x14] sm:$0xf]
      %v333 = vld [vmem:[%s315 + $0x18] sm:$0xf]
      %v334 = vld [vmem:[%s315 + $0x1c] sm:$0xf]
      %v335 = vld [vmem:[%s315 + $0x20] sm:$0xf]
      %v336 = vld [vmem:[%s315 + $0x24] sm:$0xf]
      %v337 = vld [vmem:[%s1] sm:$0xf]
      %v338 = vld [vmem:[%s1 + $0x4] sm:$0xf]
      %v339 = vld [vmem:[%s1 + $0x8] sm:$0xf]
      %v340 = vld [vmem:[%s1 + $0xc] sm:$0xf]
      %v341 = vld [vmem:[%s1 + $0x10] sm:$0xf]
      %v342 = vld [vmem:[%s1 + $0x14] sm:$0xf]
      %v343 = vld [vmem:[%s1 + $0x18] sm:$0xf]
      %v344 = vld [vmem:[%s1 + $0x1c] sm:$0xf]
      %v345 = vld [vmem:[%s1 + $0x20] sm:$0xf]
      %v346 = vld [vmem:[%s1 + $0x24] sm:$0xf]
      %v347 = vld [vmem:[%s1 + $0x28] sm:$0xf]
      %v348 = vld [vmem:[%s1 + $0x2c] sm:$0xf]
      %v349 = vld [vmem:[%s1 + $0x30] sm:$0xf]
      %v350 = vld [vmem:[%s1 + $0x34] sm:$0xf]
      %v351 = vld [vmem:[%s1 + $0x38] sm:$0xf]
      %v352 = vld [vmem:[%s1 + $0x3c] sm:$0xf]
      %v353 = vld [vmem:[%s315 + $0x28] sm:$0x1]
      %s354 = scalar_lea.vmem %s1, 64
      %v355 = vld [vmem:[%s354] sm:$0xf]
      %v356 = vld [vmem:[%s354 + $0x4] sm:$0xf]
      %v357 = vld [vmem:[%s354 + $0x8] sm:$0xf]
      %v358 = vld [vmem:[%s354 + $0xc] sm:$0xf]
      %v359 = vld [vmem:[%s354 + $0x10] sm:$0xf]
      %v360 = vld [vmem:[%s354 + $0x14] sm:$0xf]
      %v361 = vld [vmem:[%s354 + $0x18] sm:$0xf]
      %v362 = vld [vmem:[%s354 + $0x1c] sm:$0xf]
      %v363 = vld [vmem:[%s354 + $0x20] sm:$0xf]
      %v364 = vld [vmem:[%s354 + $0x24] sm:$0xf]
      %v365 = vld [vmem:[%s354 + $0x28] sm:$0xf]
      %v366 = vld [vmem:[%s354 + $0x2c] sm:$0xf]
      %v367 = vld [vmem:[%s354 + $0x30] sm:$0xf]
      %v368 = vld [vmem:[%s354 + $0x34] sm:$0xf]
      %v369 = vld [vmem:[%s354 + $0x38] sm:$0xf]
      %v370 = vld [vmem:[%s354 + $0x3c] sm:$0xf]
      %v382 = vunpack.c.l.b16 %v327
      %v383 = vunpack.c.l.b16 %v328
      %v384 = vunpack.c.l.b16 %v329
      %v385 = vunpack.c.l.b16 %v330
      %v386 = vunpack.c.l.b16 %v331
      %v387 = vunpack.c.l.b16 %v332
      %v388 = vunpack.c.l.b16 %v333
      %v389 = vunpack.c.l.b16 %v334
      %v390 = vunpack.c.l.b16 %v335
      %v391 = vunpack.c.l.b16 %v336
      %v392 = vunpack.c.l.b16 %v353
      %v393 = vpack.c.b16 %v383, %v382
      %v394 = vpack.c.b16 %v385, %v384
      %v395 = vpack.c.b16 %v387, %v386
      %v396 = vpack.c.b16 %v389, %v388
      %v397 = vpack.c.b16 %v391, %v390
      %v398 = vpack.c.b16 %v392, %v392
      %vm399 = vsmask.f32 7424
      %v401 = vshrl.u32 %v393, 16
      %v403 = vshll.u32 %v393, 16
      %v405 = vrot.slane %v403, 1
      %v406 = vor.u32 %v401, %v405
      %v408 = vshll.u32 %v394, 16
      %v410 = vrot.slane %v408, 1
      %v411 = vsel %vm399, %v406, %v410
      %v412 = vshrl.u32 %v394, 16
      %v414 = vor.u32 %v412, %v410
      %v416 = vshll.u32 %v395, 16
      %v418 = vrot.slane %v416, 1
      %v419 = vsel %vm399, %v414, %v418
      %v420 = vshrl.u32 %v395, 16
      %v422 = vor.u32 %v420, %v418
      %v424 = vshll.u32 %v396, 16
      %v426 = vrot.slane %v424, 1
      %v427 = vsel %vm399, %v422, %v426
      %v428 = vshrl.u32 %v396, 16
      %v430 = vor.u32 %v428, %v426
      %v432 = vshll.u32 %v397, 16
      %v434 = vrot.slane %v432, 1
      %v435 = vsel %vm399, %v430, %v434
      %v436 = vshrl.u32 %v397, 16
      %v438 = vor.u32 %v436, %v434
      %v440 = vshll.u32 %v398, 16
      %v442 = vrot.slane %v440, 1
      %v443 = vsel %vm399, %v438, %v442
      %v465 = vunpack.c.l.b16 %v355
      %v466 = vunpack.c.l.b16 %v356
      %v467 = vunpack.c.l.b16 %v357
      %v468 = vunpack.c.l.b16 %v358
      %v469 = vunpack.c.l.b16 %v359
      %v470 = vunpack.c.l.b16 %v360
      %v471 = vunpack.c.l.b16 %v361
      %v472 = vunpack.c.l.b16 %v362
      %v473 = vunpack.c.l.b16 %v363
      %v474 = vunpack.c.l.b16 %v364
      %v475 = vunpack.c.l.b16 %v365
      %v476 = vunpack.c.l.b16 %v366
      %v477 = vunpack.c.l.b16 %v367
      %v478 = vunpack.c.l.b16 %v368
      %v479 = vunpack.c.l.b16 %v369
      %v480 = vunpack.c.l.b16 %v370
      %v481 = vpack.c.b16 %v466, %v465
      %v482 = vpack.c.b16 %v468, %v467
      %v483 = vpack.c.b16 %v470, %v469
      %v484 = vpack.c.b16 %v472, %v471
      %v485 = vpack.c.b16 %v474, %v473
      %v486 = vpack.c.b16 %v476, %v475
      %v487 = vpack.c.b16 %v478, %v477
      %v488 = vpack.c.b16 %v480, %v479
      %497 = vmatprep.subr.bf16.mxu0 0
      %498 = vmatpush1.bf16.msra.mxu0 %v481
      %499 = vmatprep.subr.bf16.mxu0 0
      %500 = vmatpush1.bf16.msra.mxu0 %v482
      %501 = vmatprep.subr.bf16.mxu0 0
      %502 = vmatpush1.bf16.msra.mxu0 %v483
      %503 = vmatprep.subr.bf16.mxu0 0
      %504 = vmatpush1.bf16.msra.mxu0 %v484
      %505 = vmatprep.subr.bf16.mxu0 0
      %506 = vmatpush1.bf16.msra.mxu0 %v485
      %507 = vmatprep.subr.bf16.mxu0 0
      %508 = vmatpush1.bf16.msra.mxu0 %v486
      %509 = vmatprep.subr.bf16.mxu0 0
      %510 = vmatpush1.bf16.msra.mxu0 %v487
      %511 = vmatprep.subr.bf16.mxu0 0
      %512 = vmatpush1.bf16.msra.mxu0 %v488
      %513 = vmatprep.subr.bf16.mxu0 0
      %514 = vmatpush1.bf16.msra.mxu0 0
      %515 = vmatprep.subr.bf16.mxu0 0
      %516 = vmatpush1.bf16.msra.mxu0 0
      %517 = vmatprep.subr.bf16.mxu0 0
      %518 = vmatpush1.bf16.msra.mxu0 0
      %519 = vmatprep.subr.bf16.mxu0 0
      %520 = vmatpush1.bf16.msra.mxu0 0
      %521 = vmatprep.subr.bf16.mxu0 0
      %522 = vmatpush1.bf16.msra.mxu0 0
      %523 = vmatprep.subr.bf16.mxu0 0
      %524 = vmatpush1.bf16.msra.mxu0 0
      %525 = vmatprep.subr.bf16.mxu0 0
      %526 = vmatpush1.bf16.msra.mxu0 0
      %527 = vmatprep.subr.bf16.mxu0 0
      %528 = vmatpush1.bf16.msra.mxu0 0
      %529 = vmatprep.mubr.bf16.mxu0 0
      %530 = vmatmul.mubr.bf16.gmra.mrb[0].mxu0 %v411
      %v531 = vpop.f32.mrb[0].mxu0
      %v532 = vadd.f32 0.0, %v531
      %v533 = vpop.f32.mrb[0].mxu0
      %v534 = vpop.f32.mrb[0].mxu0
      %v535 = vadd.f32 0.0, %v534
      %v536 = vpop.f32.mrb[0].mxu0
      %537 = vmatprep.mubr.bf16.mxu0 0
      %538 = vmatmul.mubr.bf16.gmra.mrb[0].mxu0 %v419
      %v539 = vpop.f32.mrb[0].mxu0
      %v540 = vadd.f32 0.0, %v539
      %v541 = vpop.f32.mrb[0].mxu0
      %v542 = vpop.f32.mrb[0].mxu0
      %v543 = vadd.f32 0.0, %v542
      %v544 = vpop.f32.mrb[0].mxu0
      %545 = vmatprep.mubr.bf16.mxu0 0
      %546 = vmatmul.mubr.bf16.gmra.mrb[0].mxu0 %v427
      %v547 = vpop.f32.mrb[0].mxu0
      %v548 = vadd.f32 0.0, %v547
      %v549 = vpop.f32.mrb[0].mxu0
      %v550 = vpop.f32.mrb[0].mxu0
      %v551 = vadd.f32 0.0, %v550
      %v552 = vpop.f32.mrb[0].mxu0
      %553 = vmatprep.mubr.bf16.mxu0 0
      %554 = vmatmul.mubr.bf16.gmra.mrb[0].mxu0 %v435
      %v555 = vpop.f32.mrb[0].mxu0
      %v556 = vadd.f32 0.0, %v555
      %v557 = vpop.f32.mrb[0].mxu0
      %v558 = vpop.f32.mrb[0].mxu0
      %v559 = vadd.f32 0.0, %v558
      %v560 = vpop.f32.mrb[0].mxu0
      %561 = vmatprep.mubr.bf16.mxu0 0
      %562 = vmatmul.mubr.bf16.gmra.mrb[0].mxu0 %v443
      %v563 = vpop.f32.mrb[0].mxu0
      %v564 = vadd.f32 0.0, %v563
      %v565 = vpop.f32.mrb[0].mxu0
      %v566 = vpop.f32.mrb[0].mxu0
      %v567 = vadd.f32 0.0, %v566
      %v568 = vpop.f32.mrb[0].mxu0
      %569 = vdwg.mxu0
      %v591 = vunpack.c.l.b16 %v337
      %v592 = vunpack.c.l.b16 %v338
      %v593 = vunpack.c.l.b16 %v339
      %v594 = vunpack.c.l.b16 %v340
      %v595 = vunpack.c.l.b16 %v341
      %v596 = vunpack.c.l.b16 %v342
      %v597 = vunpack.c.l.b16 %v343
      %v598 = vunpack.c.l.b16 %v344
      %v599 = vunpack.c.l.b16 %v345
      %v600 = vunpack.c.l.b16 %v346
      %v601 = vunpack.c.l.b16 %v347
      %v602 = vunpack.c.l.b16 %v348
      %v603 = vunpack.c.l.b16 %v349
      %v604 = vunpack.c.l.b16 %v350
      %v605 = vunpack.c.l.b16 %v351
      %v606 = vunpack.c.l.b16 %v352
      %v607 = vpack.c.b16 %v592, %v591
      %v608 = vpack.c.b16 %v594, %v593
      %v609 = vpack.c.b16 %v596, %v595
      %v610 = vpack.c.b16 %v598, %v597
      %v611 = vpack.c.b16 %v600, %v599
      %v612 = vpack.c.b16 %v602, %v601
      %v613 = vpack.c.b16 %v604, %v603
      %v614 = vpack.c.b16 %v606, %v605
      %623 = vmatprep.subr.bf16.mxu0 0
      %624 = vmatpush1.bf16.msra.mxu0 %v607
      %625 = vmatprep.subr.bf16.mxu0 0
      %626 = vmatpush1.bf16.msra.mxu0 %v608
      %627 = vmatprep.subr.bf16.mxu0 0
      %628 = vmatpush1.bf16.msra.mxu0 %v609
      %629 = vmatprep.subr.bf16.mxu0 0
      %630 = vmatpush1.bf16.msra.mxu0 %v610
      %631 = vmatprep.subr.bf16.mxu0 0
      %632 = vmatpush1.bf16.msra.mxu0 %v611
      %633 = vmatprep.subr.bf16.mxu0 0
      %634 = vmatpush1.bf16.msra.mxu0 %v612
      %635 = vmatprep.subr.bf16.mxu0 0
      %636 = vmatpush1.bf16.msra.mxu0 %v613
      %637 = vmatprep.subr.bf16.mxu0 0
      %638 = vmatpush1.bf16.msra.mxu0 %v614
      %639 = vmatprep.subr.bf16.mxu0 0
      %640 = vmatpush1.bf16.msra.mxu0 0
      %641 = vmatprep.subr.bf16.mxu0 0
      %642 = vmatpush1.bf16.msra.mxu0 0
      %643 = vmatprep.subr.bf16.mxu0 0
      %644 = vmatpush1.bf16.msra.mxu0 0
      %645 = vmatprep.subr.bf16.mxu0 0
      %646 = vmatpush1.bf16.msra.mxu0 0
      %647 = vmatprep.subr.bf16.mxu0 0
      %648 = vmatpush1.bf16.msra.mxu0 0
      %649 = vmatprep.subr.bf16.mxu0 0
      %650 = vmatpush1.bf16.msra.mxu0 0
      %651 = vmatprep.subr.bf16.mxu0 0
      %652 = vmatpush1.bf16.msra.mxu0 0
      %653 = vmatprep.subr.bf16.mxu0 0
      %654 = vmatpush1.bf16.msra.mxu0 0
      %655 = vmatprep.mubr.bf16.mxu0 0
      %656 = vmatmul.mubr.bf16.gmra.mrb[0].mxu0 %v393
      %v657 = vpop.f32.mrb[0].mxu0
      %v658 = vadd.f32 %v532, %v657
      %v659 = vpop.f32.mrb[0].mxu0
      %v660 = vpop.f32.mrb[0].mxu0
      %v661 = vadd.f32 %v535, %v660
      %v662 = vpop.f32.mrb[0].mxu0
      %663 = vmatprep.mubr.bf16.mxu0 0
      %664 = vmatmul.mubr.bf16.gmra.mrb[0].mxu0 %v394
      %v665 = vpop.f32.mrb[0].mxu0
      %v666 = vadd.f32 %v540, %v665
      %v667 = vpop.f32.mrb[0].mxu0
      %v668 = vpop.f32.mrb[0].mxu0
      %v669 = vadd.f32 %v543, %v668
      %v670 = vpop.f32.mrb[0].mxu0
      %671 = vmatprep.mubr.bf16.mxu0 0
      %672 = vmatmul.mubr.bf16.gmra.mrb[0].mxu0 %v395
      %v673 = vpop.f32.mrb[0].mxu0
      %v674 = vadd.f32 %v548, %v673
      %v675 = vpop.f32.mrb[0].mxu0
      %v676 = vpop.f32.mrb[0].mxu0
      %v677 = vadd.f32 %v551, %v676
      %v678 = vpop.f32.mrb[0].mxu0
      %679 = vmatprep.mubr.bf16.mxu0 0
      %680 = vmatmul.mubr.bf16.gmra.mrb[0].mxu0 %v396
      %v681 = vpop.f32.mrb[0].mxu0
      %v682 = vadd.f32 %v556, %v681
      %v683 = vpop.f32.mrb[0].mxu0
      %v684 = vpop.f32.mrb[0].mxu0
      %v685 = vadd.f32 %v559, %v684
      %v686 = vpop.f32.mrb[0].mxu0
      %687 = vmatprep.mubr.bf16.mxu0 0
      %688 = vmatmul.mubr.bf16.gmra.mrb[0].mxu0 %v397
      %v689 = vpop.f32.mrb[0].mxu0
      %v690 = vadd.f32 %v564, %v689
      %v691 = vpop.f32.mrb[0].mxu0
      %v692 = vpop.f32.mrb[0].mxu0
      %v693 = vadd.f32 %v567, %v692
      %v694 = vpop.f32.mrb[0].mxu0
      %695 = vdwg.mxu0
      %v696 = vld [vmem:[%s315] sm:$0xe]
      %s697 = scalar_lea.vmem %s1, 128
      %v698 = vld [vmem:[%s697] sm:$0xf]
      %v699 = vld [vmem:[%s697 + $0x4] sm:$0xf]
      %v700 = vld [vmem:[%s697 + $0x8] sm:$0xf]
      %v701 = vld [vmem:[%s697 + $0xc] sm:$0xf]
      %v702 = vld [vmem:[%s697 + $0x10] sm:$0xf]
      %v703 = vld [vmem:[%s697 + $0x14] sm:$0xf]
      %v704 = vld [vmem:[%s697 + $0x18] sm:$0xf]
      %v705 = vld [vmem:[%s697 + $0x1c] sm:$0xf]
      %v706 = vld [vmem:[%s697 + $0x20] sm:$0xf]
      %v707 = vld [vmem:[%s697 + $0x24] sm:$0xf]
      %v708 = vld [vmem:[%s697 + $0x28] sm:$0xf]
      %v709 = vld [vmem:[%s697 + $0x2c] sm:$0xf]
      %v710 = vld [vmem:[%s697 + $0x30] sm:$0xf]
      %v711 = vld [vmem:[%s697 + $0x34] sm:$0xf]
      %v712 = vld [vmem:[%s697 + $0x38] sm:$0xf]
      %v713 = vld [vmem:[%s697 + $0x3c] sm:$0xf]
      %v715 = vunpack.c.l.b16 %v696
      %v716 = vpack.c.b16 %v383, %v715
      %vm717 = vcmask 1046528
      %v718 = vrot.slane %v716, 1
      %v719 = vrot.slane %v394, 1
      %v720 = vsel %vm717, %v718, %v719
      %v721 = vrot.slane %v395, 1
      %v722 = vsel %vm717, %v719, %v721
      %v723 = vrot.slane %v396, 1
      %v724 = vsel %vm717, %v721, %v723
      %v725 = vrot.slane %v397, 1
      %v726 = vsel %vm717, %v723, %v725
      %v727 = vrot.slane %v398, 1
      %v728 = vsel %vm717, %v725, %v727
      %v750 = vunpack.c.l.b16 %v698
      %v751 = vunpack.c.l.b16 %v699
      %v752 = vunpack.c.l.b16 %v700
      %v753 = vunpack.c.l.b16 %v701
      %v754 = vunpack.c.l.b16 %v702
      %v755 = vunpack.c.l.b16 %v703
      %v756 = vunpack.c.l.b16 %v704
      %v757 = vunpack.c.l.b16 %v705
      %v758 = vunpack.c.l.b16 %v706
      %v759 = vunpack.c.l.b16 %v707
      %v760 = vunpack.c.l.b16 %v708
      %v761 = vunpack.c.l.b16 %v709
      %v762 = vunpack.c.l.b16 %v710
      %v763 = vunpack.c.l.b16 %v711
      %v764 = vunpack.c.l.b16 %v712
      %v765 = vunpack.c.l.b16 %v713
      %v766 = vpack.c.b16 %v751, %v750
      %v767 = vpack.c.b16 %v753, %v752
      %v768 = vpack.c.b16 %v755, %v754
      %v769 = vpack.c.b16 %v757, %v756
      %v770 = vpack.c.b16 %v759, %v758
      %v771 = vpack.c.b16 %v761, %v760
      %v772 = vpack.c.b16 %v763, %v762
      %v773 = vpack.c.b16 %v765, %v764
      %782 = vmatprep.subr.bf16.mxu0 0
      %783 = vmatpush1.bf16.msra.mxu0 %v766
      %784 = vmatprep.subr.bf16.mxu0 0
      %785 = vmatpush1.bf16.msra.mxu0 %v767
      %786 = vmatprep.subr.bf16.mxu0 0
      %787 = vmatpush1.bf16.msra.mxu0 %v768
      %788 = vmatprep.subr.bf16.mxu0 0
      %789 = vmatpush1.bf16.msra.mxu0 %v769
      %790 = vmatprep.subr.bf16.mxu0 0
      %791 = vmatpush1.bf16.msra.mxu0 %v770
      %792 = vmatprep.subr.bf16.mxu0 0
      %793 = vmatpush1.bf16.msra.mxu0 %v771
      %794 = vmatprep.subr.bf16.mxu0 0
      %795 = vmatpush1.bf16.msra.mxu0 %v772
      %796 = vmatprep.subr.bf16.mxu0 0
      %797 = vmatpush1.bf16.msra.mxu0 %v773
      %798 = vmatprep.subr.bf16.mxu0 0
      %799 = vmatpush1.bf16.msra.mxu0 0
      %800 = vmatprep.subr.bf16.mxu0 0
      %801 = vmatpush1.bf16.msra.mxu0 0
      %802 = vmatprep.subr.bf16.mxu0 0
      %803 = vmatpush1.bf16.msra.mxu0 0
      %804 = vmatprep.subr.bf16.mxu0 0
      %805 = vmatpush1.bf16.msra.mxu0 0
      %806 = vmatprep.subr.bf16.mxu0 0
      %807 = vmatpush1.bf16.msra.mxu0 0
      %808 = vmatprep.subr.bf16.mxu0 0
      %809 = vmatpush1.bf16.msra.mxu0 0
      %810 = vmatprep.subr.bf16.mxu0 0
      %811 = vmatpush1.bf16.msra.mxu0 0
      %812 = vmatprep.subr.bf16.mxu0 0
      %813 = vmatpush1.bf16.msra.mxu0 0
      %814 = vmatprep.mubr.bf16.mxu0 0
      %815 = vmatmul.mubr.bf16.gmra.mrb[0].mxu0 %v720
      %v816 = vpop.f32.mrb[0].mxu0
      %v817 = vadd.f32 0.0, %v816
      %v818 = vpop.f32.mrb[0].mxu0
      %v819 = vpop.f32.mrb[0].mxu0
      %v820 = vadd.f32 0.0, %v819
      %v821 = vpop.f32.mrb[0].mxu0
      %822 = vmatprep.mubr.bf16.mxu0 0
      %823 = vmatmul.mubr.bf16.gmra.mrb[0].mxu0 %v722
      %v824 = vpop.f32.mrb[0].mxu0
      %v825 = vadd.f32 0.0, %v824
      %v826 = vpop.f32.mrb[0].mxu0
      %v827 = vpop.f32.mrb[0].mxu0
      %v828 = vadd.f32 0.0, %v827
      %v829 = vpop.f32.mrb[0].mxu0
      %830 = vmatprep.mubr.bf16.mxu0 0
      %831 = vmatmul.mubr.bf16.gmra.mrb[0].mxu0 %v724
      %v832 = vpop.f32.mrb[0].mxu0
      %v833 = vadd.f32 0.0, %v832
      %v834 = vpop.f32.mrb[0].mxu0
      %v835 = vpop.f32.mrb[0].mxu0
      %v836 = vadd.f32 0.0, %v835
      %v837 = vpop.f32.mrb[0].mxu0
      %838 = vmatprep.mubr.bf16.mxu0 0
      %839 = vmatmul.mubr.bf16.gmra.mrb[0].mxu0 %v726
      %v840 = vpop.f32.mrb[0].mxu0
      %v841 = vadd.f32 0.0, %v840
      %v842 = vpop.f32.mrb[0].mxu0
      %v843 = vpop.f32.mrb[0].mxu0
      %v844 = vadd.f32 0.0, %v843
      %v845 = vpop.f32.mrb[0].mxu0
      %846 = vmatprep.mubr.bf16.mxu0 0
      %847 = vmatmul.mubr.bf16.gmra.mrb[0].mxu0 %v728
      %v848 = vpop.f32.mrb[0].mxu0
      %v849 = vadd.f32 0.0, %v848
      %v850 = vpop.f32.mrb[0].mxu0
      %v851 = vpop.f32.mrb[0].mxu0
      %v852 = vadd.f32 0.0, %v851
      %v853 = vpop.f32.mrb[0].mxu0
      %854 = vdwg.mxu0
      %v855 = vadd.f32 %v658, %v817
      %v856 = vadd.f32 %v661, %v820
      %v857 = vadd.f32 %v666, %v825
      %v858 = vadd.f32 %v669, %v828
      %v859 = vadd.f32 %v674, %v833
      %v860 = vadd.f32 %v677, %v836
      %v861 = vadd.f32 %v682, %v841
      %v862 = vadd.f32 %v685, %v844
      %v863 = vadd.f32 %v690, %v849
      %v864 = vadd.f32 %v693, %v852
      %v865 = vld [vmem:[%s315 + $0x4] sm:$0xe]
      %v866 = vld [vmem:[%s315 + $0x8] sm:$0xf]
      %v867 = vld [vmem:[%s315 + $0xc] sm:$0xf]
      %v868 = vld [vmem:[%s315 + $0x10] sm:$0xf]
      %v869 = vld [vmem:[%s315 + $0x14] sm:$0xf]
      %v870 = vld [vmem:[%s315 + $0x18] sm:$0xf]
      %v871 = vld [vmem:[%s315 + $0x1c] sm:$0xf]
      %v872 = vld [vmem:[%s315 + $0x20] sm:$0xf]
      %v873 = vld [vmem:[%s315 + $0x24] sm:$0xf]
      %v874 = vld [vmem:[%s315 + $0x28] sm:$0xf]
      %v875 = vld [vmem:[%s315 + $0x2c] sm:$0x1]
      %s876 = scalar_lea.vmem %s1, 192
      %v877 = vld [vmem:[%s876] sm:$0xf]
      %v878 = vld [vmem:[%s876 + $0x4] sm:$0xf]
      %v879 = vld [vmem:[%s876 + $0x8] sm:$0xf]
      %v880 = vld [vmem:[%s876 + $0xc] sm:$0xf]
      %v881 = vld [vmem:[%s876 + $0x10] sm:$0xf]
      %v882 = vld [vmem:[%s876 + $0x14] sm:$0xf]
      %v883 = vld [vmem:[%s876 + $0x18] sm:$0xf]
      %v884 = vld [vmem:[%s876 + $0x1c] sm:$0xf]
      %v885 = vld [vmem:[%s876 + $0x20] sm:$0xf]
      %v886 = vld [vmem:[%s876 + $0x24] sm:$0xf]
      %v887 = vld [vmem:[%s876 + $0x28] sm:$0xf]
      %v888 = vld [vmem:[%s876 + $0x2c] sm:$0xf]
      %v889 = vld [vmem:[%s876 + $0x30] sm:$0xf]
      %v890 = vld [vmem:[%s876 + $0x34] sm:$0xf]
      %v891 = vld [vmem:[%s876 + $0x38] sm:$0xf]
      %v892 = vld [vmem:[%s876 + $0x3c] sm:$0xf]
      %v904 = vunpack.c.l.b16 %v865
      %v905 = vunpack.c.l.b16 %v866
      %v906 = vunpack.c.l.b16 %v867
      %v907 = vunpack.c.l.b16 %v868
      %v908 = vunpack.c.l.b16 %v869
      %v909 = vunpack.c.l.b16 %v870
      %v910 = vunpack.c.l.b16 %v871
      %v911 = vunpack.c.l.b16 %v872
      %v912 = vunpack.c.l.b16 %v873
      %v913 = vunpack.c.l.b16 %v874
      %v914 = vunpack.c.l.b16 %v875
      %v915 = vpack.c.b16 %v905, %v904
      %v916 = vpack.c.b16 %v907, %v906
      %v917 = vpack.c.b16 %v909, %v908
      %v918 = vpack.c.b16 %v911, %v910
      %v919 = vpack.c.b16 %v913, %v912
      %v920 = vpack.c.b16 %v914, %v914
      %v921 = vrot.slane %v915, 1
      %v922 = vrot.slane %v916, 1
      %v923 = vsel %vm717, %v921, %v922
      %v924 = vrot.slane %v917, 1
      %v925 = vsel %vm717, %v922, %v924
      %v926 = vrot.slane %v918, 1
      %v927 = vsel %vm717, %v924, %v926
      %v928 = vrot.slane %v919, 1
      %v929 = vsel %vm717, %v926, %v928
      %v930 = vrot.slane %v920, 1
      %v931 = vsel %vm717, %v928, %v930
      %v953 = vunpack.c.l.b16 %v877
      %v954 = vunpack.c.l.b16 %v878
      %v955 = vunpack.c.l.b16 %v879
      %v956 = vunpack.c.l.b16 %v880
      %v957 = vunpack.c.l.b16 %v881
      %v958 = vunpack.c.l.b16 %v882
      %v959 = vunpack.c.l.b16 %v883
      %v960 = vunpack.c.l.b16 %v884
      %v961 = vunpack.c.l.b16 %v885
      %v962 = vunpack.c.l.b16 %v886
      %v963 = vunpack.c.l.b16 %v887
      %v964 = vunpack.c.l.b16 %v888
      %v965 = vunpack.c.l.b16 %v889
      %v966 = vunpack.c.l.b16 %v890
      %v967 = vunpack.c.l.b16 %v891
      %v968 = vunpack.c.l.b16 %v892
      %v969 = vpack.c.b16 %v954, %v953
      %v970 = vpack.c.b16 %v956, %v955
      %v971 = vpack.c.b16 %v958, %v957
      %v972 = vpack.c.b16 %v960, %v959
      %v973 = vpack.c.b16 %v962, %v961
      %v974 = vpack.c.b16 %v964, %v963
      %v975 = vpack.c.b16 %v966, %v965
      %v976 = vpack.c.b16 %v968, %v967
      %985 = vmatprep.subr.bf16.mxu0 0
      %986 = vmatpush1.bf16.msra.mxu0 %v969
      %987 = vmatprep.subr.bf16.mxu0 0
      %988 = vmatpush1.bf16.msra.mxu0 %v970
      %989 = vmatprep.subr.bf16.mxu0 0
      %990 = vmatpush1.bf16.msra.mxu0 %v971
      %991 = vmatprep.subr.bf16.mxu0 0
      %992 = vmatpush1.bf16.msra.mxu0 %v972
      %993 = vmatprep.subr.bf16.mxu0 0
      %994 = vmatpush1.bf16.msra.mxu0 %v973
      %995 = vmatprep.subr.bf16.mxu0 0
      %996 = vmatpush1.bf16.msra.mxu0 %v974
      %997 = vmatprep.subr.bf16.mxu0 0
      %998 = vmatpush1.bf16.msra.mxu0 %v975
      %999 = vmatprep.subr.bf16.mxu0 0
      %1000 = vmatpush1.bf16.msra.mxu0 %v976
      %1001 = vmatprep.subr.bf16.mxu0 0
      %1002 = vmatpush1.bf16.msra.mxu0 0
      %1003 = vmatprep.subr.bf16.mxu0 0
      %1004 = vmatpush1.bf16.msra.mxu0 0
      %1005 = vmatprep.subr.bf16.mxu0 0
      %1006 = vmatpush1.bf16.msra.mxu0 0
      %1007 = vmatprep.subr.bf16.mxu0 0
      %1008 = vmatpush1.bf16.msra.mxu0 0
      %1009 = vmatprep.subr.bf16.mxu0 0
      %1010 = vmatpush1.bf16.msra.mxu0 0
      %1011 = vmatprep.subr.bf16.mxu0 0
      %1012 = vmatpush1.bf16.msra.mxu0 0
      %1013 = vmatprep.subr.bf16.mxu0 0
      %1014 = vmatpush1.bf16.msra.mxu0 0
      %1015 = vmatprep.subr.bf16.mxu0 0
      %1016 = vmatpush1.bf16.msra.mxu0 0
      %1017 = vmatprep.mubr.bf16.mxu0 0
      %1018 = vmatmul.mubr.bf16.gmra.mrb[0].mxu0 %v923
      %v1019 = vpop.f32.mrb[0].mxu0
      %v1020 = vadd.f32 0.0, %v1019
      %v1021 = vpop.f32.mrb[0].mxu0
      %v1022 = vpop.f32.mrb[0].mxu0
      %v1023 = vadd.f32 0.0, %v1022
      %v1024 = vpop.f32.mrb[0].mxu0
      %1025 = vmatprep.mubr.bf16.mxu0 0
      %1026 = vmatmul.mubr.bf16.gmra.mrb[0].mxu0 %v925
      %v1027 = vpop.f32.mrb[0].mxu0
      %v1028 = vadd.f32 0.0, %v1027
      %v1029 = vpop.f32.mrb[0].mxu0
      %v1030 = vpop.f32.mrb[0].mxu0
      %v1031 = vadd.f32 0.0, %v1030
      %v1032 = vpop.f32.mrb[0].mxu0
      %1033 = vmatprep.mubr.bf16.mxu0 0
      %1034 = vmatmul.mubr.bf16.gmra.mrb[0].mxu0 %v927
      %v1035 = vpop.f32.mrb[0].mxu0
      %v1036 = vadd.f32 0.0, %v1035
      %v1037 = vpop.f32.mrb[0].mxu0
      %v1038 = vpop.f32.mrb[0].mxu0
      %v1039 = vadd.f32 0.0, %v1038
      %v1040 = vpop.f32.mrb[0].mxu0
      %1041 = vmatprep.mubr.bf16.mxu0 0
      %1042 = vmatmul.mubr.bf16.gmra.mrb[0].mxu0 %v929
      %v1043 = vpop.f32.mrb[0].mxu0
      %v1044 = vadd.f32 0.0, %v1043
      %v1045 = vpop.f32.mrb[0].mxu0
      %v1046 = vpop.f32.mrb[0].mxu0
      %v1047 = vadd.f32 0.0, %v1046
      %v1048 = vpop.f32.mrb[0].mxu0
      %1049 = vmatprep.mubr.bf16.mxu0 0
      %1050 = vmatmul.mubr.bf16.gmra.mrb[0].mxu0 %v931
      %v1051 = vpop.f32.mrb[0].mxu0
      %v1052 = vadd.f32 0.0, %v1051
      %v1053 = vpop.f32.mrb[0].mxu0
      %v1054 = vpop.f32.mrb[0].mxu0
      %v1055 = vadd.f32 0.0, %v1054
      %v1056 = vpop.f32.mrb[0].mxu0
      %1057 = vdwg.mxu0
      %v1058 = vadd.f32 %v855, %v1020
      %v1059 = vadd.f32 %v856, %v1023
      %v1060 = vadd.f32 %v857, %v1028
      %v1061 = vadd.f32 %v858, %v1031
      %v1062 = vadd.f32 %v859, %v1036
      %v1063 = vadd.f32 %v860, %v1039
      %v1064 = vadd.f32 %v861, %v1044
      %v1065 = vadd.f32 %v862, %v1047
      %v1066 = vadd.f32 %v863, %v1052
      %v1067 = vadd.f32 %v864, %v1055
      %v1068 = vld [vmem:[%s315 + $0x2c] sm:$0x3]
      %s1069 = scalar_lea.vmem %s1, 256
      %v1070 = vld [vmem:[%s1069] sm:$0xf]
      %v1071 = vld [vmem:[%s1069 + $0x4] sm:$0xf]
      %v1072 = vld [vmem:[%s1069 + $0x8] sm:$0xf]
      %v1073 = vld [vmem:[%s1069 + $0xc] sm:$0xf]
      %v1074 = vld [vmem:[%s1069 + $0x10] sm:$0xf]
      %v1075 = vld [vmem:[%s1069 + $0x14] sm:$0xf]
      %v1076 = vld [vmem:[%s1069 + $0x18] sm:$0xf]
      %v1077 = vld [vmem:[%s1069 + $0x1c] sm:$0xf]
      %v1078 = vld [vmem:[%s1069 + $0x20] sm:$0xf]
      %v1079 = vld [vmem:[%s1069 + $0x24] sm:$0xf]
      %v1080 = vld [vmem:[%s1069 + $0x28] sm:$0xf]
      %v1081 = vld [vmem:[%s1069 + $0x2c] sm:$0xf]
      %v1082 = vld [vmem:[%s1069 + $0x30] sm:$0xf]
      %v1083 = vld [vmem:[%s1069 + $0x34] sm:$0xf]
      %v1084 = vld [vmem:[%s1069 + $0x38] sm:$0xf]
      %v1085 = vld [vmem:[%s1069 + $0x3c] sm:$0xf]
      %v1087 = vunpack.c.l.b16 %v1068
      %v1088 = vpack.c.b16 %v1087, %v1087
      %vm1089 = vsmask.f32 6400
      %v1091 = vshrl.u32 %v915, 16
      %v1093 = vrot.slane %v1091, 1
      %v1094 = vshll.u32 %v915, 16
      %v1096 = vrot.slane %v1094, 2
      %v1097 = vor.u32 %v1093, %v1096
      %v1099 = vshrl.u32 %v916, 16
      %v1101 = vrot.slane %v1099, 1
      %v1102 = vshll.u32 %v916, 16
      %v1104 = vrot.slane %v1102, 2
      %v1105 = vor.u32 %v1101, %v1104
      %v1106 = vsel %vm1089, %v1097, %v1105
      %v1108 = vshrl.u32 %v917, 16
      %v1110 = vrot.slane %v1108, 1
      %v1111 = vshll.u32 %v917, 16
      %v1113 = vrot.slane %v1111, 2
      %v1114 = vor.u32 %v1110, %v1113
      %v1115 = vsel %vm1089, %v1105, %v1114
      %v1117 = vshrl.u32 %v918, 16
      %v1119 = vrot.slane %v1117, 1
      %v1120 = vshll.u32 %v918, 16
      %v1122 = vrot.slane %v1120, 2
      %v1123 = vor.u32 %v1119, %v1122
      %v1124 = vsel %vm1089, %v1114, %v1123
      %v1126 = vshrl.u32 %v919, 16
      %v1128 = vrot.slane %v1126, 1
      %v1129 = vshll.u32 %v919, 16
      %v1131 = vrot.slane %v1129, 2
      %v1132 = vor.u32 %v1128, %v1131
      %v1133 = vsel %vm1089, %v1123, %v1132
      %v1135 = vshrl.u32 %v1088, 16
      %v1137 = vrot.slane %v1135, 1
      %v1138 = vshll.u32 %v1088, 16
      %v1140 = vrot.slane %v1138, 2
      %v1141 = vor.u32 %v1137, %v1140
      %v1142 = vsel %vm1089, %v1132, %v1141
      %v1164 = vunpack.c.l.b16 %v1070
      %v1165 = vunpack.c.l.b16 %v1071
      %v1166 = vunpack.c.l.b16 %v1072
      %v1167 = vunpack.c.l.b16 %v1073
      %v1168 = vunpack.c.l.b16 %v1074
      %v1169 = vunpack.c.l.b16 %v1075
      %v1170 = vunpack.c.l.b16 %v1076
      %v1171 = vunpack.c.l.b16 %v1077
      %v1172 = vunpack.c.l.b16 %v1078
      %v1173 = vunpack.c.l.b16 %v1079
      %v1174 = vunpack.c.l.b16 %v1080
      %v1175 = vunpack.c.l.b16 %v1081
      %v1176 = vunpack.c.l.b16 %v1082
      %v1177 = vunpack.c.l.b16 %v1083
      %v1178 = vunpack.c.l.b16 %v1084
      %v1179 = vunpack.c.l.b16 %v1085
      %v1180 = vpack.c.b16 %v1165, %v1164
      %v1181 = vpack.c.b16 %v1167, %v1166
      %v1182 = vpack.c.b16 %v1169, %v1168
      %v1183 = vpack.c.b16 %v1171, %v1170
      %v1184 = vpack.c.b16 %v1173, %v1172
      %v1185 = vpack.c.b16 %v1175, %v1174
      %v1186 = vpack.c.b16 %v1177, %v1176
      %v1187 = vpack.c.b16 %v1179, %v1178
      %1196 = vmatprep.subr.bf16.mxu0 0
      %1197 = vmatpush1.bf16.msra.mxu0 %v1180
      %1198 = vmatprep.subr.bf16.mxu0 0
      %1199 = vmatpush1.bf16.msra.mxu0 %v1181
      %1200 = vmatprep.subr.bf16.mxu0 0
      %1201 = vmatpush1.bf16.msra.mxu0 %v1182
      %1202 = vmatprep.subr.bf16.mxu0 0
      %1203 = vmatpush1.bf16.msra.mxu0 %v1183
      %1204 = vmatprep.subr.bf16.mxu0 0
      %1205 = vmatpush1.bf16.msra.mxu0 %v1184
      %1206 = vmatprep.subr.bf16.mxu0 0
      %1207 = vmatpush1.bf16.msra.mxu0 %v1185
      %1208 = vmatprep.subr.bf16.mxu0 0
      %1209 = vmatpush1.bf16.msra.mxu0 %v1186
      %1210 = vmatprep.subr.bf16.mxu0 0
      %1211 = vmatpush1.bf16.msra.mxu0 %v1187
      %1212 = vmatprep.subr.bf16.mxu0 0
      %1213 = vmatpush1.bf16.msra.mxu0 0
      %1214 = vmatprep.subr.bf16.mxu0 0
      %1215 = vmatpush1.bf16.msra.mxu0 0
      %1216 = vmatprep.subr.bf16.mxu0 0
      %1217 = vmatpush1.bf16.msra.mxu0 0
      %1218 = vmatprep.subr.bf16.mxu0 0
      %1219 = vmatpush1.bf16.msra.mxu0 0
      %1220 = vmatprep.subr.bf16.mxu0 0
      %1221 = vmatpush1.bf16.msra.mxu0 0
      %1222 = vmatprep.subr.bf16.mxu0 0
      %1223 = vmatpush1.bf16.msra.mxu0 0
      %1224 = vmatprep.subr.bf16.mxu0 0
      %1225 = vmatpush1.bf16.msra.mxu0 0
      %1226 = vmatprep.subr.bf16.mxu0 0
      %1227 = vmatpush1.bf16.msra.mxu0 0
      %1228 = vmatprep.mubr.bf16.mxu0 0
      %1229 = vmatmul.mubr.bf16.gmra.mrb[0].mxu0 %v1106
      %v1230 = vpop.f32.mrb[0].mxu0
      %v1231 = vadd.f32 0.0, %v1230
      %v1232 = vpop.f32.mrb[0].mxu0
      %v1233 = vpop.f32.mrb[0].mxu0
      %v1234 = vadd.f32 0.0, %v1233
      %v1235 = vpop.f32.mrb[0].mxu0
      %1236 = vmatprep.mubr.bf16.mxu0 0
      %1237 = vmatmul.mubr.bf16.gmra.mrb[0].mxu0 %v1115
      %v1238 = vpop.f32.mrb[0].mxu0
      %v1239 = vadd.f32 0.0, %v1238
      %v1240 = vpop.f32.mrb[0].mxu0
      %v1241 = vpop.f32.mrb[0].mxu0
      %v1242 = vadd.f32 0.0, %v1241
      %v1243 = vpop.f32.mrb[0].mxu0
      %1244 = vmatprep.mubr.bf16.mxu0 0
      %1245 = vmatmul.mubr.bf16.gmra.mrb[0].mxu0 %v1124
      %v1246 = vpop.f32.mrb[0].mxu0
      %v1247 = vadd.f32 0.0, %v1246
      %v1248 = vpop.f32.mrb[0].mxu0
      %v1249 = vpop.f32.mrb[0].mxu0
      %v1250 = vadd.f32 0.0, %v1249
      %v1251 = vpop.f32.mrb[0].mxu0
      %1252 = vmatprep.mubr.bf16.mxu0 0
      %1253 = vmatmul.mubr.bf16.gmra.mrb[0].mxu0 %v1133
      %v1254 = vpop.f32.mrb[0].mxu0
      %v1255 = vadd.f32 0.0, %v1254
      %v1256 = vpop.f32.mrb[0].mxu0
      %v1257 = vpop.f32.mrb[0].mxu0
      %v1258 = vadd.f32 0.0, %v1257
      %v1259 = vpop.f32.mrb[0].mxu0
      %1260 = vmatprep.mubr.bf16.mxu0 0
      %1261 = vmatmul.mubr.bf16.gmra.mrb[0].mxu0 %v1142
      %v1262 = vpop.f32.mrb[0].mxu0
      %v1263 = vadd.f32 0.0, %v1262
      %v1264 = vpop.f32.mrb[0].mxu0
      %v1265 = vpop.f32.mrb[0].mxu0
      %v1266 = vadd.f32 0.0, %v1265
      %v1267 = vpop.f32.mrb[0].mxu0
      %1268 = vdwg.mxu0
      %v1269 = vadd.f32 %v1058, %v1231
      %v1270 = vadd.f32 %v1059, %v1234
      %v1271 = vadd.f32 %v1060, %v1239
      %v1272 = vadd.f32 %v1061, %v1242
      %v1273 = vadd.f32 %v1062, %v1247
      %v1274 = vadd.f32 %v1063, %v1250
      %v1275 = vadd.f32 %v1064, %v1255
      %v1276 = vadd.f32 %v1065, %v1258
      %v1277 = vadd.f32 %v1066, %v1263
      %v1278 = vadd.f32 %v1067, %v1266
      %v1279 = vld [vmem:[%s315 + $0x4] sm:$0xc]
      %s1280 = scalar_lea.vmem %s1, 320
      %v1281 = vld [vmem:[%s1280] sm:$0xf]
      %v1282 = vld [vmem:[%s1280 + $0x4] sm:$0xf]
      %v1283 = vld [vmem:[%s1280 + $0x8] sm:$0xf]
      %v1284 = vld [vmem:[%s1280 + $0xc] sm:$0xf]
      %v1285 = vld [vmem:[%s1280 + $0x10] sm:$0xf]
      %v1286 = vld [vmem:[%s1280 + $0x14] sm:$0xf]
      %v1287 = vld [vmem:[%s1280 + $0x18] sm:$0xf]
      %v1288 = vld [vmem:[%s1280 + $0x1c] sm:$0xf]
      %v1289 = vld [vmem:[%s1280 + $0x20] sm:$0xf]
      %v1290 = vld [vmem:[%s1280 + $0x24] sm:$0xf]
      %v1291 = vld [vmem:[%s1280 + $0x28] sm:$0xf]
      %v1292 = vld [vmem:[%s1280 + $0x2c] sm:$0xf]
      %v1293 = vld [vmem:[%s1280 + $0x30] sm:$0xf]
      %v1294 = vld [vmem:[%s1280 + $0x34] sm:$0xf]
      %v1295 = vld [vmem:[%s1280 + $0x38] sm:$0xf]
      %v1296 = vld [vmem:[%s1280 + $0x3c] sm:$0xf]
      %v1298 = vunpack.c.l.b16 %v1279
      %v1299 = vpack.c.b16 %v905, %v1298
      %vm1300 = vcmask 1045504
      %v1301 = vrot.slane %v1299, 2
      %v1302 = vrot.slane %v916, 2
      %v1303 = vsel %vm1300, %v1301, %v1302
      %v1304 = vrot.slane %v917, 2
      %v1305 = vsel %vm1300, %v1302, %v1304
      %v1306 = vrot.slane %v918, 2
      %v1307 = vsel %vm1300, %v1304, %v1306
      %v1308 = vrot.slane %v919, 2
      %v1309 = vsel %vm1300, %v1306, %v1308
      %v1310 = vrot.slane %v1088, 2
      %v1311 = vsel %vm1300, %v1308, %v1310
      %v1333 = vunpack.c.l.b16 %v1281
      %v1334 = vunpack.c.l.b16 %v1282
      %v1335 = vunpack.c.l.b16 %v1283
      %v1336 = vunpack.c.l.b16 %v1284
      %v1337 = vunpack.c.l.b16 %v1285
      %v1338 = vunpack.c.l.b16 %v1286
      %v1339 = vunpack.c.l.b16 %v1287
      %v1340 = vunpack.c.l.b16 %v1288
      %v1341 = vunpack.c.l.b16 %v1289
      %v1342 = vunpack.c.l.b16 %v1290
      %v1343 = vunpack.c.l.b16 %v1291
      %v1344 = vunpack.c.l.b16 %v1292
      %v1345 = vunpack.c.l.b16 %v1293
      %v1346 = vunpack.c.l.b16 %v1294
      %v1347 = vunpack.c.l.b16 %v1295
      %v1348 = vunpack.c.l.b16 %v1296
      %v1349 = vpack.c.b16 %v1334, %v1333
      %v1350 = vpack.c.b16 %v1336, %v1335
      %v1351 = vpack.c.b16 %v1338, %v1337
      %v1352 = vpack.c.b16 %v1340, %v1339
      %v1353 = vpack.c.b16 %v1342, %v1341
      %v1354 = vpack.c.b16 %v1344, %v1343
      %v1355 = vpack.c.b16 %v1346, %v1345
      %v1356 = vpack.c.b16 %v1348, %v1347
      %1365 = vmatprep.subr.bf16.mxu0 0
      %1366 = vmatpush1.bf16.msra.mxu0 %v1349
      %1367 = vmatprep.subr.bf16.mxu0 0
      %1368 = vmatpush1.bf16.msra.mxu0 %v1350
      %1369 = vmatprep.subr.bf16.mxu0 0
      %1370 = vmatpush1.bf16.msra.mxu0 %v1351
      %1371 = vmatprep.subr.bf16.mxu0 0
      %1372 = vmatpush1.bf16.msra.mxu0 %v1352
      %1373 = vmatprep.subr.bf16.mxu0 0
      %1374 = vmatpush1.bf16.msra.mxu0 %v1353
      %1375 = vmatprep.subr.bf16.mxu0 0
      %1376 = vmatpush1.bf16.msra.mxu0 %v1354
      %1377 = vmatprep.subr.bf16.mxu0 0
      %1378 = vmatpush1.bf16.msra.mxu0 %v1355
      %1379 = vmatprep.subr.bf16.mxu0 0
      %1380 = vmatpush1.bf16.msra.mxu0 %v1356
      %1381 = vmatprep.subr.bf16.mxu0 0
      %1382 = vmatpush1.bf16.msra.mxu0 0
      %1383 = vmatprep.subr.bf16.mxu0 0
      %1384 = vmatpush1.bf16.msra.mxu0 0
      %1385 = vmatprep.subr.bf16.mxu0 0
      %1386 = vmatpush1.bf16.msra.mxu0 0
      %1387 = vmatprep.subr.bf16.mxu0 0
      %1388 = vmatpush1.bf16.msra.mxu0 0
      %1389 = vmatprep.subr.bf16.mxu0 0
      %1390 = vmatpush1.bf16.msra.mxu0 0
      %1391 = vmatprep.subr.bf16.mxu0 0
      %1392 = vmatpush1.bf16.msra.mxu0 0
      %1393 = vmatprep.subr.bf16.mxu0 0
      %1394 = vmatpush1.bf16.msra.mxu0 0
      %1395 = vmatprep.subr.bf16.mxu0 0
      %1396 = vmatpush1.bf16.msra.mxu0 0
      %1397 = vmatprep.mubr.bf16.mxu0 0
      %1398 = vmatmul.mubr.bf16.gmra.mrb[0].mxu0 %v1303
      %v1399 = vpop.f32.mrb[0].mxu0
      %v1400 = vadd.f32 0.0, %v1399
      %v1401 = vpop.f32.mrb[0].mxu0
      %v1402 = vpop.f32.mrb[0].mxu0
      %v1403 = vadd.f32 0.0, %v1402
      %v1404 = vpop.f32.mrb[0].mxu0
      %1405 = vmatprep.mubr.bf16.mxu0 0
      %1406 = vmatmul.mubr.bf16.gmra.mrb[0].mxu0 %v1305
      %v1407 = vpop.f32.mrb[0].mxu0
      %v1408 = vadd.f32 0.0, %v1407
      %v1409 = vpop.f32.mrb[0].mxu0
      %v1410 = vpop.f32.mrb[0].mxu0
      %v1411 = vadd.f32 0.0, %v1410
      %v1412 = vpop.f32.mrb[0].mxu0
      %1413 = vmatprep.mubr.bf16.mxu0 0
      %1414 = vmatmul.mubr.bf16.gmra.mrb[0].mxu0 %v1307
      %v1415 = vpop.f32.mrb[0].mxu0
      %v1416 = vadd.f32 0.0, %v1415
      %v1417 = vpop.f32.mrb[0].mxu0
      %v1418 = vpop.f32.mrb[0].mxu0
      %v1419 = vadd.f32 0.0, %v1418
      %v1420 = vpop.f32.mrb[0].mxu0
      %1421 = vmatprep.mubr.bf16.mxu0 0
      %1422 = vmatmul.mubr.bf16.gmra.mrb[0].mxu0 %v1309
      %v1423 = vpop.f32.mrb[0].mxu0
      %v1424 = vadd.f32 0.0, %v1423
      %v1425 = vpop.f32.mrb[0].mxu0
      %v1426 = vpop.f32.mrb[0].mxu0
      %v1427 = vadd.f32 0.0, %v1426
      %v1428 = vpop.f32.mrb[0].mxu0
      %1429 = vmatprep.mubr.bf16.mxu0 0
      %1430 = vmatmul.mubr.bf16.gmra.mrb[0].mxu0 %v1311
      %v1431 = vpop.f32.mrb[0].mxu0
      %v1432 = vadd.f32 0.0, %v1431
      %v1433 = vpop.f32.mrb[0].mxu0
      %v1434 = vpop.f32.mrb[0].mxu0
      %v1435 = vadd.f32 0.0, %v1434
      %v1436 = vpop.f32.mrb[0].mxu0
      %1437 = vdwg.mxu0
      %v1438 = vadd.f32 %v1269, %v1400
      %v1439 = vadd.f32 %v1270, %v1403
      %v1440 = vadd.f32 %v1271, %v1408
      %v1441 = vadd.f32 %v1272, %v1411
      %v1442 = vadd.f32 %v1273, %v1416
      %v1443 = vadd.f32 %v1274, %v1419
      %v1444 = vadd.f32 %v1275, %v1424
      %v1445 = vadd.f32 %v1276, %v1427
      %v1446 = vadd.f32 %v1277, %v1432
      %v1447 = vadd.f32 %v1278, %v1435
      %v1448 = vld [vmem:[%s315 + $0x8] sm:$0xc]
      %v1449 = vld [vmem:[%s315 + $0xc] sm:$0xf]
      %v1450 = vld [vmem:[%s315 + $0x10] sm:$0xf]
      %v1451 = vld [vmem:[%s315 + $0x14] sm:$0xf]
      %v1452 = vld [vmem:[%s315 + $0x18] sm:$0xf]
      %v1453 = vld [vmem:[%s315 + $0x1c] sm:$0xf]
      %v1454 = vld [vmem:[%s315 + $0x20] sm:$0xf]
      %v1455 = vld [vmem:[%s315 + $0x24] sm:$0xf]
      %v1456 = vld [vmem:[%s315 + $0x28] sm:$0xf]
      %v1457 = vld [vmem:[%s315 + $0x2c] sm:$0xf]
      %v1458 = vld [vmem:[%s315 + $0x30] sm:$0x3]
      %s1459 = scalar_lea.vmem %s1, 384
      %v1460 = vld [vmem:[%s1459] sm:$0xf]
      %v1461 = vld [vmem:[%s1459 + $0x4] sm:$0xf]
      %v1462 = vld [vmem:[%s1459 + $0x8] sm:$0xf]
      %v1463 = vld [vmem:[%s1459 + $0xc] sm:$0xf]
      %v1464 = vld [vmem:[%s1459 + $0x10] sm:$0xf]
      %v1465 = vld [vmem:[%s1459 + $0x14] sm:$0xf]
      %v1466 = vld [vmem:[%s1459 + $0x18] sm:$0xf]
      %v1467 = vld [vmem:[%s1459 + $0x1c] sm:$0xf]
      %v1468 = vld [vmem:[%s1459 + $0x20] sm:$0xf]
      %v1469 = vld [vmem:[%s1459 + $0x24] sm:$0xf]
      %v1470 = vld [vmem:[%s1459 + $0x28] sm:$0xf]
      %v1471 = vld [vmem:[%s1459 + $0x2c] sm:$0xf]
      %v1472 = vld [vmem:[%s1459 + $0x30] sm:$0xf]
      %v1473 = vld [vmem:[%s1459 + $0x34] sm:$0xf]
      %v1474 = vld [vmem:[%s1459 + $0x38] sm:$0xf]
      %v1475 = vld [vmem:[%s1459 + $0x3c] sm:$0xf]
      %v1487 = vunpack.c.l.b16 %v1448
      %v1488 = vunpack.c.l.b16 %v1449
      %v1489 = vunpack.c.l.b16 %v1450
      %v1490 = vunpack.c.l.b16 %v1451
      %v1491 = vunpack.c.l.b16 %v1452
      %v1492 = vunpack.c.l.b16 %v1453
      %v1493 = vunpack.c.l.b16 %v1454
      %v1494 = vunpack.c.l.b16 %v1455
      %v1495 = vunpack.c.l.b16 %v1456
      %v1496 = vunpack.c.l.b16 %v1457
      %v1497 = vunpack.c.l.b16 %v1458
      %v1498 = vpack.c.b16 %v1488, %v1487
      %v1499 = vpack.c.b16 %v1490, %v1489
      %v1500 = vpack.c.b16 %v1492, %v1491
      %v1501 = vpack.c.b16 %v1494, %v1493
      %v1502 = vpack.c.b16 %v1496, %v1495
      %v1503 = vpack.c.b16 %v1497, %v1497
      %v1504 = vrot.slane %v1498, 2
      %v1505 = vrot.slane %v1499, 2
      %v1506 = vsel %vm1300, %v1504, %v1505
      %v1507 = vrot.slane %v1500, 2
      %v1508 = vsel %vm1300, %v1505, %v1507
      %v1509 = vrot.slane %v1501, 2
      %v1510 = vsel %vm1300, %v1507, %v1509
      %v1511 = vrot.slane %v1502, 2
      %v1512 = vsel %vm1300, %v1509, %v1511
      %v1513 = vrot.slane %v1503, 2
      %v1514 = vsel %vm1300, %v1511, %v1513
      %v1536 = vunpack.c.l.b16 %v1460
      %v1537 = vunpack.c.l.b16 %v1461
      %v1538 = vunpack.c.l.b16 %v1462
      %v1539 = vunpack.c.l.b16 %v1463
      %v1540 = vunpack.c.l.b16 %v1464
      %v1541 = vunpack.c.l.b16 %v1465
      %v1542 = vunpack.c.l.b16 %v1466
      %v1543 = vunpack.c.l.b16 %v1467
      %v1544 = vunpack.c.l.b16 %v1468
      %v1545 = vunpack.c.l.b16 %v1469
      %v1546 = vunpack.c.l.b16 %v1470
      %v1547 = vunpack.c.l.b16 %v1471
      %v1548 = vunpack.c.l.b16 %v1472
      %v1549 = vunpack.c.l.b16 %v1473
      %v1550 = vunpack.c.l.b16 %v1474
      %v1551 = vunpack.c.l.b16 %v1475
      %v1552 = vpack.c.b16 %v1537, %v1536
      %v1553 = vpack.c.b16 %v1539, %v1538
      %v1554 = vpack.c.b16 %v1541, %v1540
      %v1555 = vpack.c.b16 %v1543, %v1542
      %v1556 = vpack.c.b16 %v1545, %v1544
      %v1557 = vpack.c.b16 %v1547, %v1546
      %v1558 = vpack.c.b16 %v1549, %v1548
      %v1559 = vpack.c.b16 %v1551, %v1550
      %1568 = vmatprep.subr.bf16.mxu0 0
      %1569 = vmatpush1.bf16.msra.mxu0 %v1552
      %1570 = vmatprep.subr.bf16.mxu0 0
      %1571 = vmatpush1.bf16.msra.mxu0 %v1553
      %1572 = vmatprep.subr.bf16.mxu0 0
      %1573 = vmatpush1.bf16.msra.mxu0 %v1554
      %1574 = vmatprep.subr.bf16.mxu0 0
      %1575 = vmatpush1.bf16.msra.mxu0 %v1555
      %1576 = vmatprep.subr.bf16.mxu0 0
      %1577 = vmatpush1.bf16.msra.mxu0 %v1556
      %1578 = vmatprep.subr.bf16.mxu0 0
      %1579 = vmatpush1.bf16.msra.mxu0 %v1557
      %1580 = vmatprep.subr.bf16.mxu0 0
      %1581 = vmatpush1.bf16.msra.mxu0 %v1558
      %1582 = vmatprep.subr.bf16.mxu0 0
      %1583 = vmatpush1.bf16.msra.mxu0 %v1559
      %1584 = vmatprep.subr.bf16.mxu0 0
      %1585 = vmatpush1.bf16.msra.mxu0 0
      %1586 = vmatprep.subr.bf16.mxu0 0
      %1587 = vmatpush1.bf16.msra.mxu0 0
      %1588 = vmatprep.subr.bf16.mxu0 0
      %1589 = vmatpush1.bf16.msra.mxu0 0
      %1590 = vmatprep.subr.bf16.mxu0 0
      %1591 = vmatpush1.bf16.msra.mxu0 0
      %1592 = vmatprep.subr.bf16.mxu0 0
      %1593 = vmatpush1.bf16.msra.mxu0 0
      %1594 = vmatprep.subr.bf16.mxu0 0
      %1595 = vmatpush1.bf16.msra.mxu0 0
      %1596 = vmatprep.subr.bf16.mxu0 0
      %1597 = vmatpush1.bf16.msra.mxu0 0
      %1598 = vmatprep.subr.bf16.mxu0 0
      %1599 = vmatpush1.bf16.msra.mxu0 0
      %1600 = vmatprep.mubr.bf16.mxu0 0
      %1601 = vmatmul.mubr.bf16.gmra.mrb[0].mxu0 %v1506
      %v1602 = vpop.f32.mrb[0].mxu0
      %v1603 = vadd.f32 0.0, %v1602
      %v1604 = vpop.f32.mrb[0].mxu0
      %v1605 = vpop.f32.mrb[0].mxu0
      %v1606 = vadd.f32 0.0, %v1605
      %v1607 = vpop.f32.mrb[0].mxu0
      %1608 = vmatprep.mubr.bf16.mxu0 0
      %1609 = vmatmul.mubr.bf16.gmra.mrb[0].mxu0 %v1508
      %v1610 = vpop.f32.mrb[0].mxu0
      %v1611 = vadd.f32 0.0, %v1610
      %v1612 = vpop.f32.mrb[0].mxu0
      %v1613 = vpop.f32.mrb[0].mxu0
      %v1614 = vadd.f32 0.0, %v1613
      %v1615 = vpop.f32.mrb[0].mxu0
      %1616 = vmatprep.mubr.bf16.mxu0 0
      %1617 = vmatmul.mubr.bf16.gmra.mrb[0].mxu0 %v1510
      %v1618 = vpop.f32.mrb[0].mxu0
      %v1619 = vadd.f32 0.0, %v1618
      %v1620 = vpop.f32.mrb[0].mxu0
      %v1621 = vpop.f32.mrb[0].mxu0
      %v1622 = vadd.f32 0.0, %v1621
      %v1623 = vpop.f32.mrb[0].mxu0
      %1624 = vmatprep.mubr.bf16.mxu0 0
      %1625 = vmatmul.mubr.bf16.gmra.mrb[0].mxu0 %v1512
      %v1626 = vpop.f32.mrb[0].mxu0
      %v1627 = vadd.f32 0.0, %v1626
      %v1628 = vpop.f32.mrb[0].mxu0
      %v1629 = vpop.f32.mrb[0].mxu0
      %v1630 = vadd.f32 0.0, %v1629
      %v1631 = vpop.f32.mrb[0].mxu0
      %1632 = vmatprep.mubr.bf16.mxu0 0
      %1633 = vmatmul.mubr.bf16.gmra.mrb[0].mxu0 %v1514
      %v1634 = vpop.f32.mrb[0].mxu0
      %v1635 = vadd.f32 0.0, %v1634
      %v1636 = vpop.f32.mrb[0].mxu0
      %v1637 = vpop.f32.mrb[0].mxu0
      %v1638 = vadd.f32 0.0, %v1637
      %v1639 = vpop.f32.mrb[0].mxu0
      %1640 = vdwg.mxu0
      %v1641 = vadd.f32 %v1438, %v1603
      %v1642 = vadd.f32 %v1439, %v1606
      %v1643 = vadd.f32 %v1440, %v1611
      %v1644 = vadd.f32 %v1441, %v1614
      %v1645 = vadd.f32 %v1442, %v1619
      %v1646 = vadd.f32 %v1443, %v1622
      %v1647 = vadd.f32 %v1444, %v1627
      %v1648 = vadd.f32 %v1445, %v1630
      %v1649 = vadd.f32 %v1446, %v1635
      %v1650 = vadd.f32 %v1447, %v1638
      %v1651 = vld [vmem:[%s315 + $0x30] sm:$0x7]
      %s1652 = scalar_lea.vmem %s1, 448
      %v1653 = vld [vmem:[%s1652] sm:$0xf]
      %v1654 = vld [vmem:[%s1652 + $0x4] sm:$0xf]
      %v1655 = vld [vmem:[%s1652 + $0x8] sm:$0xf]
      %v1656 = vld [vmem:[%s1652 + $0xc] sm:$0xf]
      %v1657 = vld [vmem:[%s1652 + $0x10] sm:$0xf]
      %v1658 = vld [vmem:[%s1652 + $0x14] sm:$0xf]
      %v1659 = vld [vmem:[%s1652 + $0x18] sm:$0xf]
      %v1660 = vld [vmem:[%s1652 + $0x1c] sm:$0xf]
      %v1661 = vld [vmem:[%s1652 + $0x20] sm:$0xf]
      %v1662 = vld [vmem:[%s1652 + $0x24] sm:$0xf]
      %v1663 = vld [vmem:[%s1652 + $0x28] sm:$0xf]
      %v1664 = vld [vmem:[%s1652 + $0x2c] sm:$0xf]
      %v1665 = vld [vmem:[%s1652 + $0x30] sm:$0xf]
      %v1666 = vld [vmem:[%s1652 + $0x34] sm:$0xf]
      %v1667 = vld [vmem:[%s1652 + $0x38] sm:$0xf]
      %v1668 = vld [vmem:[%s1652 + $0x3c] sm:$0xf]
      %v1670 = vunpack.c.l.b16 %v1651
      %v1671 = vpack.c.b16 %v1670, %v1670
      %vm1672 = vsmask.f32 5376
      %v1674 = vshrl.u32 %v1498, 16
      %v1676 = vrot.slane %v1674, 2
      %v1677 = vshll.u32 %v1498, 16
      %v1679 = vrot.slane %v1677, 3
      %v1680 = vor.u32 %v1676, %v1679
      %v1682 = vshrl.u32 %v1499, 16
      %v1684 = vrot.slane %v1682, 2
      %v1685 = vshll.u32 %v1499, 16
      %v1687 = vrot.slane %v1685, 3
      %v1688 = vor.u32 %v1684, %v1687
      %v1689 = vsel %vm1672, %v1680, %v1688
      %v1691 = vshrl.u32 %v1500, 16
      %v1693 = vrot.slane %v1691, 2
      %v1694 = vshll.u32 %v1500, 16
      %v1696 = vrot.slane %v1694, 3
      %v1697 = vor.u32 %v1693, %v1696
      %v1698 = vsel %vm1672, %v1688, %v1697
      %v1700 = vshrl.u32 %v1501, 16
      %v1702 = vrot.slane %v1700, 2
      %v1703 = vshll.u32 %v1501, 16
      %v1705 = vrot.slane %v1703, 3
      %v1706 = vor.u32 %v1702, %v1705
      %v1707 = vsel %vm1672, %v1697, %v1706
      %v1709 = vshrl.u32 %v1502, 16
      %v1711 = vrot.slane %v1709, 2
      %v1712 = vshll.u32 %v1502, 16
      %v1714 = vrot.slane %v1712, 3
      %v1715 = vor.u32 %v1711, %v1714
      %v1716 = vsel %vm1672, %v1706, %v1715
      %v1718 = vshrl.u32 %v1671, 16
      %v1720 = vrot.slane %v1718, 2
      %v1721 = vshll.u32 %v1671, 16
      %v1723 = vrot.slane %v1721, 3
      %v1724 = vor.u32 %v1720, %v1723
      %v1725 = vsel %vm1672, %v1715, %v1724
      %v1747 = vunpack.c.l.b16 %v1653
      %v1748 = vunpack.c.l.b16 %v1654
      %v1749 = vunpack.c.l.b16 %v1655
      %v1750 = vunpack.c.l.b16 %v1656
      %v1751 = vunpack.c.l.b16 %v1657
      %v1752 = vunpack.c.l.b16 %v1658
      %v1753 = vunpack.c.l.b16 %v1659
      %v1754 = vunpack.c.l.b16 %v1660
      %v1755 = vunpack.c.l.b16 %v1661
      %v1756 = vunpack.c.l.b16 %v1662
      %v1757 = vunpack.c.l.b16 %v1663
      %v1758 = vunpack.c.l.b16 %v1664
      %v1759 = vunpack.c.l.b16 %v1665
      %v1760 = vunpack.c.l.b16 %v1666
      %v1761 = vunpack.c.l.b16 %v1667
      %v1762 = vunpack.c.l.b16 %v1668
      %v1763 = vpack.c.b16 %v1748, %v1747
      %v1764 = vpack.c.b16 %v1750, %v1749
      %v1765 = vpack.c.b16 %v1752, %v1751
      %v1766 = vpack.c.b16 %v1754, %v1753
      %v1767 = vpack.c.b16 %v1756, %v1755
      %v1768 = vpack.c.b16 %v1758, %v1757
      %v1769 = vpack.c.b16 %v1760, %v1759
      %v1770 = vpack.c.b16 %v1762, %v1761
      %1779 = vmatprep.subr.bf16.mxu0 0
      %1780 = vmatpush1.bf16.msra.mxu0 %v1763
      %1781 = vmatprep.subr.bf16.mxu0 0
      %1782 = vmatpush1.bf16.msra.mxu0 %v1764
      %1783 = vmatprep.subr.bf16.mxu0 0
      %1784 = vmatpush1.bf16.msra.mxu0 %v1765
      %1785 = vmatprep.subr.bf16.mxu0 0
      %1786 = vmatpush1.bf16.msra.mxu0 %v1766
      %1787 = vmatprep.subr.bf16.mxu0 0
      %1788 = vmatpush1.bf16.msra.mxu0 %v1767
      %1789 = vmatprep.subr.bf16.mxu0 0
      %1790 = vmatpush1.bf16.msra.mxu0 %v1768
      %1791 = vmatprep.subr.bf16.mxu0 0
      %1792 = vmatpush1.bf16.msra.mxu0 %v1769
      %1793 = vmatprep.subr.bf16.mxu0 0
      %1794 = vmatpush1.bf16.msra.mxu0 %v1770
      %1795 = vmatprep.subr.bf16.mxu0 0
      %1796 = vmatpush1.bf16.msra.mxu0 0
      %1797 = vmatprep.subr.bf16.mxu0 0
      %1798 = vmatpush1.bf16.msra.mxu0 0
      %1799 = vmatprep.subr.bf16.mxu0 0
      %1800 = vmatpush1.bf16.msra.mxu0 0
      %1801 = vmatprep.subr.bf16.mxu0 0
      %1802 = vmatpush1.bf16.msra.mxu0 0
      %1803 = vmatprep.subr.bf16.mxu0 0
      %1804 = vmatpush1.bf16.msra.mxu0 0
      %1805 = vmatprep.subr.bf16.mxu0 0
      %1806 = vmatpush1.bf16.msra.mxu0 0
      %1807 = vmatprep.subr.bf16.mxu0 0
      %1808 = vmatpush1.bf16.msra.mxu0 0
      %1809 = vmatprep.subr.bf16.mxu0 0
      %1810 = vmatpush1.bf16.msra.mxu0 0
      %1811 = vmatprep.mubr.bf16.mxu0 0
      %1812 = vmatmul.mubr.bf16.gmra.mrb[0].mxu0 %v1689
      %v1813 = vpop.f32.mrb[0].mxu0
      %v1814 = vadd.f32 0.0, %v1813
      %v1815 = vpop.f32.mrb[0].mxu0
      %v1816 = vpop.f32.mrb[0].mxu0
      %v1817 = vadd.f32 0.0, %v1816
      %v1818 = vpop.f32.mrb[0].mxu0
      %1819 = vmatprep.mubr.bf16.mxu0 0
      %1820 = vmatmul.mubr.bf16.gmra.mrb[0].mxu0 %v1698
      %v1821 = vpop.f32.mrb[0].mxu0
      %v1822 = vadd.f32 0.0, %v1821
      %v1823 = vpop.f32.mrb[0].mxu0
      %v1824 = vpop.f32.mrb[0].mxu0
      %v1825 = vadd.f32 0.0, %v1824
      %v1826 = vpop.f32.mrb[0].mxu0
      %1827 = vmatprep.mubr.bf16.mxu0 0
      %1828 = vmatmul.mubr.bf16.gmra.mrb[0].mxu0 %v1707
      %v1829 = vpop.f32.mrb[0].mxu0
      %v1830 = vadd.f32 0.0, %v1829
      %v1831 = vpop.f32.mrb[0].mxu0
      %v1832 = vpop.f32.mrb[0].mxu0
      %v1833 = vadd.f32 0.0, %v1832
      %v1834 = vpop.f32.mrb[0].mxu0
      %1835 = vmatprep.mubr.bf16.mxu0 0
      %1836 = vmatmul.mubr.bf16.gmra.mrb[0].mxu0 %v1716
      %v1837 = vpop.f32.mrb[0].mxu0
      %v1838 = vadd.f32 0.0, %v1837
      %v1839 = vpop.f32.mrb[0].mxu0
      %v1840 = vpop.f32.mrb[0].mxu0
      %v1841 = vadd.f32 0.0, %v1840
      %v1842 = vpop.f32.mrb[0].mxu0
      %1843 = vmatprep.mubr.bf16.mxu0 0
      %1844 = vmatmul.mubr.bf16.gmra.mrb[0].mxu0 %v1725
      %v1845 = vpop.f32.mrb[0].mxu0
      %v1846 = vadd.f32 0.0, %v1845
      %v1847 = vpop.f32.mrb[0].mxu0
      %v1848 = vpop.f32.mrb[0].mxu0
      %v1849 = vadd.f32 0.0, %v1848
      %v1850 = vpop.f32.mrb[0].mxu0
      %1851 = vdwg.mxu0
      %v1852 = vadd.f32 %v1641, %v1814
      %v1853 = vadd.f32 %v1642, %v1817
      %v1854 = vadd.f32 %v1643, %v1822
      %v1855 = vadd.f32 %v1644, %v1825
      %v1856 = vadd.f32 %v1645, %v1830
      %v1857 = vadd.f32 %v1646, %v1833
      %v1858 = vadd.f32 %v1647, %v1838
      %v1859 = vadd.f32 %v1648, %v1841
      %v1860 = vadd.f32 %v1649, %v1846
      %v1861 = vadd.f32 %v1650, %v1849
      %v1862 = vld [vmem:[%s315 + $0x8] sm:$0x8]
      %s1863 = scalar_lea.vmem %s1, 512
      %v1864 = vld [vmem:[%s1863] sm:$0xf]
      %v1865 = vld [vmem:[%s1863 + $0x4] sm:$0xf]
      %v1866 = vld [vmem:[%s1863 + $0x8] sm:$0xf]
      %v1867 = vld [vmem:[%s1863 + $0xc] sm:$0xf]
      %v1868 = vld [vmem:[%s1863 + $0x10] sm:$0xf]
      %v1869 = vld [vmem:[%s1863 + $0x14] sm:$0xf]
      %v1870 = vld [vmem:[%s1863 + $0x18] sm:$0xf]
      %v1871 = vld [vmem:[%s1863 + $0x1c] sm:$0xf]
      %v1872 = vld [vmem:[%s1863 + $0x20] sm:$0xf]
      %v1873 = vld [vmem:[%s1863 + $0x24] sm:$0xf]
      %v1874 = vld [vmem:[%s1863 + $0x28] sm:$0xf]
      %v1875 = vld [vmem:[%s1863 + $0x2c] sm:$0xf]
      %v1876 = vld [vmem:[%s1863 + $0x30] sm:$0xf]
      %v1877 = vld [vmem:[%s1863 + $0x34] sm:$0xf]
      %v1878 = vld [vmem:[%s1863 + $0x38] sm:$0xf]
      %v1879 = vld [vmem:[%s1863 + $0x3c] sm:$0xf]
      %v1881 = vunpack.c.l.b16 %v1862
      %v1882 = vpack.c.b16 %v1488, %v1881
      %vm1883 = vcmask 1044480
      %v1884 = vrot.slane %v1882, 3
      %v1885 = vrot.slane %v1499, 3
      %v1886 = vsel %vm1883, %v1884, %v1885
      %v1887 = vrot.slane %v1500, 3
      %v1888 = vsel %vm1883, %v1885, %v1887
      %v1889 = vrot.slane %v1501, 3
      %v1890 = vsel %vm1883, %v1887, %v1889
      %v1891 = vrot.slane %v1502, 3
      %v1892 = vsel %vm1883, %v1889, %v1891
      %v1893 = vrot.slane %v1671, 3
      %v1894 = vsel %vm1883, %v1891, %v1893
      %v1916 = vunpack.c.l.b16 %v1864
      %v1917 = vunpack.c.l.b16 %v1865
      %v1918 = vunpack.c.l.b16 %v1866
      %v1919 = vunpack.c.l.b16 %v1867
      %v1920 = vunpack.c.l.b16 %v1868
      %v1921 = vunpack.c.l.b16 %v1869
      %v1922 = vunpack.c.l.b16 %v1870
      %v1923 = vunpack.c.l.b16 %v1871
      %v1924 = vunpack.c.l.b16 %v1872
      %v1925 = vunpack.c.l.b16 %v1873
      %v1926 = vunpack.c.l.b16 %v1874
      %v1927 = vunpack.c.l.b16 %v1875
      %v1928 = vunpack.c.l.b16 %v1876
      %v1929 = vunpack.c.l.b16 %v1877
      %v1930 = vunpack.c.l.b16 %v1878
      %v1931 = vunpack.c.l.b16 %v1879
      %v1932 = vpack.c.b16 %v1917, %v1916
      %v1933 = vpack.c.b16 %v1919, %v1918
      %v1934 = vpack.c.b16 %v1921, %v1920
      %v1935 = vpack.c.b16 %v1923, %v1922
      %v1936 = vpack.c.b16 %v1925, %v1924
      %v1937 = vpack.c.b16 %v1927, %v1926
      %v1938 = vpack.c.b16 %v1929, %v1928
      %v1939 = vpack.c.b16 %v1931, %v1930
      %1948 = vmatprep.subr.bf16.mxu0 0
      %1949 = vmatpush1.bf16.msra.mxu0 %v1932
      %1950 = vmatprep.subr.bf16.mxu0 0
      %1951 = vmatpush1.bf16.msra.mxu0 %v1933
      %1952 = vmatprep.subr.bf16.mxu0 0
      %1953 = vmatpush1.bf16.msra.mxu0 %v1934
      %1954 = vmatprep.subr.bf16.mxu0 0
      %1955 = vmatpush1.bf16.msra.mxu0 %v1935
      %1956 = vmatprep.subr.bf16.mxu0 0
      %1957 = vmatpush1.bf16.msra.mxu0 %v1936
      %1958 = vmatprep.subr.bf16.mxu0 0
      %1959 = vmatpush1.bf16.msra.mxu0 %v1937
      %1960 = vmatprep.subr.bf16.mxu0 0
      %1961 = vmatpush1.bf16.msra.mxu0 %v1938
      %1962 = vmatprep.subr.bf16.mxu0 0
      %1963 = vmatpush1.bf16.msra.mxu0 %v1939
      %1964 = vmatprep.subr.bf16.mxu0 0
      %1965 = vmatpush1.bf16.msra.mxu0 0
      %1966 = vmatprep.subr.bf16.mxu0 0
      %1967 = vmatpush1.bf16.msra.mxu0 0
      %1968 = vmatprep.subr.bf16.mxu0 0
      %1969 = vmatpush1.bf16.msra.mxu0 0
      %1970 = vmatprep.subr.bf16.mxu0 0
      %1971 = vmatpush1.bf16.msra.mxu0 0
      %1972 = vmatprep.subr.bf16.mxu0 0
      %1973 = vmatpush1.bf16.msra.mxu0 0
      %1974 = vmatprep.subr.bf16.mxu0 0
      %1975 = vmatpush1.bf16.msra.mxu0 0
      %1976 = vmatprep.subr.bf16.mxu0 0
      %1977 = vmatpush1.bf16.msra.mxu0 0
      %1978 = vmatprep.subr.bf16.mxu0 0
      %1979 = vmatpush1.bf16.msra.mxu0 0
      %1980 = vmatprep.mubr.bf16.mxu0 0
      %1981 = vmatmul.mubr.bf16.gmra.mrb[0].mxu0 %v1886
      %v1982 = vpop.f32.mrb[0].mxu0
      %v1983 = vadd.f32 0.0, %v1982
      %v1984 = vpop.f32.mrb[0].mxu0
      %v1985 = vpop.f32.mrb[0].mxu0
      %v1986 = vadd.f32 0.0, %v1985
      %v1987 = vpop.f32.mrb[0].mxu0
      %1988 = vmatprep.mubr.bf16.mxu0 0
      %1989 = vmatmul.mubr.bf16.gmra.mrb[0].mxu0 %v1888
      %v1990 = vpop.f32.mrb[0].mxu0
      %v1991 = vadd.f32 0.0, %v1990
      %v1992 = vpop.f32.mrb[0].mxu0
      %v1993 = vpop.f32.mrb[0].mxu0
      %v1994 = vadd.f32 0.0, %v1993
      %v1995 = vpop.f32.mrb[0].mxu0
      %1996 = vmatprep.mubr.bf16.mxu0 0
      %1997 = vmatmul.mubr.bf16.gmra.mrb[0].mxu0 %v1890
      %v1998 = vpop.f32.mrb[0].mxu0
      %v1999 = vadd.f32 0.0, %v1998
      %v2000 = vpop.f32.mrb[0].mxu0
      %v2001 = vpop.f32.mrb[0].mxu0
      %v2002 = vadd.f32 0.0, %v2001
      %v2003 = vpop.f32.mrb[0].mxu0
      %2004 = vmatprep.mubr.bf16.mxu0 0
      %2005 = vmatmul.mubr.bf16.gmra.mrb[0].mxu0 %v1892
      %v2006 = vpop.f32.mrb[0].mxu0
      %v2007 = vadd.f32 0.0, %v2006
      %v2008 = vpop.f32.mrb[0].mxu0
      %v2009 = vpop.f32.mrb[0].mxu0
      %v2010 = vadd.f32 0.0, %v2009
      %v2011 = vpop.f32.mrb[0].mxu0
      %2012 = vmatprep.mubr.bf16.mxu0 0
      %2013 = vmatmul.mubr.bf16.gmra.mrb[0].mxu0 %v1894
      %v2014 = vpop.f32.mrb[0].mxu0
      %v2015 = vadd.f32 0.0, %v2014
      %v2016 = vpop.f32.mrb[0].mxu0
      %v2017 = vpop.f32.mrb[0].mxu0
      %v2018 = vadd.f32 0.0, %v2017
      %v2019 = vpop.f32.mrb[0].mxu0
      %2020 = vdwg.mxu0
      %v2021 = vadd.f32 %v1852, %v1983
      %v2022 = vadd.f32 %v1853, %v1986
      %v2023 = vadd.f32 %v1854, %v1991
      %v2024 = vadd.f32 %v1855, %v1994
      %v2025 = vadd.f32 %v1856, %v1999
      %v2026 = vadd.f32 %v1857, %v2002
      %v2027 = vadd.f32 %v1858, %v2007
      %v2028 = vadd.f32 %v1859, %v2010
      %v2029 = vadd.f32 %v1860, %v2015
      %v2030 = vadd.f32 %v1861, %v2018
      %v2031 = vld [vmem:[%s2] sm:$0x1]
      %v2033 = vlaneseq
      %v2034 = vshrl.u32 %v2033, 7
      %v2035 = vsub.s32 0, %v2034
      %v2036 = vrot.slane %v2031, %v2035
      %v2038 = vmul.f32 %v2021, %v2036
      %v2039 = vmul.f32 %v2022, %v2036
      %v2040 = vmul.f32 %v2023, %v2036
      %v2041 = vmul.f32 %v2024, %v2036
      %v2042 = vmul.f32 %v2025, %v2036
      %v2043 = vmul.f32 %v2026, %v2036
      %v2044 = vmul.f32 %v2027, %v2036
      %v2045 = vmul.f32 %v2028, %v2036
      %v2046 = vmul.f32 %v2029, %v2036
      %v2047 = vmul.f32 %v2030, %v2036
      %v2048 = vld [vmem:[%s3] sm:$0x1]
      %v2050 = vlaneseq
      %v2051 = vshrl.u32 %v2050, 7
      %v2052 = vsub.s32 0, %v2051
      %v2053 = vrot.slane %v2048, %v2052
      %v2055 = vadd.f32 %v2038, %v2053
      %v2056 = vadd.f32 %v2039, %v2053
      %v2057 = vadd.f32 %v2040, %v2053
      %v2058 = vadd.f32 %v2041, %v2053
      %v2059 = vadd.f32 %v2042, %v2053
      %v2060 = vadd.f32 %v2043, %v2053
      %v2061 = vadd.f32 %v2044, %v2053
      %v2062 = vadd.f32 %v2045, %v2053
      %v2063 = vadd.f32 %v2046, %v2053
      %v2064 = vadd.f32 %v2047, %v2053
      %v2065 = vld [vmem:[%s320] sm:$0xf]
      %v2066 = vld [vmem:[%s320 + $0x4] sm:$0xf]
      %v2067 = vld [vmem:[%s320 + $0x8] sm:$0xf]
      %v2068 = vld [vmem:[%s320 + $0xc] sm:$0xf]
      %v2069 = vld [vmem:[%s320 + $0x10] sm:$0xf]
      %v2070 = vld [vmem:[%s320 + $0x14] sm:$0xf]
      %v2071 = vld [vmem:[%s320 + $0x18] sm:$0xf]
      %v2072 = vld [vmem:[%s320 + $0x1c] sm:$0xf]
      %v2073 = vld [vmem:[%s320 + $0x20] sm:$0xf]
      %v2074 = vld [vmem:[%s320 + $0x24] sm:$0xf]
      %v2075 = vld [vmem:[%s5] sm:$0xf]
      %v2076 = vld [vmem:[%s5 + $0x4] sm:$0xf]
      %v2077 = vld [vmem:[%s5 + $0x8] sm:$0xf]
      %v2078 = vld [vmem:[%s5 + $0xc] sm:$0xf]
      %v2079 = vld [vmem:[%s5 + $0x10] sm:$0xf]
      %v2080 = vld [vmem:[%s5 + $0x14] sm:$0xf]
      %v2081 = vld [vmem:[%s5 + $0x18] sm:$0xf]
      %v2082 = vld [vmem:[%s5 + $0x1c] sm:$0xf]
      %v2083 = vld [vmem:[%s5 + $0x20] sm:$0xf]
      %v2084 = vld [vmem:[%s5 + $0x24] sm:$0xf]
      %v2085 = vld [vmem:[%s5 + $0x28] sm:$0xf]
      %v2086 = vld [vmem:[%s5 + $0x2c] sm:$0xf]
      %v2087 = vld [vmem:[%s5 + $0x30] sm:$0xf]
      %v2088 = vld [vmem:[%s5 + $0x34] sm:$0xf]
      %v2089 = vld [vmem:[%s5 + $0x38] sm:$0xf]
      %v2090 = vld [vmem:[%s5 + $0x3c] sm:$0xf]
      %v2101 = vunpack.c.l.b16 %v2065
      %v2102 = vunpack.c.l.b16 %v2066
      %v2103 = vunpack.c.l.b16 %v2067
      %v2104 = vunpack.c.l.b16 %v2068
      %v2105 = vunpack.c.l.b16 %v2069
      %v2106 = vunpack.c.l.b16 %v2070
      %v2107 = vunpack.c.l.b16 %v2071
      %v2108 = vunpack.c.l.b16 %v2072
      %v2109 = vunpack.c.l.b16 %v2073
      %v2110 = vunpack.c.l.b16 %v2074
      %v2111 = vpack.c.b16 %v2102, %v2101
      %v2112 = vpack.c.b16 %v2104, %v2103
      %v2113 = vpack.c.b16 %v2106, %v2105
      %v2114 = vpack.c.b16 %v2108, %v2107
      %v2115 = vpack.c.b16 %v2110, %v2109
      %v2137 = vunpack.c.l.b16 %v2075
      %v2138 = vunpack.c.l.b16 %v2076
      %v2139 = vunpack.c.l.b16 %v2077
      %v2140 = vunpack.c.l.b16 %v2078
      %v2141 = vunpack.c.l.b16 %v2079
      %v2142 = vunpack.c.l.b16 %v2080
      %v2143 = vunpack.c.l.b16 %v2081
      %v2144 = vunpack.c.l.b16 %v2082
      %v2145 = vunpack.c.l.b16 %v2083
      %v2146 = vunpack.c.l.b16 %v2084
      %v2147 = vunpack.c.l.b16 %v2085
      %v2148 = vunpack.c.l.b16 %v2086
      %v2149 = vunpack.c.l.b16 %v2087
      %v2150 = vunpack.c.l.b16 %v2088
      %v2151 = vunpack.c.l.b16 %v2089
      %v2152 = vunpack.c.l.b16 %v2090
      %v2153 = vpack.c.b16 %v2138, %v2137
      %v2154 = vpack.c.b16 %v2140, %v2139
      %v2155 = vpack.c.b16 %v2142, %v2141
      %v2156 = vpack.c.b16 %v2144, %v2143
      %v2157 = vpack.c.b16 %v2146, %v2145
      %v2158 = vpack.c.b16 %v2148, %v2147
      %v2159 = vpack.c.b16 %v2150, %v2149
      %v2160 = vpack.c.b16 %v2152, %v2151
      %2169 = vmatprep.subr.bf16.mxu0 0
      %2170 = vmatpush1.bf16.msra.mxu0 %v2153
      %2171 = vmatprep.subr.bf16.mxu0 0
      %2172 = vmatpush1.bf16.msra.mxu0 %v2154
      %2173 = vmatprep.subr.bf16.mxu0 0
      %2174 = vmatpush1.bf16.msra.mxu0 %v2155
      %2175 = vmatprep.subr.bf16.mxu0 0
      %2176 = vmatpush1.bf16.msra.mxu0 %v2156
      %2177 = vmatprep.subr.bf16.mxu0 0
      %2178 = vmatpush1.bf16.msra.mxu0 %v2157
      %2179 = vmatprep.subr.bf16.mxu0 0
      %2180 = vmatpush1.bf16.msra.mxu0 %v2158
      %2181 = vmatprep.subr.bf16.mxu0 0
      %2182 = vmatpush1.bf16.msra.mxu0 %v2159
      %2183 = vmatprep.subr.bf16.mxu0 0
      %2184 = vmatpush1.bf16.msra.mxu0 %v2160
      %2185 = vmatprep.subr.bf16.mxu0 0
      %2186 = vmatpush1.bf16.msra.mxu0 0
      %2187 = vmatprep.subr.bf16.mxu0 0
      %2188 = vmatpush1.bf16.msra.mxu0 0
      %2189 = vmatprep.subr.bf16.mxu0 0
      %2190 = vmatpush1.bf16.msra.mxu0 0
      %2191 = vmatprep.subr.bf16.mxu0 0
      %2192 = vmatpush1.bf16.msra.mxu0 0
      %2193 = vmatprep.subr.bf16.mxu0 0
      %2194 = vmatpush1.bf16.msra.mxu0 0
      %2195 = vmatprep.subr.bf16.mxu0 0
      %2196 = vmatpush1.bf16.msra.mxu0 0
      %2197 = vmatprep.subr.bf16.mxu0 0
      %2198 = vmatpush1.bf16.msra.mxu0 0
      %2199 = vmatprep.subr.bf16.mxu0 0
      %2200 = vmatpush1.bf16.msra.mxu0 0
      %2201 = vmatprep.mubr.bf16.mxu0 0
      %2202 = vmatmul.mubr.bf16.gmra.mrb[0].mxu0 %v2111
      %v2203 = vpop.f32.mrb[0].mxu0
      %v2204 = vadd.f32 0.0, %v2203
      %v2205 = vpop.f32.mrb[0].mxu0
      %v2206 = vpop.f32.mrb[0].mxu0
      %v2207 = vadd.f32 0.0, %v2206
      %v2208 = vpop.f32.mrb[0].mxu0
      %2209 = vmatprep.mubr.bf16.mxu0 0
      %2210 = vmatmul.mubr.bf16.gmra.mrb[0].mxu0 %v2112
      %v2211 = vpop.f32.mrb[0].mxu0
      %v2212 = vadd.f32 0.0, %v2211
      %v2213 = vpop.f32.mrb[0].mxu0
      %v2214 = vpop.f32.mrb[0].mxu0
      %v2215 = vadd.f32 0.0, %v2214
      %v2216 = vpop.f32.mrb[0].mxu0
      %2217 = vmatprep.mubr.bf16.mxu0 0
      %2218 = vmatmul.mubr.bf16.gmra.mrb[0].mxu0 %v2113
      %v2219 = vpop.f32.mrb[0].mxu0
      %v2220 = vadd.f32 0.0, %v2219
      %v2221 = vpop.f32.mrb[0].mxu0
      %v2222 = vpop.f32.mrb[0].mxu0
      %v2223 = vadd.f32 0.0, %v2222
      %v2224 = vpop.f32.mrb[0].mxu0
      %2225 = vmatprep.mubr.bf16.mxu0 0
      %2226 = vmatmul.mubr.bf16.gmra.mrb[0].mxu0 %v2114
      %v2227 = vpop.f32.mrb[0].mxu0
      %v2228 = vadd.f32 0.0, %v2227
      %v2229 = vpop.f32.mrb[0].mxu0
      %v2230 = vpop.f32.mrb[0].mxu0
      %v2231 = vadd.f32 0.0, %v2230
      %v2232 = vpop.f32.mrb[0].mxu0
      %2233 = vmatprep.mubr.bf16.mxu0 0
      %2234 = vmatmul.mubr.bf16.gmra.mrb[0].mxu0 %v2115
      %v2235 = vpop.f32.mrb[0].mxu0
      %v2236 = vadd.f32 0.0, %v2235
      %v2237 = vpop.f32.mrb[0].mxu0
      %v2238 = vpop.f32.mrb[0].mxu0
      %v2239 = vadd.f32 0.0, %v2238
      %v2240 = vpop.f32.mrb[0].mxu0
      %2241 = vdwg.mxu0
      %v2242 = vld [vmem:[%s6] sm:$0x1]
      %v2244 = vlaneseq
      %v2245 = vshrl.u32 %v2244, 7
      %v2246 = vsub.s32 0, %v2245
      %v2247 = vrot.slane %v2242, %v2246
      %v2249 = vmul.f32 %v2204, %v2247
      %v2250 = vmul.f32 %v2207, %v2247
      %v2251 = vmul.f32 %v2212, %v2247
      %v2252 = vmul.f32 %v2215, %v2247
      %v2253 = vmul.f32 %v2220, %v2247
      %v2254 = vmul.f32 %v2223, %v2247
      %v2255 = vmul.f32 %v2228, %v2247
      %v2256 = vmul.f32 %v2231, %v2247
      %v2257 = vmul.f32 %v2236, %v2247
      %v2258 = vmul.f32 %v2239, %v2247
      %v2259 = vld [vmem:[%s7] sm:$0x1]
      %v2261 = vlaneseq
      %v2262 = vshrl.u32 %v2261, 7
      %v2263 = vsub.s32 0, %v2262
      %v2264 = vrot.slane %v2259, %v2263
      %v2266 = vadd.f32 %v2249, %v2264
      %v2267 = vadd.f32 %v2250, %v2264
      %v2268 = vadd.f32 %v2251, %v2264
      %v2269 = vadd.f32 %v2252, %v2264
      %v2270 = vadd.f32 %v2253, %v2264
      %v2271 = vadd.f32 %v2254, %v2264
      %v2272 = vadd.f32 %v2255, %v2264
      %v2273 = vadd.f32 %v2256, %v2264
      %v2274 = vadd.f32 %v2257, %v2264
      %v2275 = vadd.f32 %v2258, %v2264
      %v2276 = vadd.f32 %v2055, %v2266
      %v2277 = vadd.f32 %v2056, %v2267
      %v2278 = vadd.f32 %v2057, %v2268
      %v2279 = vadd.f32 %v2058, %v2269
      %v2280 = vadd.f32 %v2059, %v2270
      %v2281 = vadd.f32 %v2060, %v2271
      %v2282 = vadd.f32 %v2061, %v2272
      %v2283 = vadd.f32 %v2062, %v2273
      %v2284 = vadd.f32 %v2063, %v2274
      %v2285 = vadd.f32 %v2064, %v2275
      %v2286 = vmax.f32 %v2276, 0.0
      %v2287 = vmax.f32 %v2277, 0.0
      %v2288 = vmax.f32 %v2278, 0.0
      %v2289 = vmax.f32 %v2279, 0.0
      %v2290 = vmax.f32 %v2280, 0.0
      %v2291 = vmax.f32 %v2281, 0.0
      %v2292 = vmax.f32 %v2282, 0.0
      %v2293 = vmax.f32 %v2283, 0.0
      %v2294 = vmax.f32 %v2284, 0.0
      %v2295 = vmax.f32 %v2285, 0.0
      %2296 = vst [vmem:[%s325] sm:$0xff] %v2286
      %2297 = vst [vmem:[%s325 + $0x8] sm:$0xff] %v2287
      %2298 = vst [vmem:[%s325 + $0x10] sm:$0xff] %v2288
      %2299 = vst [vmem:[%s325 + $0x18] sm:$0xff] %v2289
      %2300 = vst [vmem:[%s325 + $0x20] sm:$0xff] %v2290
      %2301 = vst [vmem:[%s325 + $0x28] sm:$0xff] %v2291
      %2302 = vst [vmem:[%s325 + $0x30] sm:$0xff] %v2292
      %2303 = vst [vmem:[%s325 + $0x38] sm:$0xff] %v2293
      %2304 = vst [vmem:[%s325 + $0x40] sm:$0xff] %v2294
      %2305 = vst [vmem:[%s325 + $0x48] sm:$0xff] %v2295
      %p2306 = scmp.lt.s32.totalorder %s19, 1
      %s2307 = scalar_select %p2306, %s19, 1
      %s2308 = smul.addr %s2307, 10
      %s2309 = smul.addr %s2308, 8
      %s2310 = scalar_lea.vmem %s8, %s2309
      // Predicated region
      $region53: #{basic_block_forward.3} parent=51 // pred_check
        %p2311 = pneg %p215
      $region54: #{basic_block_forward.3} parent=51 // pred_check_branch
        %2313 = sbr.rel (%p2311) target = $region56
      $region55: #{basic_block_forward.3} parent=51 // pred_region
        _
      $region56: #{basic_block_forward.3} parent=51 // pred_fallthru
        _
    $region52: #{basic_block_forward.3} parent=5 // pred_fallthru
      _
    %p2314 = scmp.le.s32.totalorder 2, %s14
    // Predicated region
    $region57: #{basic_block_forward.3} parent=5 // pred_check
      %p2315 = pneg %p2314
    $region58: #{basic_block_forward.3} parent=5 // pred_check_branch
      %2317 = sbr.rel (%p2315) target = $region60
    $region59: #{basic_block_forward.3} parent=5 // pred_region
      %s2318 = ssub.s32 %s14, 2
      // Predicated region
      $region61: #{basic_block_forward.3} parent=59 // pred_check
        %p2319 = pneg %p221
      $region62: #{basic_block_forward.3} parent=59 // pred_check_branch
        %2321 = sbr.rel (%p2319) target = $region64
      $region63: #{basic_block_forward.3} parent=59 // pred_region
        %p2322 = scmp.lt.s32.totalorder %s20, 1
        %s2323 = scalar_select %p2322, %s20, 1
        %s2324 = smul.addr %s2323, 10
        %s2325 = smul.addr %s2324, 8
        %s2326 = scalar_lea.vmem %s8, %s2325
      $region64: #{basic_block_forward.3} parent=59 // pred_fallthru
        _
    $region60: #{basic_block_forward.3} parent=5 // pred_fallthru
      _
  $region6: #{basic_block_forward.3} parent=0 // loop_footer
    %s18 = sadd.s32 1, %s14
  $region7: #{basic_block_forward.3} parent=0 // loop_footer_branch
    %13 = sbr.rel target = $region3
  $region8: #{basic_block_forward.3} parent=0 // loop_exit
    _

</llo_original>
